<compile_context>
chip_gen: v7x
topology: tpu7x:2x2x1
jax: 0.10.0
libtpu: 0.0.40
codegen_flags: <defaults>
</compile_context>

<pallas_src>
import math

import jax
import jax.numpy as jnp
from jax import lax
from jax.experimental import pallas as pl
from jax.experimental.pallas import tpu as pltpu

NUM_CHANNELS = 256          # fixed by the module (time_proj num_channels)
HALF_DIM = NUM_CHANNELS // 2
MAX_PERIOD = 10000.0


# ----------------------------------------------------------------------------
# Kernel
# ----------------------------------------------------------------------------
def _combined_kernel(
    ts_ref,        # (B, 1)            f32       timesteps
    pooled_ref,    # (B, P)            bf16      pooled_projection
    w1t_ref,       # (256, E)          bf16      timestep linear_1 weight (pre-T)
    w1p_ref,       # (P, E)            bf16/i8   text linear_1 weight (pre-T)
    s1p_ref,       # (1, E)            f32       per-column dequant scale (1.0 if bf16)
    b1_ref,        # (2, E)            f32       row0 = b1 timestep, row1 = b1 text
    w2t_ref,       # (E, TN)           bf16/i8   timestep linear_2 weight, column tile
    w2p_ref,       # (E, TN)           bf16/i8   text linear_2 weight, column tile
    s2_ref,        # (2, TN)           f32       per-column dequant scales (1.0 if bf16)
    b2_ref,        # (1, TN)           f32       folded (b2t + b2p), column tile
    out_ref,       # (B, TN)
):
    # ---- _time_proj(256, t): sinusoidal embedding; freqs built in-kernel ----
    k = lax.broadcasted_iota(jnp.int32, (1, HALF_DIM), 1).astype(jnp.float32)
    freqs = jnp.exp(k * jnp.float32(-math.log(MAX_PERIOD) / HALF_DIM))
    emb = ts_ref[...] * freqs                                      # (B, HALF) f32
    # cat([cos, sin]) exactly as the reference _time_proj (flip_sin_to_cos order).
    tproj = jnp.concatenate([jnp.cos(emb), jnp.sin(emb)], axis=-1)  # (B, 256)
    tproj = tproj.astype(jnp.bfloat16)

    b1 = b1_ref[...]                                               # (2, E) f32

    # ---- timestep_embedder: linear_1 (single K=256 matmul) + SiLU -----------
    h = jnp.dot(tproj, w1t_ref[...].astype(jnp.bfloat16),
                preferred_element_type=jnp.float32) + b1[0:1, :]
    h = h * jax.nn.sigmoid(h)                                      # SiLU, f32

    # ---- text_embedder: linear_1 + SiLU (per-column dequant scale) ----------
    g = (jnp.dot(pooled_ref[...], w1p_ref[...].astype(jnp.bfloat16),
                 preferred_element_type=jnp.float32) * s1p_ref[...]
         + b1[1:2, :])
    g = g * jax.nn.sigmoid(g)                                      # SiLU, f32

    # ---- linear_2 of both branches on this column tile + folded bias + add --
    s2 = s2_ref[...]
    out = (jnp.dot(h.astype(jnp.bfloat16), w2t_ref[...].astype(jnp.bfloat16),
                   preferred_element_type=jnp.float32) * s2[0:1, :]
           + jnp.dot(g.astype(jnp.bfloat16), w2p_ref[...].astype(jnp.bfloat16),
                     preferred_element_type=jnp.float32) * s2[1:2, :]
           + b2_ref[...])
    out_ref[...] = out.astype(out_ref.dtype)


# ----------------------------------------------------------------------------
# One-time parameter preparation (transpose / fold / cast / quantize).
# ----------------------------------------------------------------------------
def _quantize_per_channel(w_t):
    """Symmetric per-output-channel int8 for a pre-transposed (K, N) weight."""
    amax = jnp.max(jnp.abs(w_t), axis=0, keepdims=True)            # (1, N)
    scale = jnp.where(amax > 0, amax / 127.0, 1.0).astype(jnp.float32)
    q = jnp.clip(jnp.round(w_t / scale), -127, 127).astype(jnp.int8)
    return q, scale


def prepare_params(raw, *, weight_dtype=jnp.bfloat16, quantize_int8=False):
    """raw: torch nn.Linear layout ([out, in] weights, [out] biases), f32.

    quantize_int8=True stores w1p / w2t / w2p as weight-only int8 with
    per-output-channel scales (dequant after the dot, f32 accumulation).
    The (256, E) timestep weight is kept in `weight_dtype` (tiny stream).
    """
    E = raw["w2t"].shape[0]
    w1t_T = jnp.asarray(raw["w1t"], jnp.float32).T                 # (256, E)
    w1p_T = jnp.asarray(raw["w1p"], jnp.float32).T                 # (P, E)
    w2t_T = jnp.asarray(raw["w2t"], jnp.float32).T                 # (E, E)
    w2p_T = jnp.asarray(raw["w2p"], jnp.float32).T                 # (E, E)

    if quantize_int8:
        w1p_q, s1p = _quantize_per_channel(w1p_T)
        w2t_q, s2t = _quantize_per_channel(w2t_T)
        w2p_q, s2p = _quantize_per_channel(w2p_T)
    else:
        w1p_q, s1p = w1p_T.astype(weight_dtype), jnp.ones((1, E), jnp.float32)
        w2t_q, s2t = w2t_T.astype(weight_dtype), jnp.ones((1, E), jnp.float32)
        w2p_q, s2p = w2p_T.astype(weight_dtype), jnp.ones((1, E), jnp.float32)

    prep = {
        "w1t": w1t_T.astype(weight_dtype),                         # (256, E)
        "w1p": w1p_q,                                              # (P, E)
        "s1p": s1p,                                                # (1, E)
        "b1": jnp.stack([jnp.asarray(raw["b1t"], jnp.float32),
                         jnp.asarray(raw["b1p"], jnp.float32)]),   # (2, E)
        "w2t": w2t_q,                                              # (E, E)
        "w2p": w2p_q,                                              # (E, E)
        "s2": jnp.concatenate([s2t, s2p], axis=0),                 # (2, E)
        "b2": (jnp.asarray(raw["b2t"], jnp.float32)
               + jnp.asarray(raw["b2p"], jnp.float32)).reshape(1, E),  # (1, E)
    }
    return {k: jax.block_until_ready(v) for k, v in prep.items()}


# ----------------------------------------------------------------------------
# Tiling / spec helpers
# ----------------------------------------------------------------------------
def _pick_tile_n(E, *, num_cores=1):
    """Default: grid=1 (single TC chips, v5e/v6e).  For v7x pass num_cores=2:
    pick a tile count that is a multiple of the core count so the dominant w2
    stream splits evenly under ("parallel",) megacore sharding."""
    if num_cores <= 1 or E % 128 != 0:
        return E
    for n_tiles in (num_cores, 2 * num_cores, 4 * num_cores):
        if E % n_tiles == 0 and (E // n_tiles) % 128 == 0:
            return E // n_tiles
    return E


def _single_buffer_mode():
    if not hasattr(pl, "Buffered"):
        return None
    try:
        return pl.Buffered(1)
    except TypeError:
        try:
            return pl.Buffered(buffer_count=1)
        except TypeError:
            return None


def _build_specs(Bp, P, E, TN, single_buffer):
    inv = lambda j: (0, 0)    # grid-invariant resident blocks
    col = lambda j: (0, j)    # column-tiled blocks
    mode = _single_buffer_mode() if single_buffer else None

    def inv_spec(shape):
        if mode is not None:
            return pl.BlockSpec(shape, inv, pipeline_mode=mode)
        return pl.BlockSpec(shape, inv)

    in_specs = [
        inv_spec((Bp, 1)),               # ts
        inv_spec((Bp, P)),               # pooled
        inv_spec((NUM_CHANNELS, E)),     # w1t
        inv_spec((P, E)),                # w1p
        inv_spec((1, E)),                # s1p
        inv_spec((2, E)),                # packed layer-1 biases
        pl.BlockSpec((E, TN), col),      # w2t tile
        pl.BlockSpec((E, TN), col),      # w2p tile
        pl.BlockSpec((2, TN), col),      # layer-2 scales tile
        pl.BlockSpec((1, TN), col),      # folded layer-2 bias tile
    ]
    out_specs = pl.BlockSpec((Bp, TN), col)
    return in_specs, out_specs


# ----------------------------------------------------------------------------
# Forward wrapper
# ----------------------------------------------------------------------------
def combined_timestep_text_proj_embeddings(timestep, pooled_projection, prep, *,
                                            tile_n=None, num_cores=1,
                                            out_dtype=jnp.float32):
    """timestep: (B,), pooled_projection: (B, P).  Returns (B, E)."""
    B = timestep.shape[0]
    P = pooled_projection.shape[-1]
    E = prep["w1t"].shape[1]
    assert prep["w1p"].shape == (P, E), "pooled dim mismatch with prepared params"

    # Pad batch to 16 (bf16 sublane tile) -> no sub-tile masking on the bf16
    # pooled load or the output store.
    Bp = ((B + 15) // 16) * 16
    ts = timestep.astype(jnp.float32).reshape(B, 1)
    pooled = pooled_projection.astype(jnp.bfloat16)
    if Bp != B:
        ts = jnp.pad(ts, ((0, Bp - B), (0, 0)))
        pooled = jnp.pad(pooled, ((0, Bp - B), (0, 0)))

    TN = tile_n if tile_n is not None else _pick_tile_n(E, num_cores=num_cores)
    assert E % TN == 0 and (TN == E or TN % 128 == 0), "bad column tile"
    grid = (E // TN,)

    wd1 = jnp.dtype(prep["w1t"].dtype).itemsize
    wdp = jnp.dtype(prep["w1p"].dtype).itemsize
    wd2 = jnp.dtype(prep["w2t"].dtype).itemsize
    od = jnp.dtype(out_dtype).itemsize

    # VMEM budget: single-buffered invariant blocks counted once, column-tiled
    # blocks twice (double-buffered), + slack.  Cap below v7x physical (64 MiB).
    invariant_bytes = (Bp * 4 + Bp * P * 2 + NUM_CHANNELS * E * wd1
                       + P * E * wdp + 3 * E * 4)
    tiled_bytes = 2 * E * TN * wd2 + 3 * TN * 4 + Bp * TN * od
    vmem_need = invariant_bytes + 2 * tiled_bytes + (2 << 20)
    vmem_limit = int(min(max(vmem_need, 32 << 20), 56 << 20))

    cost = pl.CostEstimate(
        flops=2 * Bp * E * (NUM_CHANNELS + P + 2 * E) + 8 * Bp * E,
        transcendentals=Bp * (NUM_CHANNELS + 2 * E) + HALF_DIM,
        bytes_accessed=(NUM_CHANNELS * E * wd1 + P * E * wdp + 2 * E * E * wd2
                        + 6 * E * 4 + Bp * 4 + Bp * P * 2 + Bp * E * od),
    )
    compiler_params = pltpu.CompilerParams(
        dimension_semantics=("arbitrary",) if grid[0] == 1 else ("parallel",),
        vmem_limit_bytes=vmem_limit,
    )
    args = (ts, pooled, prep["w1t"], prep["w1p"], prep["s1p"], prep["b1"],
            prep["w2t"], prep["w2p"], prep["s2"], prep["b2"])

    def run(single_buffer):
        in_specs, out_specs = _build_specs(Bp, P, E, TN, single_buffer)
        out = pl.pallas_call(
            _combined_kernel,
            out_shape=jax.ShapeDtypeStruct((Bp, E), out_dtype),
            grid=grid,
            in_specs=in_specs,
            out_specs=out_specs,
            compiler_params=compiler_params,
            cost_estimate=cost,
        )(*args)
        return jax.block_until_ready(out)

    try:
        out = run(single_buffer=True)
    except Exception:
        # pl.Buffered(1) single-buffering not supported by this JAX / Mosaic
        # version; identical numerics with default double-buffering (costs
        # ~7-8 MiB extra VMEM at production sizes).
        out = run(single_buffer=False)

    return out[:B] if Bp != B else out


# ----------------------------- pure-JAX reference ---------------------------
def _reference(timestep, pooled, raw):
    half = HALF_DIM
    expo = jnp.exp(-math.log(MAX_PERIOD) * jnp.arange(half, dtype=jnp.float32) / half)
    emb = timestep.astype(jnp.float32)[:, None] * expo[None, :]
    tproj = jnp.concatenate([jnp.cos(emb), jnp.sin(emb)], axis=-1)

    def silu(x):
        return x * jax.nn.sigmoid(x)

    t_emb = silu(tproj @ raw["w1t"].T + raw["b1t"]) @ raw["w2t"].T + raw["b2t"]
    p_emb = silu(pooled @ raw["w1p"].T + raw["b1p"]) @ raw["w2p"].T + raw["b2p"]
    return t_emb + p_emb


if __name__ == "__main__":
    B = 2                     # batch
    E = 256                   # embedding_dim (1536 in real SD3.5)
    P = 128                   # pooled_projection_dim (2048 in real SD3.5)

    key = jax.random.PRNGKey(0)
    keys = jax.random.split(key, 10)

    # Deterministic synthetic parameters (torch Linear layout: [out, in]).
    raw = {
        "w1t": jax.random.normal(keys[0], (E, NUM_CHANNELS), jnp.float32) * 0.02,
        "b1t": jax.random.normal(keys[1], (E,), jnp.float32) * 0.02,
        "w2t": jax.random.normal(keys[2], (E, E), jnp.float32) * 0.02,
        "b2t": jax.random.normal(keys[3], (E,), jnp.float32) * 0.02,
        "w1p": jax.random.normal(keys[4], (E, P), jnp.float32) * 0.02,
        "b1p": jax.random.normal(keys[5], (E,), jnp.float32) * 0.02,
        "w2p": jax.random.normal(keys[6], (E, E), jnp.float32) * 0.02,
        "b2p": jax.random.normal(keys[7], (E,), jnp.float32) * 0.02,
    }
    timestep = jax.random.uniform(keys[8], (B,), jnp.float32, 0.0, 1000.0)
    pooled_projection = jax.random.normal(keys[9], (B, P), jnp.float32)
    ref = _reference(timestep, pooled_projection, raw)

    # 1) bf16 weights, default single-TC config: grid=(1,), "arbitrary".
    prep = prepare_params(raw)
    out = combined_timestep_text_proj_embeddings(timestep, pooled_projection, prep)
    out = jax.block_until_ready(out)
    assert out.shape == (B, E)
    err = float(jnp.max(jnp.abs(out - ref)))
    assert jnp.allclose(out, ref, atol=2e-2, rtol=2e-2), \
        f"bf16 path mismatch vs reference (max abs err {err})"

    # 2) v7x-style balanced column tiling ("parallel" grid, tiled w2 stream,
    #    single-buffered invariant weights).
    out2 = combined_timestep_text_proj_embeddings(timestep, pooled_projection,
                                                  prep, tile_n=128)
    out2 = jax.block_until_ready(out2)
    err2 = float(jnp.max(jnp.abs(out2 - ref)))
    assert jnp.allclose(out2, ref, atol=2e-2, rtol=2e-2), \
        f"tiled path mismatch vs reference (max abs err {err2})"

    # 3) Weight-only int8 path (halves the dominant weight DMA stream).
    prep_q = prepare_params(raw, quantize_int8=True)
    out3 = combined_timestep_text_proj_embeddings(timestep, pooled_projection, prep_q)
    out3 = jax.block_until_ready(out3)
    err3 = float(jnp.max(jnp.abs(out3 - ref)))
    assert jnp.allclose(out3, ref, atol=5e-2, rtol=5e-2), \
        f"int8 path mismatch vs reference (max abs err {err3})"

    print("KERNEL_OK")
</pallas_src>

<mosaic_0001>
module attributes {stable_mosaic.version = 11 : i64} {
  func.func @_combined_kernel(%arg0: i32, %arg1: memref<16x1xf32, #tpu.memory_space<vmem>>, %arg2: memref<16x128xbf16, #tpu.memory_space<vmem>>, %arg3: memref<256x256xbf16, #tpu.memory_space<vmem>>, %arg4: memref<128x256xbf16, #tpu.memory_space<vmem>>, %arg5: memref<1x256xf32, #tpu.memory_space<vmem>>, %arg6: memref<2x256xf32, #tpu.memory_space<vmem>>, %arg7: memref<256x256xbf16, #tpu.memory_space<vmem>>, %arg8: memref<256x256xbf16, #tpu.memory_space<vmem>>, %arg9: memref<2x256xf32, #tpu.memory_space<vmem>>, %arg10: memref<1x256xf32, #tpu.memory_space<vmem>>, %arg11: memref<16x256xf32, #tpu.memory_space<vmem>>) attributes {dimension_semantics = [#tpu.dimension_semantics<arbitrary>], iteration_bounds = array<i64: 1>, scalar_prefetch = 0 : i64, scratch_operands = 0 : i64, tpu.core_type = #tpu.core_type<tc>, window_params = [{pipeline_mode = #tpu.pipeline_mode<synchronous>, transform_indices = @transform_0, window_bounds = array<i64: 16, 1>}, {pipeline_mode = #tpu.pipeline_mode<synchronous>, transform_indices = @transform_1, window_bounds = array<i64: 16, 128>}, {pipeline_mode = #tpu.pipeline_mode<synchronous>, transform_indices = @transform_2, window_bounds = array<i64: 256, 256>}, {pipeline_mode = #tpu.pipeline_mode<synchronous>, transform_indices = @transform_3, window_bounds = array<i64: 128, 256>}, {pipeline_mode = #tpu.pipeline_mode<synchronous>, transform_indices = @transform_4, window_bounds = array<i64: 1, 256>}, {pipeline_mode = #tpu.pipeline_mode<synchronous>, transform_indices = @transform_5, window_bounds = array<i64: 2, 256>}, {transform_indices = @transform_6, window_bounds = array<i64: 256, 256>}, {transform_indices = @transform_7, window_bounds = array<i64: 256, 256>}, {transform_indices = @transform_8, window_bounds = array<i64: 2, 256>}, {transform_indices = @transform_9, window_bounds = array<i64: 1, 256>}, {transform_indices = @transform_10, window_bounds = array<i64: 16, 256>}]} {
    %0 = tpu.iota {dimensions = array<i32: 1>} : vector<1x128xi32>
    %1 = arith.sitofp %0 : vector<1x128xi32> to vector<1x128xf32>
    %cst = arith.constant -0.0719557852 : f32
    %2 = vector.broadcast %cst : f32 to vector<1x128xf32>
    %3 = arith.mulf %1, %2 : vector<1x128xf32>
    %4 = math.exp %3 : vector<1x128xf32>
    %c0 = arith.constant 0 : index
    %c0_0 = arith.constant 0 : index
    %5 = vector.load %arg1[%c0, %c0_0] : memref<16x1xf32, #tpu.memory_space<vmem>>, vector<16x1xf32>
    %6 = vector.broadcast %5 : vector<16x1xf32> to vector<16x128xf32>
    %7 = vector.broadcast %4 : vector<1x128xf32> to vector<16x128xf32>
    %8 = arith.mulf %6, %7 : vector<16x128xf32>
    %9 = math.cos %8 : vector<16x128xf32>
    %10 = math.sin %8 : vector<16x128xf32>
    %11 = tpu.concatenate %9, %10 in 1 : vector<16x128xf32>, vector<16x128xf32> -> vector<16x256xf32>
    %12 = arith.truncf %11 : vector<16x256xf32> to vector<16x256xbf16>
    %c0_1 = arith.constant 0 : index
    %c0_2 = arith.constant 0 : index
    %13 = vector.load %arg6[%c0_1, %c0_2] : memref<2x256xf32, #tpu.memory_space<vmem>>, vector<2x256xf32>
    %c0_3 = arith.constant 0 : index
    %c0_4 = arith.constant 0 : index
    %14 = vector.load %arg3[%c0_3, %c0_4] : memref<256x256xbf16, #tpu.memory_space<vmem>>, vector<256x256xbf16>
    %cst_5 = arith.constant dense<0.000000e+00> : vector<16x256xf32>
    %15 = tpu.matmul %12, %14, %cst_5 {dimension_numbers = #tpu.dot_dimension_numbers<[1], [0], [0], [1], [0, 0, 1, 1], [], []>} : vector<16x256xbf16>, vector<256x256xbf16>, vector<16x256xf32> -> vector<16x256xf32>
    %16 = vector.extract_strided_slice %13 {offsets = [0, 0], sizes = [1, 256], strides = [1, 1]} : vector<2x256xf32> to vector<1x256xf32>
    %17 = vector.broadcast %16 : vector<1x256xf32> to vector<16x256xf32>
    %18 = arith.addf %15, %17 : vector<16x256xf32>
    %19 = arith.negf %18 : vector<16x256xf32>
    %20 = math.exp %19 : vector<16x256xf32>
    %cst_6 = arith.constant 1.000000e+00 : f32
    %21 = vector.broadcast %cst_6 : f32 to vector<16x256xf32>
    %22 = arith.addf %21, %20 : vector<16x256xf32>
    %23 = arith.divf %21, %22 : vector<16x256xf32>
    %24 = arith.mulf %18, %23 : vector<16x256xf32>
    %c0_7 = arith.constant 0 : index
    %c0_8 = arith.constant 0 : index
    %25 = vector.load %arg2[%c0_7, %c0_8] : memref<16x128xbf16, #tpu.memory_space<vmem>>, vector<16x128xbf16>
    %c0_9 = arith.constant 0 : index
    %c0_10 = arith.constant 0 : index
    %26 = vector.load %arg4[%c0_9, %c0_10] : memref<128x256xbf16, #tpu.memory_space<vmem>>, vector<128x256xbf16>
    %cst_11 = arith.constant dense<0.000000e+00> : vector<16x256xf32>
    %27 = tpu.matmul %25, %26, %cst_11 {dimension_numbers = #tpu.dot_dimension_numbers<[1], [0], [0], [1], [0, 0, 1, 1], [], []>} : vector<16x128xbf16>, vector<128x256xbf16>, vector<16x256xf32> -> vector<16x256xf32>
    %c0_12 = arith.constant 0 : index
    %c0_13 = arith.constant 0 : index
    %28 = vector.load %arg5[%c0_12, %c0_13] : memref<1x256xf32, #tpu.memory_space<vmem>>, vector<1x256xf32>
    %29 = vector.broadcast %28 : vector<1x256xf32> to vector<16x256xf32>
    %30 = arith.mulf %27, %29 : vector<16x256xf32>
    %31 = vector.extract_strided_slice %13 {offsets = [1, 0], sizes = [1, 256], strides = [1, 1]} : vector<2x256xf32> to vector<1x256xf32>
    %32 = vector.broadcast %31 : vector<1x256xf32> to vector<16x256xf32>
    %33 = arith.addf %30, %32 : vector<16x256xf32>
    %34 = arith.negf %33 : vector<16x256xf32>
    %35 = math.exp %34 : vector<16x256xf32>
    %cst_14 = arith.constant 1.000000e+00 : f32
    %36 = vector.broadcast %cst_14 : f32 to vector<16x256xf32>
    %37 = arith.addf %36, %35 : vector<16x256xf32>
    %38 = arith.divf %36, %37 : vector<16x256xf32>
    %39 = arith.mulf %33, %38 : vector<16x256xf32>
    %c0_15 = arith.constant 0 : index
    %c0_16 = arith.constant 0 : index
    %40 = vector.load %arg9[%c0_15, %c0_16] : memref<2x256xf32, #tpu.memory_space<vmem>>, vector<2x256xf32>
    %41 = arith.truncf %24 : vector<16x256xf32> to vector<16x256xbf16>
    %c0_17 = arith.constant 0 : index
    %c0_18 = arith.constant 0 : index
    %42 = vector.load %arg7[%c0_17, %c0_18] : memref<256x256xbf16, #tpu.memory_space<vmem>>, vector<256x256xbf16>
    %cst_19 = arith.constant dense<0.000000e+00> : vector<16x256xf32>
    %43 = tpu.matmul %41, %42, %cst_19 {dimension_numbers = #tpu.dot_dimension_numbers<[1], [0], [0], [1], [0, 0, 1, 1], [], []>} : vector<16x256xbf16>, vector<256x256xbf16>, vector<16x256xf32> -> vector<16x256xf32>
    %44 = vector.extract_strided_slice %40 {offsets = [0, 0], sizes = [1, 256], strides = [1, 1]} : vector<2x256xf32> to vector<1x256xf32>
    %45 = vector.broadcast %44 : vector<1x256xf32> to vector<16x256xf32>
    %46 = arith.mulf %43, %45 : vector<16x256xf32>
    %47 = arith.truncf %39 : vector<16x256xf32> to vector<16x256xbf16>
    %c0_20 = arith.constant 0 : index
    %c0_21 = arith.constant 0 : index
    %48 = vector.load %arg8[%c0_20, %c0_21] : memref<256x256xbf16, #tpu.memory_space<vmem>>, vector<256x256xbf16>
    %cst_22 = arith.constant dense<0.000000e+00> : vector<16x256xf32>
    %49 = tpu.matmul %47, %48, %cst_22 {dimension_numbers = #tpu.dot_dimension_numbers<[1], [0], [0], [1], [0, 0, 1, 1], [], []>} : vector<16x256xbf16>, vector<256x256xbf16>, vector<16x256xf32> -> vector<16x256xf32>
    %50 = vector.extract_strided_slice %40 {offsets = [1, 0], sizes = [1, 256], strides = [1, 1]} : vector<2x256xf32> to vector<1x256xf32>
    %51 = vector.broadcast %50 : vector<1x256xf32> to vector<16x256xf32>
    %52 = arith.mulf %49, %51 : vector<16x256xf32>
    %53 = arith.addf %46, %52 : vector<16x256xf32>
    %c0_23 = arith.constant 0 : index
    %c0_24 = arith.constant 0 : index
    %54 = vector.load %arg10[%c0_23, %c0_24] : memref<1x256xf32, #tpu.memory_space<vmem>>, vector<1x256xf32>
    %55 = vector.broadcast %54 : vector<1x256xf32> to vector<16x256xf32>
    %56 = arith.addf %53, %55 : vector<16x256xf32>
    %c0_25 = arith.constant 0 : index
    %c0_26 = arith.constant 0 : index
    %57 = vector.load %arg11[%c0_25, %c0_26] : memref<16x256xf32, #tpu.memory_space<vmem>>, vector<16x256xf32>
    tpu.vector_store %arg11[%c0_25, %c0_26], %56 {strides = array<i32>} : memref<16x256xf32, #tpu.memory_space<vmem>>, vector<16x256xf32>,
    return
  }
  func.func @transform_0(%arg0: i32) -> (i32, i32) {
    %c0_i32 = arith.constant 0 : i32
    %c0_i32_0 = arith.constant 0 : i32
    %c0_i32_1 = arith.constant 0 : i32
    return %c0_i32, %c0_i32_0 : i32, i32
  }
  func.func @transform_1(%arg0: i32) -> (i32, i32) {
    %c0_i32 = arith.constant 0 : i32
    %c0_i32_0 = arith.constant 0 : i32
    %c0_i32_1 = arith.constant 0 : i32
    return %c0_i32, %c0_i32_0 : i32, i32
  }
  func.func @transform_2(%arg0: i32) -> (i32, i32) {
    %c0_i32 = arith.constant 0 : i32
    %c0_i32_0 = arith.constant 0 : i32
    %c0_i32_1 = arith.constant 0 : i32
    return %c0_i32, %c0_i32_0 : i32, i32
  }
  func.func @transform_3(%arg0: i32) -> (i32, i32) {
    %c0_i32 = arith.constant 0 : i32
    %c0_i32_0 = arith.constant 0 : i32
    %c0_i32_1 = arith.constant 0 : i32
    return %c0_i32, %c0_i32_0 : i32, i32
  }
  func.func @transform_4(%arg0: i32) -> (i32, i32) {
    %c0_i32 = arith.constant 0 : i32
    %c0_i32_0 = arith.constant 0 : i32
    %c0_i32_1 = arith.constant 0 : i32
    return %c0_i32, %c0_i32_0 : i32, i32
  }
  func.func @transform_5(%arg0: i32) -> (i32, i32) {
    %c0_i32 = arith.constant 0 : i32
    %c0_i32_0 = arith.constant 0 : i32
    %c0_i32_1 = arith.constant 0 : i32
    return %c0_i32, %c0_i32_0 : i32, i32
  }
  func.func @transform_6(%arg0: i32) -> (i32, i32) {
    %c0_i32 = arith.constant 0 : i32
    %c0_i32_0 = arith.constant 0 : i32
    return %c0_i32, %arg0 : i32, i32
  }
  func.func @transform_7(%arg0: i32) -> (i32, i32) {
    %c0_i32 = arith.constant 0 : i32
    %c0_i32_0 = arith.constant 0 : i32
    return %c0_i32, %arg0 : i32, i32
  }
  func.func @transform_8(%arg0: i32) -> (i32, i32) {
    %c0_i32 = arith.constant 0 : i32
    %c0_i32_0 = arith.constant 0 : i32
    return %c0_i32, %arg0 : i32, i32
  }
  func.func @transform_9(%arg0: i32) -> (i32, i32) {
    %c0_i32 = arith.constant 0 : i32
    %c0_i32_0 = arith.constant 0 : i32
    return %c0_i32, %arg0 : i32, i32
  }
  func.func @transform_10(%arg0: i32) -> (i32, i32) {
    %c0_i32 = arith.constant 0 : i32
    %c0_i32_0 = arith.constant 0 : i32
    return %c0_i32, %arg0 : i32, i32
  }
}

module attributes {stable_mosaic.version = 11 : i64} {
  func.func @_combined_kernel(%arg0: i32, %arg1: memref<16x1xf32, #tpu.memory_space<vmem>>, %arg2: memref<16x128xbf16, #tpu.memory_space<vmem>>, %arg3: memref<256x256xbf16, #tpu.memory_space<vmem>>, %arg4: memref<128x256xbf16, #tpu.memory_space<vmem>>, %arg5: memref<1x256xf32, #tpu.memory_space<vmem>>, %arg6: memref<2x256xf32, #tpu.memory_space<vmem>>, %arg7: memref<256x256xbf16, #tpu.memory_space<vmem>>, %arg8: memref<256x256xbf16, #tpu.memory_space<vmem>>, %arg9: memref<2x256xf32, #tpu.memory_space<vmem>>, %arg10: memref<1x256xf32, #tpu.memory_space<vmem>>, %arg11: memref<16x256xf32, #tpu.memory_space<vmem>>) attributes {dimension_semantics = [#tpu.dimension_semantics<arbitrary>], iteration_bounds = array<i64: 1>, scalar_prefetch = 0 : i64, scratch_operands = 0 : i64, tpu.core_type = #tpu.core_type<tc>, window_params = [{pipeline_mode = #tpu.pipeline_mode<synchronous>, transform_indices = @transform_0, window_bounds = array<i64: 16, 1>}, {pipeline_mode = #tpu.pipeline_mode<synchronous>, transform_indices = @transform_1, window_bounds = array<i64: 16, 128>}, {pipeline_mode = #tpu.pipeline_mode<synchronous>, transform_indices = @transform_2, window_bounds = array<i64: 256, 256>}, {pipeline_mode = #tpu.pipeline_mode<synchronous>, transform_indices = @transform_3, window_bounds = array<i64: 128, 256>}, {pipeline_mode = #tpu.pipeline_mode<synchronous>, transform_indices = @transform_4, window_bounds = array<i64: 1, 256>}, {pipeline_mode = #tpu.pipeline_mode<synchronous>, transform_indices = @transform_5, window_bounds = array<i64: 2, 256>}, {transform_indices = @transform_6, window_bounds = array<i64: 256, 256>}, {transform_indices = @transform_7, window_bounds = array<i64: 256, 256>}, {transform_indices = @transform_8, window_bounds = array<i64: 2, 256>}, {transform_indices = @transform_9, window_bounds = array<i64: 1, 256>}, {transform_indices = @transform_10, window_bounds = array<i64: 16, 256>}]} {
    %0 = tpu.iota {dimensions = array<i32: 1>} : vector<1x128xi32>
    %1 = arith.sitofp %0 : vector<1x128xi32> to vector<1x128xf32>
    %cst = arith.constant -0.0719557852 : f32
    %2 = vector.broadcast %cst : f32 to vector<1x128xf32>
    %3 = arith.mulf %1, %2 : vector<1x128xf32>
    %4 = math.exp %3 : vector<1x128xf32>
    %c0 = arith.constant 0 : index
    %c0_0 = arith.constant 0 : index
    %5 = vector.load %arg1[%c0, %c0_0] : memref<16x1xf32, #tpu.memory_space<vmem>>, vector<16x1xf32>
    %6 = vector.broadcast %5 : vector<16x1xf32> to vector<16x128xf32>
    %7 = vector.broadcast %4 : vector<1x128xf32> to vector<16x128xf32>
    %8 = arith.mulf %6, %7 : vector<16x128xf32>
    %9 = math.cos %8 : vector<16x128xf32>
    %10 = math.sin %8 : vector<16x128xf32>
    %11 = tpu.concatenate %9, %10 in 1 : vector<16x128xf32>, vector<16x128xf32> -> vector<16x256xf32>
    %12 = arith.truncf %11 : vector<16x256xf32> to vector<16x256xbf16>
    %c0_1 = arith.constant 0 : index
    %c0_2 = arith.constant 0 : index
    %13 = vector.load %arg6[%c0_1, %c0_2] : memref<2x256xf32, #tpu.memory_space<vmem>>, vector<2x256xf32>
    %c0_3 = arith.constant 0 : index
    %c0_4 = arith.constant 0 : index
    %14 = vector.load %arg3[%c0_3, %c0_4] : memref<256x256xbf16, #tpu.memory_space<vmem>>, vector<256x256xbf16>
    %cst_5 = arith.constant dense<0.000000e+00> : vector<16x256xf32>
    %15 = tpu.matmul %12, %14, %cst_5 {dimension_numbers = #tpu.dot_dimension_numbers<[1], [0], [0], [1], [0, 0, 1, 1], [], []>} : vector<16x256xbf16>, vector<256x256xbf16>, vector<16x256xf32> -> vector<16x256xf32>
    %16 = vector.extract_strided_slice %13 {offsets = [0, 0], sizes = [1, 256], strides = [1, 1]} : vector<2x256xf32> to vector<1x256xf32>
    %17 = vector.broadcast %16 : vector<1x256xf32> to vector<16x256xf32>
    %18 = arith.addf %15, %17 : vector<16x256xf32>
    %19 = arith.negf %18 : vector<16x256xf32>
    %20 = math.exp %19 : vector<16x256xf32>
    %cst_6 = arith.constant 1.000000e+00 : f32
    %21 = vector.broadcast %cst_6 : f32 to vector<16x256xf32>
    %22 = arith.addf %21, %20 : vector<16x256xf32>
    %23 = arith.divf %21, %22 : vector<16x256xf32>
    %24 = arith.mulf %18, %23 : vector<16x256xf32>
    %c0_7 = arith.constant 0 : index
    %c0_8 = arith.constant 0 : index
    %25 = vector.load %arg2[%c0_7, %c0_8] : memref<16x128xbf16, #tpu.memory_space<vmem>>, vector<16x128xbf16>
    %c0_9 = arith.constant 0 : index
    %c0_10 = arith.constant 0 : index
    %26 = vector.load %arg4[%c0_9, %c0_10] : memref<128x256xbf16, #tpu.memory_space<vmem>>, vector<128x256xbf16>
    %cst_11 = arith.constant dense<0.000000e+00> : vector<16x256xf32>
    %27 = tpu.matmul %25, %26, %cst_11 {dimension_numbers = #tpu.dot_dimension_numbers<[1], [0], [0], [1], [0, 0, 1, 1], [], []>} : vector<16x128xbf16>, vector<128x256xbf16>, vector<16x256xf32> -> vector<16x256xf32>
    %c0_12 = arith.constant 0 : index
    %c0_13 = arith.constant 0 : index
    %28 = vector.load %arg5[%c0_12, %c0_13] : memref<1x256xf32, #tpu.memory_space<vmem>>, vector<1x256xf32>
    %29 = vector.broadcast %28 : vector<1x256xf32> to vector<16x256xf32>
    %30 = arith.mulf %27, %29 : vector<16x256xf32>
    %31 = vector.extract_strided_slice %13 {offsets = [1, 0], sizes = [1, 256], strides = [1, 1]} : vector<2x256xf32> to vector<1x256xf32>
    %32 = vector.broadcast %31 : vector<1x256xf32> to vector<16x256xf32>
    %33 = arith.addf %30, %32 : vector<16x256xf32>
    %34 = arith.negf %33 : vector<16x256xf32>
    %35 = math.exp %34 : vector<16x256xf32>
    %cst_14 = arith.constant 1.000000e+00 : f32
    %36 = vector.broadcast %cst_14 : f32 to vector<16x256xf32>
    %37 = arith.addf %36, %35 : vector<16x256xf32>
    %38 = arith.divf %36, %37 : vector<16x256xf32>
    %39 = arith.mulf %33, %38 : vector<16x256xf32>
    %c0_15 = arith.constant 0 : index
    %c0_16 = arith.constant 0 : index
    %40 = vector.load %arg9[%c0_15, %c0_16] : memref<2x256xf32, #tpu.memory_space<vmem>>, vector<2x256xf32>
    %41 = arith.truncf %24 : vector<16x256xf32> to vector<16x256xbf16>
    %c0_17 = arith.constant 0 : index
    %c0_18 = arith.constant 0 : index
    %42 = vector.load %arg7[%c0_17, %c0_18] : memref<256x256xbf16, #tpu.memory_space<vmem>>, vector<256x256xbf16>
    %cst_19 = arith.constant dense<0.000000e+00> : vector<16x256xf32>
    %43 = tpu.matmul %41, %42, %cst_19 {dimension_numbers = #tpu.dot_dimension_numbers<[1], [0], [0], [1], [0, 0, 1, 1], [], []>} : vector<16x256xbf16>, vector<256x256xbf16>, vector<16x256xf32> -> vector<16x256xf32>
    %44 = vector.extract_strided_slice %40 {offsets = [0, 0], sizes = [1, 256], strides = [1, 1]} : vector<2x256xf32> to vector<1x256xf32>
    %45 = vector.broadcast %44 : vector<1x256xf32> to vector<16x256xf32>
    %46 = arith.mulf %43, %45 : vector<16x256xf32>
    %47 = arith.truncf %39 : vector<16x256xf32> to vector<16x256xbf16>
    %c0_20 = arith.constant 0 : index
    %c0_21 = arith.constant 0 : index
    %48 = vector.load %arg8[%c0_20, %c0_21] : memref<256x256xbf16, #tpu.memory_space<vmem>>, vector<256x256xbf16>
    %cst_22 = arith.constant dense<0.000000e+00> : vector<16x256xf32>
    %49 = tpu.matmul %47, %48, %cst_22 {dimension_numbers = #tpu.dot_dimension_numbers<[1], [0], [0], [1], [0, 0, 1, 1], [], []>} : vector<16x256xbf16>, vector<256x256xbf16>, vector<16x256xf32> -> vector<16x256xf32>
    %50 = vector.extract_strided_slice %40 {offsets = [1, 0], sizes = [1, 256], strides = [1, 1]} : vector<2x256xf32> to vector<1x256xf32>
    %51 = vector.broadcast %50 : vector<1x256xf32> to vector<16x256xf32>
    %52 = arith.mulf %49, %51 : vector<16x256xf32>
    %53 = arith.addf %46, %52 : vector<16x256xf32>
    %c0_23 = arith.constant 0 : index
    %c0_24 = arith.constant 0 : index
    %54 = vector.load %arg10[%c0_23, %c0_24] : memref<1x256xf32, #tpu.memory_space<vmem>>, vector<1x256xf32>
    %55 = vector.broadcast %54 : vector<1x256xf32> to vector<16x256xf32>
    %56 = arith.addf %53, %55 : vector<16x256xf32>
    %c0_25 = arith.constant 0 : index
    %c0_26 = arith.constant 0 : index
    %57 = vector.load %arg11[%c0_25, %c0_26] : memref<16x256xf32, #tpu.memory_space<vmem>>, vector<16x256xf32>
    tpu.vector_store %arg11[%c0_25, %c0_26], %56 {strides = array<i32>} : memref<16x256xf32, #tpu.memory_space<vmem>>, vector<16x256xf32>,
    return
  }
  func.func @transform_0(%arg0: i32) -> (i32, i32) {
    %c0_i32 = arith.constant 0 : i32
    %c0_i32_0 = arith.constant 0 : i32
    %c0_i32_1 = arith.constant 0 : i32
    return %c0_i32, %c0_i32_0 : i32, i32
  }
  func.func @transform_1(%arg0: i32) -> (i32, i32) {
    %c0_i32 = arith.constant 0 : i32
    %c0_i32_0 = arith.constant 0 : i32
    %c0_i32_1 = arith.constant 0 : i32
    return %c0_i32, %c0_i32_0 : i32, i32
  }
  func.func @transform_2(%arg0: i32) -> (i32, i32) {
    %c0_i32 = arith.constant 0 : i32
    %c0_i32_0 = arith.constant 0 : i32
    %c0_i32_1 = arith.constant 0 : i32
    return %c0_i32, %c0_i32_0 : i32, i32
  }
  func.func @transform_3(%arg0: i32) -> (i32, i32) {
    %c0_i32 = arith.constant 0 : i32
    %c0_i32_0 = arith.constant 0 : i32
    %c0_i32_1 = arith.constant 0 : i32
    return %c0_i32, %c0_i32_0 : i32, i32
  }
  func.func @transform_4(%arg0: i32) -> (i32, i32) {
    %c0_i32 = arith.constant 0 : i32
    %c0_i32_0 = arith.constant 0 : i32
    %c0_i32_1 = arith.constant 0 : i32
    return %c0_i32, %c0_i32_0 : i32, i32
  }
  func.func @transform_5(%arg0: i32) -> (i32, i32) {
    %c0_i32 = arith.constant 0 : i32
    %c0_i32_0 = arith.constant 0 : i32
    %c0_i32_1 = arith.constant 0 : i32
    return %c0_i32, %c0_i32_0 : i32, i32
  }
  func.func @transform_6(%arg0: i32) -> (i32, i32) {
    %c0_i32 = arith.constant 0 : i32
    %c0_i32_0 = arith.constant 0 : i32
    return %c0_i32, %arg0 : i32, i32
  }
  func.func @transform_7(%arg0: i32) -> (i32, i32) {
    %c0_i32 = arith.constant 0 : i32
    %c0_i32_0 = arith.constant 0 : i32
    return %c0_i32, %arg0 : i32, i32
  }
  func.func @transform_8(%arg0: i32) -> (i32, i32) {
    %c0_i32 = arith.constant 0 : i32
    %c0_i32_0 = arith.constant 0 : i32
    return %c0_i32, %arg0 : i32, i32
  }
  func.func @transform_9(%arg0: i32) -> (i32, i32) {
    %c0_i32 = arith.constant 0 : i32
    %c0_i32_0 = arith.constant 0 : i32
    return %c0_i32, %arg0 : i32, i32
  }
  func.func @transform_10(%arg0: i32) -> (i32, i32) {
    %c0_i32 = arith.constant 0 : i32
    %c0_i32_0 = arith.constant 0 : i32
    return %c0_i32, %arg0 : i32, i32
  }
}

</mosaic_0001>

<llo_original>
// kernel: tpu_custom_call.1
$region0: #{tpu_custom_call.1}
  #allocation0 [shape = 'u32[]', space=smem, size = 0x4, offset = 0x4, fixed_abs, tag = 'smem constant byte address 0x4 - core index']
  #allocation1 [shape = 'u32[144,128]{1,0:T(1,128)}', space=vmem, size = 0x12000, scoped, tag = 'internal scratch']
  %s0 = inlined_call_operand.vmem [shape: f32[16,1], index: 0, kind: input, shape index: {}]
  %s1 = inlined_call_operand.vmem [shape: bf16[16,128], index: 1, kind: input, shape index: {}]
  %s2 = inlined_call_operand.hbm [shape: bf16[256,256], index: 2, kind: input, shape index: {}]
  %s3 = inlined_call_operand.hbm [shape: bf16[128,256], index: 3, kind: input, shape index: {}]
  %s4 = inlined_call_operand.vmem [shape: f32[1,256], index: 4, kind: input, shape index: {}]
  %s5 = inlined_call_operand.vmem [shape: f32[2,256], index: 5, kind: input, shape index: {}]
  %s6 = inlined_call_operand.hbm [shape: bf16[256,256], index: 6, kind: input, shape index: {}]
  %s7 = inlined_call_operand.hbm [shape: bf16[256,256], index: 7, kind: input, shape index: {}]
  %s8 = inlined_call_operand.vmem [shape: f32[2,256], index: 8, kind: input, shape index: {}]
  %s9 = inlined_call_operand.vmem [shape: f32[1,256], index: 9, kind: input, shape index: {}]
  %s10 = inlined_call_operand.hbm [shape: f32[16,256], index: 10, kind: output, shape index: {}]
  %s11 = sld [smem:[#allocation0]]
  $region66: #{tpu_custom_call.1} parent=0
    _
  %s13 = ssub.s32 1, %s11
  %s14 = scalar_select 0, %s13, %s11
  $region1: #{tpu_custom_call.1} parent=0
    #allocation2 [shape = 'u8[131072]{0}', space=vmem, size = 0x20000, scoped, tag = 'input window, operand 2, single buffered']
    #allocation3 [shape = 's32[1]{0}', space=sflag, size = 0x4, scoped, tag = 'scoped memory for tpu_custom_call.1']
    #allocation4 [shape = 's32[1]{0}', space=sflag, size = 0x4, scoped, tag = 'scoped memory for tpu_custom_call.1']
    #allocation5 [shape = 'u8[65536]{0}', space=vmem, size = 0x10000, scoped, tag = 'input window, operand 3, single buffered']
    #allocation6 [shape = 's32[1]{0}', space=sflag, size = 0x4, scoped, tag = 'scoped memory for tpu_custom_call.1']
    #allocation7 [shape = 'u8[131072]{0}', space=vmem, size = 0x20000, scoped, tag = 'input window, operand 6, single buffered']
    #allocation8 [shape = 'u8[131072]{0}', space=vmem, size = 0x20000, scoped, tag = 'input window, operand 7, single buffered']
    #allocation9 [shape = 's32[1]{0}', space=sflag, size = 0x4, scoped, tag = 'scoped memory for tpu_custom_call.1']
    #allocation10 [shape = 'u8[16384]{0}', space=vmem, size = 0x4000, scoped, tag = 'output window, operand 0, single buffered']
    %15 = vsyncpa [#allocation3], 0
    %16 = vsyncpa [#allocation6], 0
    %17 = vsyncpa [#allocation9], 0
    %18 = vsyncpa [#allocation4], 0
    // Predicated region
    $region2: #{tpu_custom_call.1} parent=1 // pred_check
      _
    $region3: #{tpu_custom_call.1} parent=1 // pred_check_branch
      %20 = sbr.rel (0) target = $region5
    $region4: #{tpu_custom_call.1} parent=1 // pred_region
      _
    $region5: #{tpu_custom_call.1} parent=1 // pred_fallthru
      _
    // Predicated region
    $region6: #{tpu_custom_call.1} parent=1 // pred_check
      _
    $region7: #{tpu_custom_call.1} parent=1 // pred_check_branch
      %22 = sbr.rel (0) target = $region9
    $region8: #{tpu_custom_call.1} parent=1 // pred_region
      _
    $region9: #{tpu_custom_call.1} parent=1 // pred_fallthru
      _
    // Predicated region
    $region10: #{tpu_custom_call.1} parent=1 // pred_check
      _
    $region11: #{tpu_custom_call.1} parent=1 // pred_check_branch
      %24 = sbr.rel (0) target = $region13
    $region12: #{tpu_custom_call.1} parent=1 // pred_region
      %s26 = ssub.s32 4096, 4096
      %27 = vsyncadd [#allocation3], %s26
      %s28 = sshll.u32 [#allocation2], 4
      %s29 = int_to_ptr.vmem [resolvable:$true] %s28
      %34 = dma.hbm_to_vmem [thread:$0]  %s2, 4096, %s29, [#allocation3], 128, 128, 8
    $region13: #{tpu_custom_call.1} parent=1 // pred_fallthru
      _
    // Predicated region
    $region14: #{tpu_custom_call.1} parent=1 // pred_check
      _
    $region15: #{tpu_custom_call.1} parent=1 // pred_check_branch
      %36 = sbr.rel (0) target = $region17
    $region16: #{tpu_custom_call.1} parent=1 // pred_region
      %s38 = ssub.s32 2048, 2048
      %39 = vsyncadd [#allocation6], %s38
      %s40 = sshll.u32 [#allocation5], 4
      %s41 = int_to_ptr.vmem [resolvable:$true] %s40
      %46 = dma.hbm_to_vmem [thread:$0]  %s3, 2048, %s41, [#allocation6], 128, 128, 8
    $region17: #{tpu_custom_call.1} parent=1 // pred_fallthru
      _
    // Predicated region
    $region18: #{tpu_custom_call.1} parent=1 // pred_check
      _
    $region19: #{tpu_custom_call.1} parent=1 // pred_check_branch
      %48 = sbr.rel (0) target = $region21
    $region20: #{tpu_custom_call.1} parent=1 // pred_region
      _
    $region21: #{tpu_custom_call.1} parent=1 // pred_fallthru
      _
    // Predicated region
    $region22: #{tpu_custom_call.1} parent=1 // pred_check
      _
    $region23: #{tpu_custom_call.1} parent=1 // pred_check_branch
      %50 = sbr.rel (0) target = $region25
    $region24: #{tpu_custom_call.1} parent=1 // pred_region
      _
    $region25: #{tpu_custom_call.1} parent=1 // pred_fallthru
      _
    // Predicated region
    $region26: #{tpu_custom_call.1} parent=1 // pred_check
      _
    $region27: #{tpu_custom_call.1} parent=1 // pred_check_branch
      %52 = sbr.rel (0) target = $region29
    $region28: #{tpu_custom_call.1} parent=1 // pred_region
      %s54 = ssub.s32 4096, 4096
      %55 = vsyncadd [#allocation6], %s54
      %s56 = sshll.u32 [#allocation7], 4
      %s57 = int_to_ptr.vmem [resolvable:$true] %s56
      %62 = dma.hbm_to_vmem [thread:$0]  %s6, 4096, %s57, [#allocation6], 128, 128, 8
    $region29: #{tpu_custom_call.1} parent=1 // pred_fallthru
      _
    // Predicated region
    $region30: #{tpu_custom_call.1} parent=1 // pred_check
      _
    $region31: #{tpu_custom_call.1} parent=1 // pred_check_branch
      %64 = sbr.rel (0) target = $region33
    $region32: #{tpu_custom_call.1} parent=1 // pred_region
      %s66 = ssub.s32 4096, 4096
      %67 = vsyncadd [#allocation9], %s66
      %s68 = sshll.u32 [#allocation8], 4
      %s69 = int_to_ptr.vmem [resolvable:$true] %s68
      %74 = dma.hbm_to_vmem [thread:$0]  %s7, 4096, %s69, [#allocation9], 128, 128, 8
    $region33: #{tpu_custom_call.1} parent=1 // pred_fallthru
      _
    // Predicated region
    $region34: #{tpu_custom_call.1} parent=1 // pred_check
      _
    $region35: #{tpu_custom_call.1} parent=1 // pred_check_branch
      %76 = sbr.rel (0) target = $region37
    $region36: #{tpu_custom_call.1} parent=1 // pred_region
      _
    $region37: #{tpu_custom_call.1} parent=1 // pred_fallthru
      _
    // Predicated region
    $region38: #{tpu_custom_call.1} parent=1 // pred_check
      _
    $region39: #{tpu_custom_call.1} parent=1 // pred_check_branch
      %78 = sbr.rel (0) target = $region41
    $region40: #{tpu_custom_call.1} parent=1 // pred_region
      _
    $region41: #{tpu_custom_call.1} parent=1 // pred_fallthru
      _
    // Predicated region
    $region42: #{tpu_custom_call.1} parent=1 // pred_check
      _
    $region43: #{tpu_custom_call.1} parent=1 // pred_check_branch
      %80 = sbr.rel (0) target = $region45
    $region44: #{tpu_custom_call.1} parent=1 // pred_region
      %81 = dma.done [#allocation3], 4096
    $region45: #{tpu_custom_call.1} parent=1 // pred_fallthru
      _
    // Predicated region
    $region46: #{tpu_custom_call.1} parent=1 // pred_check
      _
    $region47: #{tpu_custom_call.1} parent=1 // pred_check_branch
      %83 = sbr.rel (0) target = $region49
    $region48: #{tpu_custom_call.1} parent=1 // pred_region
      %84 = dma.done [#allocation6], 2048
    $region49: #{tpu_custom_call.1} parent=1 // pred_fallthru
      _
    // Predicated region
    $region50: #{tpu_custom_call.1} parent=1 // pred_check
      _
    $region51: #{tpu_custom_call.1} parent=1 // pred_check_branch
      %86 = sbr.rel (0) target = $region53
    $region52: #{tpu_custom_call.1} parent=1 // pred_region
      %87 = dma.done [#allocation6], 4096
    $region53: #{tpu_custom_call.1} parent=1 // pred_fallthru
      _
    // Predicated region
    $region54: #{tpu_custom_call.1} parent=1 // pred_check
      _
    $region55: #{tpu_custom_call.1} parent=1 // pred_check_branch
      %89 = sbr.rel (0) target = $region57
    $region56: #{tpu_custom_call.1} parent=1 // pred_region
      %90 = dma.done [#allocation9], 4096
    $region57: #{tpu_custom_call.1} parent=1 // pred_fallthru
      _
    %v92 = vlaneseq
    %v93 = vand.u32 %v92, 127
    %v94 = vcvt.s32.f32 %v93
    %v95 = vmul.f32 %v94, -0.071955785
    %v96 = vmul.f32 %v95, 1.442695
    %v97 = vpow.pop %v96
    %v98 = vld [vmem:[%s0] sm:$0xff]
    %v99 = vld [vmem:[%s0 + $0x8] sm:$0xff]
    %101 = vset.pattern.permute.xlu0 0
    %102 = vperm.xlu0 %101, %v98
    %v103 = vpop.permute.xlu0 %102
    %106 = vset.pattern.permute.xlu0 0
    %107 = vperm.xlu0 %106, %v99
    %v108 = vpop.permute.xlu0 %107
    %v110 = vmul.f32 %v103, %v97
    %v111 = vmul.f32 %v108, %v97
    %v112 = vand.u32 2147483647, %v110
    %vm113 = vcmp.le.f32.partialorder %v112, 0.7853982
    %vm114 = vcmp.lt.s32.totalorder %v110, 0
    %v115 = vand.u32 %v110, 2139095040
    %v116 = vshrl.u32 %v115, 23
    %v117 = vsub.s32 %v116, 127
    %v118 = vand.u32 2147483647, %v110
    %v119 = vand.u32 %v118, 8388607
    %v120 = vor.u32 %v119, 8388608
    %v121 = vsub.s32 0, %v120
    %v122 = vadd.s32 %v117, 1
    %vm123 = vcmp.gt.s32.totalorder %v122, 0
    %v124 = vsel %vm123, %v122, 0
    %v125 = vshrl.u32 %v124, 5
    %v126 = vand.u32 %v124, 31
    %v127 = vsub.s32 32, %v126
    %v128 = vshrl.u32 683565275, %v127
    %v129 = vshll.u32 683565275, %v126
    %v130 = vshrl.u32 2475754826, %v127
    %v131 = vor.u32 %v129, %v130
    %v132 = vshll.u32 2475754826, %v126
    %v133 = vshrl.u32 2131351028, %v127
    %v134 = vor.u32 %v132, %v133
    %v135 = vshll.u32 2131351028, %v126
    %v136 = vshrl.u32 2102212464, %v127
    %v137 = vor.u32 %v135, %v136
    %v138 = vshll.u32 2102212464, %v126
    %v139 = vshrl.u32 920167782, %v127
    %v140 = vor.u32 %v138, %v139
    %v141 = vshll.u32 920167782, %v126
    %v142 = vshrl.u32 1326507024, %v127
    %v143 = vor.u32 %v141, %v142
    %vm144 = vcmp.lt.s32.totalorder %v125, 1
    %vm145 = vcmp.lt.s32.totalorder %v125, 2
    %vm146 = vcmp.lt.s32.totalorder %v125, 3
    %vm147 = vcmp.lt.s32.totalorder %v125, 4
    %v148 = vsel %vm144, %v128, %v131
    %v149 = vsel %vm147, %v137, 2102212464
    %v150 = vsel %vm146, %v134, %v149
    %v151 = vsel %vm145, %v148, %v150
    %v152 = vsel %vm144, %v131, %v134
    %v153 = vsel %vm147, %v140, 920167782
    %v154 = vsel %vm146, %v137, %v153
    %v155 = vsel %vm145, %v152, %v154
    %v156 = vsel %vm144, %v134, %v137
    %v157 = vsel %vm147, %v143, 1326507024
    %v158 = vsel %vm146, %v140, %v157
    %v159 = vsel %vm145, %v156, %v158
    %v160 = vshll.u32 %v120, 8
    %v161 = vmul.u32.u64.compose %v160, %v159
    %v162 = vextract.low.u32 %v161
    %v163 = vextract.high.u32 %v161
    %v164 = vmul.u32.u64.compose %v160, %v155
    %v165 = vextract.low.u32 %v164
    %v166 = vextract.high.u32 %v164
    %v167 = vmul.u32 %v160, %v151
    %v168 = vadd.s32 %v163, %v165
    %vm169 = vc.u32 %v163, %v165
    %v170 = vadd.s32 %v166, 1
    %v171 = vsel %vm169, %v170, %v166
    %v172 = vadd.s32 %v167, %v171
    %v173 = vadd.s32 %v172, 536870912
    %v174 = vshrl.u32 %v173, 30
    %v175 = vshll.u32 %v174, 30
    %v176 = vsub.s32 %v172, %v175
    %vm177 = vcmp.lt.s32.totalorder %v176, 0
    %v178 = vsub.s32 0, %v176
    %v179 = vsel %vm177, %v178, %v176
    %v180 = vclz %v179
    %v181 = vsub.s32 %v180, 2
    %vm182 = vcmp.gt.s32.totalorder 0, %v181
    %v183 = vsel %vm182, 0, %v181
    %v184 = vsub.s32 32, %v183
    %v185 = vshll.u32 %v176, %v183
    %v186 = vshrl.u32 %v168, %v184
    %v187 = vor.u32 %v185, %v186
    %v188 = vsub.s32 4294967266, %v183
    %v189 = vadd.s32 %v188, 127
    %v190 = vshll.u32 %v189, 23
    %v191 = vor.u32 4788187, %v190
    %v192 = vand.u32 2147483647, %v191
    %v194 = vcvt.s32.f32 %v187
    %v195 = vmul.f32 %v194, %v192
    %v196 = vxor.u32 %v195, 2147483648
    %v197 = vsel %vm114, %v196, %v195
    %v198 = vsub.s32 4, %v174
    %v199 = vsel %vm114, %v198, %v174
    %v200 = vsel %vm113, %v110, %v197
    %v201 = vsel %vm113, 0, %v199
    %v202 = vcosq.f32.pop %v200
    %v203 = vsinq.f32.pop %v200
    %vm204 = vweird.f32 %v110
    %v205 = vand.u32 %v201, 3
    %vm206 = vcmp.lt.s32.totalorder %v205, 2
    %vm207 = vcmp.eq.s32.totalorder %v205, 0
    %v208 = vxor.u32 %v203, 2147483648
    %v209 = vsel %vm207, %v202, %v208
    %vm210 = vcmp.eq.s32.totalorder %v205, 2
    %v211 = vxor.u32 %v202, 2147483648
    %v212 = vsel %vm210, %v211, %v203
    %v213 = vsel %vm206, %v209, %v212
    %v214 = vsel %vm204, nan, %v213
    %v215 = vand.u32 2147483647, %v111
    %vm216 = vcmp.le.f32.partialorder %v215, 0.7853982
    %vm217 = vcmp.lt.s32.totalorder %v111, 0
    %v218 = vand.u32 %v111, 2139095040
    %v219 = vshrl.u32 %v218, 23
    %v220 = vsub.s32 %v219, 127
    %v221 = vand.u32 2147483647, %v111
    %v222 = vand.u32 %v221, 8388607
    %v223 = vor.u32 %v222, 8388608
    %v224 = vsub.s32 0, %v223
    %v225 = vadd.s32 %v220, 1
    %vm226 = vcmp.gt.s32.totalorder %v225, 0
    %v227 = vsel %vm226, %v225, 0
    %v228 = vshrl.u32 %v227, 5
    %v229 = vand.u32 %v227, 31
    %v230 = vsub.s32 32, %v229
    %v231 = vshrl.u32 683565275, %v230
    %v232 = vshll.u32 683565275, %v229
    %v233 = vshrl.u32 2475754826, %v230
    %v234 = vor.u32 %v232, %v233
    %v235 = vshll.u32 2475754826, %v229
    %v236 = vshrl.u32 2131351028, %v230
    %v237 = vor.u32 %v235, %v236
    %v238 = vshll.u32 2131351028, %v229
    %v239 = vshrl.u32 2102212464, %v230
    %v240 = vor.u32 %v238, %v239
    %v241 = vshll.u32 2102212464, %v229
    %v242 = vshrl.u32 920167782, %v230
    %v243 = vor.u32 %v241, %v242
    %v244 = vshll.u32 920167782, %v229
    %v245 = vshrl.u32 1326507024, %v230
    %v246 = vor.u32 %v244, %v245
    %vm247 = vcmp.lt.s32.totalorder %v228, 1
    %vm248 = vcmp.lt.s32.totalorder %v228, 2
    %vm249 = vcmp.lt.s32.totalorder %v228, 3
    %vm250 = vcmp.lt.s32.totalorder %v228, 4
    %v251 = vsel %vm247, %v231, %v234
    %v252 = vsel %vm250, %v240, 2102212464
    %v253 = vsel %vm249, %v237, %v252
    %v254 = vsel %vm248, %v251, %v253
    %v255 = vsel %vm247, %v234, %v237
    %v256 = vsel %vm250, %v243, 920167782
    %v257 = vsel %vm249, %v240, %v256
    %v258 = vsel %vm248, %v255, %v257
    %v259 = vsel %vm247, %v237, %v240
    %v260 = vsel %vm250, %v246, 1326507024
    %v261 = vsel %vm249, %v243, %v260
    %v262 = vsel %vm248, %v259, %v261
    %v263 = vshll.u32 %v223, 8
    %v264 = vmul.u32.u64.compose %v263, %v262
    %v265 = vextract.low.u32 %v264
    %v266 = vextract.high.u32 %v264
    %v267 = vmul.u32.u64.compose %v263, %v258
    %v268 = vextract.low.u32 %v267
    %v269 = vextract.high.u32 %v267
    %v270 = vmul.u32 %v263, %v254
    %v271 = vadd.s32 %v266, %v268
    %vm272 = vc.u32 %v266, %v268
    %v273 = vadd.s32 %v269, 1
    %v274 = vsel %vm272, %v273, %v269
    %v275 = vadd.s32 %v270, %v274
    %v276 = vadd.s32 %v275, 536870912
    %v277 = vshrl.u32 %v276, 30
    %v278 = vshll.u32 %v277, 30
    %v279 = vsub.s32 %v275, %v278
    %vm280 = vcmp.lt.s32.totalorder %v279, 0
    %v281 = vsub.s32 0, %v279
    %v282 = vsel %vm280, %v281, %v279
    %v283 = vclz %v282
    %v284 = vsub.s32 %v283, 2
    %vm285 = vcmp.gt.s32.totalorder 0, %v284
    %v286 = vsel %vm285, 0, %v284
    %v287 = vsub.s32 32, %v286
    %v288 = vshll.u32 %v279, %v286
    %v289 = vshrl.u32 %v271, %v287
    %v290 = vor.u32 %v288, %v289
    %v291 = vsub.s32 4294967266, %v286
    %v292 = vadd.s32 %v291, 127
    %v293 = vshll.u32 %v292, 23
    %v294 = vor.u32 4788187, %v293
    %v295 = vand.u32 2147483647, %v294
    %v297 = vcvt.s32.f32 %v290
    %v298 = vmul.f32 %v297, %v295
    %v299 = vxor.u32 %v298, 2147483648
    %v300 = vsel %vm217, %v299, %v298
    %v301 = vsub.s32 4, %v277
    %v302 = vsel %vm217, %v301, %v277
    %v303 = vsel %vm216, %v111, %v300
    %v304 = vsel %vm216, 0, %v302
    %v305 = vcosq.f32.pop %v303
    %v306 = vsinq.f32.pop %v303
    %vm307 = vweird.f32 %v111
    %v308 = vand.u32 %v304, 3
    %vm309 = vcmp.lt.s32.totalorder %v308, 2
    %vm310 = vcmp.eq.s32.totalorder %v308, 0
    %v311 = vxor.u32 %v306, 2147483648
    %v312 = vsel %vm310, %v305, %v311
    %vm313 = vcmp.eq.s32.totalorder %v308, 2
    %v314 = vxor.u32 %v305, 2147483648
    %v315 = vsel %vm313, %v314, %v306
    %v316 = vsel %vm309, %v312, %v315
    %v317 = vsel %vm307, nan, %v316
    %v318 = vand.u32 2147483647, %v110
    %vm319 = vcmp.le.f32.partialorder %v318, 0.7853982
    %vm320 = vcmp.lt.s32.totalorder %v110, 0
    %v321 = vand.u32 %v110, 2139095040
    %v322 = vshrl.u32 %v321, 23
    %v323 = vsub.s32 %v322, 127
    %v324 = vand.u32 2147483647, %v110
    %v325 = vand.u32 %v324, 8388607
    %v326 = vor.u32 %v325, 8388608
    %v327 = vsub.s32 0, %v326
    %v328 = vadd.s32 %v323, 1
    %vm329 = vcmp.gt.s32.totalorder %v328, 0
    %v330 = vsel %vm329, %v328, 0
    %v331 = vshrl.u32 %v330, 5
    %v332 = vand.u32 %v330, 31
    %v333 = vsub.s32 32, %v332
    %v334 = vshrl.u32 683565275, %v333
    %v335 = vshll.u32 683565275, %v332
    %v336 = vshrl.u32 2475754826, %v333
    %v337 = vor.u32 %v335, %v336
    %v338 = vshll.u32 2475754826, %v332
    %v339 = vshrl.u32 2131351028, %v333
    %v340 = vor.u32 %v338, %v339
    %v341 = vshll.u32 2131351028, %v332
    %v342 = vshrl.u32 2102212464, %v333
    %v343 = vor.u32 %v341, %v342
    %v344 = vshll.u32 2102212464, %v332
    %v345 = vshrl.u32 920167782, %v333
    %v346 = vor.u32 %v344, %v345
    %v347 = vshll.u32 920167782, %v332
    %v348 = vshrl.u32 1326507024, %v333
    %v349 = vor.u32 %v347, %v348
    %vm350 = vcmp.lt.s32.totalorder %v331, 1
    %vm351 = vcmp.lt.s32.totalorder %v331, 2
    %vm352 = vcmp.lt.s32.totalorder %v331, 3
    %vm353 = vcmp.lt.s32.totalorder %v331, 4
    %v354 = vsel %vm350, %v334, %v337
    %v355 = vsel %vm353, %v343, 2102212464
    %v356 = vsel %vm352, %v340, %v355
    %v357 = vsel %vm351, %v354, %v356
    %v358 = vsel %vm350, %v337, %v340
    %v359 = vsel %vm353, %v346, 920167782
    %v360 = vsel %vm352, %v343, %v359
    %v361 = vsel %vm351, %v358, %v360
    %v362 = vsel %vm350, %v340, %v343
    %v363 = vsel %vm353, %v349, 1326507024
    %v364 = vsel %vm352, %v346, %v363
    %v365 = vsel %vm351, %v362, %v364
    %v366 = vshll.u32 %v326, 8
    %v367 = vmul.u32.u64.compose %v366, %v365
    %v368 = vextract.low.u32 %v367
    %v369 = vextract.high.u32 %v367
    %v370 = vmul.u32.u64.compose %v366, %v361
    %v371 = vextract.low.u32 %v370
    %v372 = vextract.high.u32 %v370
    %v373 = vmul.u32 %v366, %v357
    %v374 = vadd.s32 %v369, %v371
    %vm375 = vc.u32 %v369, %v371
    %v376 = vadd.s32 %v372, 1
    %v377 = vsel %vm375, %v376, %v372
    %v378 = vadd.s32 %v373, %v377
    %v379 = vadd.s32 %v378, 536870912
    %v380 = vshrl.u32 %v379, 30
    %v381 = vshll.u32 %v380, 30
    %v382 = vsub.s32 %v378, %v381
    %vm383 = vcmp.lt.s32.totalorder %v382, 0
    %v384 = vsub.s32 0, %v382
    %v385 = vsel %vm383, %v384, %v382
    %v386 = vclz %v385
    %v387 = vsub.s32 %v386, 2
    %vm388 = vcmp.gt.s32.totalorder 0, %v387
    %v389 = vsel %vm388, 0, %v387
    %v390 = vsub.s32 32, %v389
    %v391 = vshll.u32 %v382, %v389
    %v392 = vshrl.u32 %v374, %v390
    %v393 = vor.u32 %v391, %v392
    %v394 = vsub.s32 4294967266, %v389
    %v395 = vadd.s32 %v394, 127
    %v396 = vshll.u32 %v395, 23
    %v397 = vor.u32 4788187, %v396
    %v398 = vand.u32 2147483647, %v397
    %v400 = vcvt.s32.f32 %v393
    %v401 = vmul.f32 %v400, %v398
    %v402 = vxor.u32 %v401, 2147483648
    %v403 = vsel %vm320, %v402, %v401
    %v404 = vsub.s32 4, %v380
    %v405 = vsel %vm320, %v404, %v380
    %v406 = vsel %vm319, %v110, %v403
    %v407 = vsel %vm319, 0, %v405
    %v408 = vcosq.f32.pop %v406
    %v409 = vsinq.f32.pop %v406
    %vm410 = vweird.f32 %v110
    %v411 = vadd.s32 %v407, 3
    %v412 = vand.u32 %v411, 3
    %vm413 = vcmp.lt.s32.totalorder %v412, 2
    %vm414 = vcmp.eq.s32.totalorder %v412, 0
    %v415 = vxor.u32 %v409, 2147483648
    %v416 = vsel %vm414, %v408, %v415
    %vm417 = vcmp.eq.s32.totalorder %v412, 2
    %v418 = vxor.u32 %v408, 2147483648
    %v419 = vsel %vm417, %v418, %v409
    %v420 = vsel %vm413, %v416, %v419
    %v421 = vsel %vm410, nan, %v420
    %v422 = vand.u32 2147483647, %v111
    %vm423 = vcmp.le.f32.partialorder %v422, 0.7853982
    %vm424 = vcmp.lt.s32.totalorder %v111, 0
    %v425 = vand.u32 %v111, 2139095040
    %v426 = vshrl.u32 %v425, 23
    %v427 = vsub.s32 %v426, 127
    %v428 = vand.u32 2147483647, %v111
    %v429 = vand.u32 %v428, 8388607
    %v430 = vor.u32 %v429, 8388608
    %v431 = vsub.s32 0, %v430
    %v432 = vadd.s32 %v427, 1
    %vm433 = vcmp.gt.s32.totalorder %v432, 0
    %v434 = vsel %vm433, %v432, 0
    %v435 = vshrl.u32 %v434, 5
    %v436 = vand.u32 %v434, 31
    %v437 = vsub.s32 32, %v436
    %v438 = vshrl.u32 683565275, %v437
    %v439 = vshll.u32 683565275, %v436
    %v440 = vshrl.u32 2475754826, %v437
    %v441 = vor.u32 %v439, %v440
    %v442 = vshll.u32 2475754826, %v436
    %v443 = vshrl.u32 2131351028, %v437
    %v444 = vor.u32 %v442, %v443
    %v445 = vshll.u32 2131351028, %v436
    %v446 = vshrl.u32 2102212464, %v437
    %v447 = vor.u32 %v445, %v446
    %v448 = vshll.u32 2102212464, %v436
    %v449 = vshrl.u32 920167782, %v437
    %v450 = vor.u32 %v448, %v449
    %v451 = vshll.u32 920167782, %v436
    %v452 = vshrl.u32 1326507024, %v437
    %v453 = vor.u32 %v451, %v452
    %vm454 = vcmp.lt.s32.totalorder %v435, 1
    %vm455 = vcmp.lt.s32.totalorder %v435, 2
    %vm456 = vcmp.lt.s32.totalorder %v435, 3
    %vm457 = vcmp.lt.s32.totalorder %v435, 4
    %v458 = vsel %vm454, %v438, %v441
    %v459 = vsel %vm457, %v447, 2102212464
    %v460 = vsel %vm456, %v444, %v459
    %v461 = vsel %vm455, %v458, %v460
    %v462 = vsel %vm454, %v441, %v444
    %v463 = vsel %vm457, %v450, 920167782
    %v464 = vsel %vm456, %v447, %v463
    %v465 = vsel %vm455, %v462, %v464
    %v466 = vsel %vm454, %v444, %v447
    %v467 = vsel %vm457, %v453, 1326507024
    %v468 = vsel %vm456, %v450, %v467
    %v469 = vsel %vm455, %v466, %v468
    %v470 = vshll.u32 %v430, 8
    %v471 = vmul.u32.u64.compose %v470, %v469
    %v472 = vextract.low.u32 %v471
    %v473 = vextract.high.u32 %v471
    %v474 = vmul.u32.u64.compose %v470, %v465
    %v475 = vextract.low.u32 %v474
    %v476 = vextract.high.u32 %v474
    %v477 = vmul.u32 %v470, %v461
    %v478 = vadd.s32 %v473, %v475
    %vm479 = vc.u32 %v473, %v475
    %v480 = vadd.s32 %v476, 1
    %v481 = vsel %vm479, %v480, %v476
    %v482 = vadd.s32 %v477, %v481
    %v483 = vadd.s32 %v482, 536870912
    %v484 = vshrl.u32 %v483, 30
    %v485 = vshll.u32 %v484, 30
    %v486 = vsub.s32 %v482, %v485
    %vm487 = vcmp.lt.s32.totalorder %v486, 0
    %v488 = vsub.s32 0, %v486
    %v489 = vsel %vm487, %v488, %v486
    %v490 = vclz %v489
    %v491 = vsub.s32 %v490, 2
    %vm492 = vcmp.gt.s32.totalorder 0, %v491
    %v493 = vsel %vm492, 0, %v491
    %v494 = vsub.s32 32, %v493
    %v495 = vshll.u32 %v486, %v493
    %v496 = vshrl.u32 %v478, %v494
    %v497 = vor.u32 %v495, %v496
    %v498 = vsub.s32 4294967266, %v493
    %v499 = vadd.s32 %v498, 127
    %v500 = vshll.u32 %v499, 23
    %v501 = vor.u32 4788187, %v500
    %v502 = vand.u32 2147483647, %v501
    %v504 = vcvt.s32.f32 %v497
    %v505 = vmul.f32 %v504, %v502
    %v506 = vxor.u32 %v505, 2147483648
    %v507 = vsel %vm424, %v506, %v505
    %v508 = vsub.s32 4, %v484
    %v509 = vsel %vm424, %v508, %v484
    %v510 = vsel %vm423, %v111, %v507
    %v511 = vsel %vm423, 0, %v509
    %v512 = vcosq.f32.pop %v510
    %v513 = vsinq.f32.pop %v510
    %vm514 = vweird.f32 %v111
    %v515 = vadd.s32 %v511, 3
    %v516 = vand.u32 %v515, 3
    %vm517 = vcmp.lt.s32.totalorder %v516, 2
    %vm518 = vcmp.eq.s32.totalorder %v516, 0
    %v519 = vxor.u32 %v513, 2147483648
    %v520 = vsel %vm518, %v512, %v519
    %vm521 = vcmp.eq.s32.totalorder %v516, 2
    %v522 = vxor.u32 %v512, 2147483648
    %v523 = vsel %vm521, %v522, %v513
    %v524 = vsel %vm517, %v520, %v523
    %v525 = vsel %vm514, nan, %v524
    %v526 = vpack.c.bf16 %v317, %v214
    %v527 = vpack.c.bf16 %v525, %v421
    %v528 = vld [vmem:[%s5] sm:$0xf]
    %v529 = vld [vmem:[#allocation2] sm:$0xff]
    %v530 = vld [vmem:[#allocation2 + $0x8] sm:$0xff]
    %v531 = vld [vmem:[#allocation2 + $0x10] sm:$0xff]
    %v532 = vld [vmem:[#allocation2 + $0x18] sm:$0xff]
    %v533 = vld [vmem:[#allocation2 + $0x20] sm:$0xff]
    %v534 = vld [vmem:[#allocation2 + $0x28] sm:$0xff]
    %v535 = vld [vmem:[#allocation2 + $0x30] sm:$0xff]
    %v536 = vld [vmem:[#allocation2 + $0x38] sm:$0xff]
    %v537 = vld [vmem:[#allocation2 + $0x40] sm:$0xff]
    %v538 = vld [vmem:[#allocation2 + $0x48] sm:$0xff]
    %v539 = vld [vmem:[#allocation2 + $0x50] sm:$0xff]
    %v540 = vld [vmem:[#allocation2 + $0x58] sm:$0xff]
    %v541 = vld [vmem:[#allocation2 + $0x60] sm:$0xff]
    %v542 = vld [vmem:[#allocation2 + $0x68] sm:$0xff]
    %v543 = vld [vmem:[#allocation2 + $0x70] sm:$0xff]
    %v544 = vld [vmem:[#allocation2 + $0x78] sm:$0xff]
    %v545 = vld [vmem:[#allocation2 + $0x80] sm:$0xff]
    %v546 = vld [vmem:[#allocation2 + $0x88] sm:$0xff]
    %v547 = vld [vmem:[#allocation2 + $0x90] sm:$0xff]
    %v548 = vld [vmem:[#allocation2 + $0x98] sm:$0xff]
    %v549 = vld [vmem:[#allocation2 + $0xa0] sm:$0xff]
    %v550 = vld [vmem:[#allocation2 + $0xa8] sm:$0xff]
    %v551 = vld [vmem:[#allocation2 + $0xb0] sm:$0xff]
    %v552 = vld [vmem:[#allocation2 + $0xb8] sm:$0xff]
    %v553 = vld [vmem:[#allocation2 + $0xc0] sm:$0xff]
    %v554 = vld [vmem:[#allocation2 + $0xc8] sm:$0xff]
    %v555 = vld [vmem:[#allocation2 + $0xd0] sm:$0xff]
    %v556 = vld [vmem:[#allocation2 + $0xd8] sm:$0xff]
    %v557 = vld [vmem:[#allocation2 + $0xe0] sm:$0xff]
    %v558 = vld [vmem:[#allocation2 + $0xe8] sm:$0xff]
    %v559 = vld [vmem:[#allocation2 + $0xf0] sm:$0xff]
    %v560 = vld [vmem:[#allocation2 + $0xf8] sm:$0xff]
    %v562 = vlaneseq
    %v563 = vshrl.u32 %v562, 7
    %v564 = vsub.s32 0, %v563
    %v565 = vrot.slane %v528, %v564
    %v566 = vlaneseq
    %v567 = vshrl.u32 %v566, 7
    %v568 = vsub.s32 2, %v567
    %v569 = vrot.slane %v528, %v568
    %v572 = vlaneseq
    %v573 = vshrl.u32 %v572, 7
    %v574 = vsub.s32 0, %v573
    %v575 = vrot.slane %v565, %v574
    %v576 = vlaneseq
    %v577 = vshrl.u32 %v576, 7
    %v578 = vsub.s32 0, %v577
    %v579 = vrot.slane %v569, %v578
    %v612 = vunpack.c.l.b16 %v529
    %v613 = vunpack.c.h.b16 %v529
    %v614 = vunpack.c.l.b16 %v530
    %v615 = vunpack.c.h.b16 %v530
    %v616 = vunpack.c.l.b16 %v531
    %v617 = vunpack.c.h.b16 %v531
    %v618 = vunpack.c.l.b16 %v532
    %v619 = vunpack.c.h.b16 %v532
    %v620 = vunpack.c.l.b16 %v533
    %v621 = vunpack.c.h.b16 %v533
    %v622 = vunpack.c.l.b16 %v534
    %v623 = vunpack.c.h.b16 %v534
    %v624 = vunpack.c.l.b16 %v535
    %v625 = vunpack.c.h.b16 %v535
    %v626 = vunpack.c.l.b16 %v536
    %v627 = vunpack.c.h.b16 %v536
    %v628 = vunpack.c.l.b16 %v537
    %v629 = vunpack.c.h.b16 %v537
    %v630 = vunpack.c.l.b16 %v538
    %v631 = vunpack.c.h.b16 %v538
    %v632 = vunpack.c.l.b16 %v539
    %v633 = vunpack.c.h.b16 %v539
    %v634 = vunpack.c.l.b16 %v540
    %v635 = vunpack.c.h.b16 %v540
    %v636 = vunpack.c.l.b16 %v541
    %v637 = vunpack.c.h.b16 %v541
    %v638 = vunpack.c.l.b16 %v542
    %v639 = vunpack.c.h.b16 %v542
    %v640 = vunpack.c.l.b16 %v543
    %v641 = vunpack.c.h.b16 %v543
    %v642 = vunpack.c.l.b16 %v544
    %v643 = vunpack.c.h.b16 %v544
    %v644 = vunpack.c.l.b16 %v545
    %v645 = vunpack.c.h.b16 %v545
    %v646 = vunpack.c.l.b16 %v546
    %v647 = vunpack.c.h.b16 %v546
    %v648 = vunpack.c.l.b16 %v547
    %v649 = vunpack.c.h.b16 %v547
    %v650 = vunpack.c.l.b16 %v548
    %v651 = vunpack.c.h.b16 %v548
    %v652 = vunpack.c.l.b16 %v549
    %v653 = vunpack.c.h.b16 %v549
    %v654 = vunpack.c.l.b16 %v550
    %v655 = vunpack.c.h.b16 %v550
    %v656 = vunpack.c.l.b16 %v551
    %v657 = vunpack.c.h.b16 %v551
    %v658 = vunpack.c.l.b16 %v552
    %v659 = vunpack.c.h.b16 %v552
    %v660 = vunpack.c.l.b16 %v553
    %v661 = vunpack.c.h.b16 %v553
    %v662 = vunpack.c.l.b16 %v554
    %v663 = vunpack.c.h.b16 %v554
    %v664 = vunpack.c.l.b16 %v555
    %v665 = vunpack.c.h.b16 %v555
    %v666 = vunpack.c.l.b16 %v556
    %v667 = vunpack.c.h.b16 %v556
    %v668 = vunpack.c.l.b16 %v557
    %v669 = vunpack.c.h.b16 %v557
    %v670 = vunpack.c.l.b16 %v558
    %v671 = vunpack.c.h.b16 %v558
    %v672 = vunpack.c.l.b16 %v559
    %v673 = vunpack.c.h.b16 %v559
    %v674 = vunpack.c.l.b16 %v560
    %v675 = vunpack.c.h.b16 %v560
    %v676 = vpack.c.b16 %v614, %v612
    %v677 = vpack.c.b16 %v615, %v613
    %v678 = vpack.c.b16 %v618, %v616
    %v679 = vpack.c.b16 %v619, %v617
    %v680 = vpack.c.b16 %v622, %v620
    %v681 = vpack.c.b16 %v623, %v621
    %v682 = vpack.c.b16 %v626, %v624
    %v683 = vpack.c.b16 %v627, %v625
    %v684 = vpack.c.b16 %v630, %v628
    %v685 = vpack.c.b16 %v631, %v629
    %v686 = vpack.c.b16 %v634, %v632
    %v687 = vpack.c.b16 %v635, %v633
    %v688 = vpack.c.b16 %v638, %v636
    %v689 = vpack.c.b16 %v639, %v637
    %v690 = vpack.c.b16 %v642, %v640
    %v691 = vpack.c.b16 %v643, %v641
    %v692 = vpack.c.b16 %v646, %v644
    %v693 = vpack.c.b16 %v647, %v645
    %v694 = vpack.c.b16 %v650, %v648
    %v695 = vpack.c.b16 %v651, %v649
    %v696 = vpack.c.b16 %v654, %v652
    %v697 = vpack.c.b16 %v655, %v653
    %v698 = vpack.c.b16 %v658, %v656
    %v699 = vpack.c.b16 %v659, %v657
    %v700 = vpack.c.b16 %v662, %v660
    %v701 = vpack.c.b16 %v663, %v661
    %v702 = vpack.c.b16 %v666, %v664
    %v703 = vpack.c.b16 %v667, %v665
    %v704 = vpack.c.b16 %v670, %v668
    %v705 = vpack.c.b16 %v671, %v669
    %v706 = vpack.c.b16 %v674, %v672
    %v707 = vpack.c.b16 %v675, %v673
    %740 = vmatprep.subr.bf16.mxu0 %v677
    %741 = vmatpush1.bf16.msra.mxu0 %v676
    %742 = vmatprep.subr.bf16.mxu0 %v679
    %743 = vmatpush1.bf16.msra.mxu0 %v678
    %744 = vmatprep.subr.bf16.mxu0 %v681
    %745 = vmatpush1.bf16.msra.mxu0 %v680
    %746 = vmatprep.subr.bf16.mxu0 %v683
    %747 = vmatpush1.bf16.msra.mxu0 %v682
    %748 = vmatprep.subr.bf16.mxu0 %v685
    %749 = vmatpush1.bf16.msra.mxu0 %v684
    %750 = vmatprep.subr.bf16.mxu0 %v687
    %751 = vmatpush1.bf16.msra.mxu0 %v686
    %752 = vmatprep.subr.bf16.mxu0 %v689
    %753 = vmatpush1.bf16.msra.mxu0 %v688
    %754 = vmatprep.subr.bf16.mxu0 %v691
    %755 = vmatpush1.bf16.msra.mxu0 %v690
    %756 = vmatprep.subr.bf16.mxu0 %v693
    %757 = vmatpush1.bf16.msra.mxu0 %v692
    %758 = vmatprep.subr.bf16.mxu0 %v695
    %759 = vmatpush1.bf16.msra.mxu0 %v694
    %760 = vmatprep.subr.bf16.mxu0 %v697
    %761 = vmatpush1.bf16.msra.mxu0 %v696
    %762 = vmatprep.subr.bf16.mxu0 %v699
    %763 = vmatpush1.bf16.msra.mxu0 %v698
    %764 = vmatprep.subr.bf16.mxu0 %v701
    %765 = vmatpush1.bf16.msra.mxu0 %v700
    %766 = vmatprep.subr.bf16.mxu0 %v703
    %767 = vmatpush1.bf16.msra.mxu0 %v702
    %768 = vmatprep.subr.bf16.mxu0 %v705
    %769 = vmatpush1.bf16.msra.mxu0 %v704
    %770 = vmatprep.subr.bf16.mxu0 %v707
    %771 = vmatpush1.bf16.msra.mxu0 %v706
    %772 = vmatprep.mubr.bf16.mxu0 %v527
    %773 = vmatmul.mubr.bf16.gmra.mrb[0].mxu0 %v526
    %v774 = vpop.f32.mrb[0].mxu0
    %v775 = vadd.f32 %v575, %v774
    %v776 = vpop.f32.mrb[0].mxu0
    %v777 = vadd.f32 %v579, %v776
    %v778 = vpop.f32.mrb[0].mxu0
    %v779 = vadd.f32 %v575, %v778
    %v780 = vpop.f32.mrb[0].mxu0
    %v781 = vadd.f32 %v579, %v780
    %782 = vdwg.mxu0
    %v783 = vxor.u32 %v775, 2147483648
    %v784 = vxor.u32 %v777, 2147483648
    %v785 = vxor.u32 %v779, 2147483648
    %v786 = vxor.u32 %v781, 2147483648
    %v787 = vmul.f32 %v783, 1.442695
    %v788 = vpow.pop %v787
    %v789 = vmul.f32 %v784, 1.442695
    %v790 = vpow.pop %v789
    %v791 = vmul.f32 %v785, 1.442695
    %v792 = vpow.pop %v791
    %v793 = vmul.f32 %v786, 1.442695
    %v794 = vpow.pop %v793
    %v795 = vadd.f32 %v788, 1.0
    %v796 = vadd.f32 %v790, 1.0
    %v797 = vadd.f32 %v792, 1.0
    %v798 = vadd.f32 %v794, 1.0
    %v799 = vrcp.pop %v795
    %v800 = vmul.f32 1.0, %v799
    %v801 = vrcp.pop %v796
    %v802 = vmul.f32 1.0, %v801
    %v803 = vrcp.pop %v797
    %v804 = vmul.f32 1.0, %v803
    %v805 = vrcp.pop %v798
    %v806 = vmul.f32 1.0, %v805
    %v807 = vmul.f32 %v775, %v800
    %v808 = vmul.f32 %v777, %v802
    %v809 = vmul.f32 %v779, %v804
    %v810 = vmul.f32 %v781, %v806
    %v811 = vld [vmem:[%s1] sm:$0xf]
    %v812 = vld [vmem:[%s1 + $0x4] sm:$0xf]
    %v813 = vld [vmem:[#allocation5] sm:$0xff]
    %v814 = vld [vmem:[#allocation5 + $0x8] sm:$0xff]
    %v815 = vld [vmem:[#allocation5 + $0x10] sm:$0xff]
    %v816 = vld [vmem:[#allocation5 + $0x18] sm:$0xff]
    %v817 = vld [vmem:[#allocation5 + $0x20] sm:$0xff]
    %v818 = vld [vmem:[#allocation5 + $0x28] sm:$0xff]
    %v819 = vld [vmem:[#allocation5 + $0x30] sm:$0xff]
    %v820 = vld [vmem:[#allocation5 + $0x38] sm:$0xff]
    %v821 = vld [vmem:[#allocation5 + $0x40] sm:$0xff]
    %v822 = vld [vmem:[#allocation5 + $0x48] sm:$0xff]
    %v823 = vld [vmem:[#allocation5 + $0x50] sm:$0xff]
    %v824 = vld [vmem:[#allocation5 + $0x58] sm:$0xff]
    %v825 = vld [vmem:[#allocation5 + $0x60] sm:$0xff]
    %v826 = vld [vmem:[#allocation5 + $0x68] sm:$0xff]
    %v827 = vld [vmem:[#allocation5 + $0x70] sm:$0xff]
    %v828 = vld [vmem:[#allocation5 + $0x78] sm:$0xff]
    %v831 = vunpack.c.l.b16 %v811
    %v832 = vunpack.c.l.b16 %v812
    %v833 = vpack.c.b16 %v832, %v831
    %v851 = vunpack.c.l.b16 %v813
    %v852 = vunpack.c.h.b16 %v813
    %v853 = vunpack.c.l.b16 %v814
    %v854 = vunpack.c.h.b16 %v814
    %v855 = vunpack.c.l.b16 %v815
    %v856 = vunpack.c.h.b16 %v815
    %v857 = vunpack.c.l.b16 %v816
    %v858 = vunpack.c.h.b16 %v816
    %v859 = vunpack.c.l.b16 %v817
    %v860 = vunpack.c.h.b16 %v817
    %v861 = vunpack.c.l.b16 %v818
    %v862 = vunpack.c.h.b16 %v818
    %v863 = vunpack.c.l.b16 %v819
    %v864 = vunpack.c.h.b16 %v819
    %v865 = vunpack.c.l.b16 %v820
    %v866 = vunpack.c.h.b16 %v820
    %v867 = vunpack.c.l.b16 %v821
    %v868 = vunpack.c.h.b16 %v821
    %v869 = vunpack.c.l.b16 %v822
    %v870 = vunpack.c.h.b16 %v822
    %v871 = vunpack.c.l.b16 %v823
    %v872 = vunpack.c.h.b16 %v823
    %v873 = vunpack.c.l.b16 %v824
    %v874 = vunpack.c.h.b16 %v824
    %v875 = vunpack.c.l.b16 %v825
    %v876 = vunpack.c.h.b16 %v825
    %v877 = vunpack.c.l.b16 %v826
    %v878 = vunpack.c.h.b16 %v826
    %v879 = vunpack.c.l.b16 %v827
    %v880 = vunpack.c.h.b16 %v827
    %v881 = vunpack.c.l.b16 %v828
    %v882 = vunpack.c.h.b16 %v828
    %v883 = vpack.c.b16 %v853, %v851
    %v884 = vpack.c.b16 %v854, %v852
    %v885 = vpack.c.b16 %v857, %v855
    %v886 = vpack.c.b16 %v858, %v856
    %v887 = vpack.c.b16 %v861, %v859
    %v888 = vpack.c.b16 %v862, %v860
    %v889 = vpack.c.b16 %v865, %v863
    %v890 = vpack.c.b16 %v866, %v864
    %v891 = vpack.c.b16 %v869, %v867
    %v892 = vpack.c.b16 %v870, %v868
    %v893 = vpack.c.b16 %v873, %v871
    %v894 = vpack.c.b16 %v874, %v872
    %v895 = vpack.c.b16 %v877, %v875
    %v896 = vpack.c.b16 %v878, %v876
    %v897 = vpack.c.b16 %v881, %v879
    %v898 = vpack.c.b16 %v882, %v880
    %915 = vmatprep.subr.bf16.mxu0 %v884
    %916 = vmatpush1.bf16.msra.mxu0 %v883
    %917 = vmatprep.subr.bf16.mxu0 %v886
    %918 = vmatpush1.bf16.msra.mxu0 %v885
    %919 = vmatprep.subr.bf16.mxu0 %v888
    %920 = vmatpush1.bf16.msra.mxu0 %v887
    %921 = vmatprep.subr.bf16.mxu0 %v890
    %922 = vmatpush1.bf16.msra.mxu0 %v889
    %923 = vmatprep.subr.bf16.mxu0 %v892
    %924 = vmatpush1.bf16.msra.mxu0 %v891
    %925 = vmatprep.subr.bf16.mxu0 %v894
    %926 = vmatpush1.bf16.msra.mxu0 %v893
    %927 = vmatprep.subr.bf16.mxu0 %v896
    %928 = vmatpush1.bf16.msra.mxu0 %v895
    %929 = vmatprep.subr.bf16.mxu0 %v898
    %930 = vmatpush1.bf16.msra.mxu0 %v897
    %931 = vmatprep.subr.bf16.mxu0 0
    %932 = vmatpush1.bf16.msra.mxu0 0
    %933 = vmatprep.subr.bf16.mxu0 0
    %934 = vmatpush1.bf16.msra.mxu0 0
    %935 = vmatprep.subr.bf16.mxu0 0
    %936 = vmatpush1.bf16.msra.mxu0 0
    %937 = vmatprep.subr.bf16.mxu0 0
    %938 = vmatpush1.bf16.msra.mxu0 0
    %939 = vmatprep.subr.bf16.mxu0 0
    %940 = vmatpush1.bf16.msra.mxu0 0
    %941 = vmatprep.subr.bf16.mxu0 0
    %942 = vmatpush1.bf16.msra.mxu0 0
    %943 = vmatprep.subr.bf16.mxu0 0
    %944 = vmatpush1.bf16.msra.mxu0 0
    %945 = vmatprep.subr.bf16.mxu0 0
    %946 = vmatpush1.bf16.msra.mxu0 0
    %947 = vmatprep.mubr.bf16.mxu0 0
    %948 = vmatmul.mubr.bf16.gmra.mrb[0].mxu0 %v833
    %v949 = vpop.f32.mrb[0].mxu0
    %v950 = vadd.f32 0.0, %v949
    %v951 = vpop.f32.mrb[0].mxu0
    %v952 = vadd.f32 0.0, %v951
    %v953 = vpop.f32.mrb[0].mxu0
    %v954 = vadd.f32 0.0, %v953
    %v955 = vpop.f32.mrb[0].mxu0
    %v956 = vadd.f32 0.0, %v955
    %957 = vdwg.mxu0
    %v958 = vld [vmem:[%s4] sm:$0x3]
    %v960 = vlaneseq
    %v961 = vshrl.u32 %v960, 7
    %v962 = vsub.s32 0, %v961
    %v963 = vrot.slane %v958, %v962
    %v964 = vlaneseq
    %v965 = vshrl.u32 %v964, 7
    %v966 = vsub.s32 1, %v965
    %v967 = vrot.slane %v958, %v966
    %v970 = vmul.f32 %v950, %v963
    %v971 = vmul.f32 %v952, %v967
    %v972 = vmul.f32 %v954, %v963
    %v973 = vmul.f32 %v956, %v967
    %v974 = vlaneseq
    %v975 = vshrl.u32 %v974, 7
    %v976 = vsub.s32 1, %v975
    %v977 = vrot.slane %v528, %v976
    %v978 = vlaneseq
    %v979 = vshrl.u32 %v978, 7
    %v980 = vsub.s32 3, %v979
    %v981 = vrot.slane %v528, %v980
    %v984 = vlaneseq
    %v985 = vshrl.u32 %v984, 7
    %v986 = vsub.s32 1, %v985
    %v987 = vrot.slane %v977, %v986
    %v988 = vlaneseq
    %v989 = vshrl.u32 %v988, 7
    %v990 = vsub.s32 1, %v989
    %v991 = vrot.slane %v981, %v990
    %v992 = vadd.f32 %v970, %v987
    %v993 = vadd.f32 %v971, %v991
    %v994 = vadd.f32 %v972, %v987
    %v995 = vadd.f32 %v973, %v991
    %v996 = vxor.u32 %v992, 2147483648
    %v997 = vxor.u32 %v993, 2147483648
    %v998 = vxor.u32 %v994, 2147483648
    %v999 = vxor.u32 %v995, 2147483648
    %v1000 = vmul.f32 %v996, 1.442695
    %v1001 = vpow.pop %v1000
    %v1002 = vmul.f32 %v997, 1.442695
    %v1003 = vpow.pop %v1002
    %v1004 = vmul.f32 %v998, 1.442695
    %v1005 = vpow.pop %v1004
    %v1006 = vmul.f32 %v999, 1.442695
    %v1007 = vpow.pop %v1006
    %v1008 = vadd.f32 %v1001, 1.0
    %v1009 = vadd.f32 %v1003, 1.0
    %v1010 = vadd.f32 %v1005, 1.0
    %v1011 = vadd.f32 %v1007, 1.0
    %v1012 = vrcp.pop %v1008
    %v1013 = vmul.f32 1.0, %v1012
    %v1014 = vrcp.pop %v1009
    %v1015 = vmul.f32 1.0, %v1014
    %v1016 = vrcp.pop %v1010
    %v1017 = vmul.f32 1.0, %v1016
    %v1018 = vrcp.pop %v1011
    %v1019 = vmul.f32 1.0, %v1018
    %v1020 = vmul.f32 %v992, %v1013
    %v1021 = vmul.f32 %v993, %v1015
    %v1022 = vmul.f32 %v994, %v1017
    %v1023 = vmul.f32 %v995, %v1019
    %v1024 = vld [vmem:[%s8] sm:$0xf]
    %v1025 = vpack.c.bf16 %v809, %v807
    %v1026 = vpack.c.bf16 %v810, %v808
    %v1027 = vld [vmem:[#allocation7] sm:$0xff]
    %v1028 = vld [vmem:[#allocation7 + $0x8] sm:$0xff]
    %v1029 = vld [vmem:[#allocation7 + $0x10] sm:$0xff]
    %v1030 = vld [vmem:[#allocation7 + $0x18] sm:$0xff]
    %v1031 = vld [vmem:[#allocation7 + $0x20] sm:$0xff]
    %v1032 = vld [vmem:[#allocation7 + $0x28] sm:$0xff]
    %v1033 = vld [vmem:[#allocation7 + $0x30] sm:$0xff]
    %v1034 = vld [vmem:[#allocation7 + $0x38] sm:$0xff]
    %v1035 = vld [vmem:[#allocation7 + $0x40] sm:$0xff]
    %v1036 = vld [vmem:[#allocation7 + $0x48] sm:$0xff]
    %v1037 = vld [vmem:[#allocation7 + $0x50] sm:$0xff]
    %v1038 = vld [vmem:[#allocation7 + $0x58] sm:$0xff]
    %v1039 = vld [vmem:[#allocation7 + $0x60] sm:$0xff]
    %v1040 = vld [vmem:[#allocation7 + $0x68] sm:$0xff]
    %v1041 = vld [vmem:[#allocation7 + $0x70] sm:$0xff]
    %v1042 = vld [vmem:[#allocation7 + $0x78] sm:$0xff]
    %v1043 = vld [vmem:[#allocation7 + $0x80] sm:$0xff]
    %v1044 = vld [vmem:[#allocation7 + $0x88] sm:$0xff]
    %v1045 = vld [vmem:[#allocation7 + $0x90] sm:$0xff]
    %v1046 = vld [vmem:[#allocation7 + $0x98] sm:$0xff]
    %v1047 = vld [vmem:[#allocation7 + $0xa0] sm:$0xff]
    %v1048 = vld [vmem:[#allocation7 + $0xa8] sm:$0xff]
    %v1049 = vld [vmem:[#allocation7 + $0xb0] sm:$0xff]
    %v1050 = vld [vmem:[#allocation7 + $0xb8] sm:$0xff]
    %v1051 = vld [vmem:[#allocation7 + $0xc0] sm:$0xff]
    %v1052 = vld [vmem:[#allocation7 + $0xc8] sm:$0xff]
    %v1053 = vld [vmem:[#allocation7 + $0xd0] sm:$0xff]
    %v1054 = vld [vmem:[#allocation7 + $0xd8] sm:$0xff]
    %v1055 = vld [vmem:[#allocation7 + $0xe0] sm:$0xff]
    %v1056 = vld [vmem:[#allocation7 + $0xe8] sm:$0xff]
    %v1057 = vld [vmem:[#allocation7 + $0xf0] sm:$0xff]
    %v1058 = vld [vmem:[#allocation7 + $0xf8] sm:$0xff]
    %v1091 = vunpack.c.l.b16 %v1027
    %v1092 = vunpack.c.h.b16 %v1027
    %v1093 = vunpack.c.l.b16 %v1028
    %v1094 = vunpack.c.h.b16 %v1028
    %v1095 = vunpack.c.l.b16 %v1029
    %v1096 = vunpack.c.h.b16 %v1029
    %v1097 = vunpack.c.l.b16 %v1030
    %v1098 = vunpack.c.h.b16 %v1030
    %v1099 = vunpack.c.l.b16 %v1031
    %v1100 = vunpack.c.h.b16 %v1031
    %v1101 = vunpack.c.l.b16 %v1032
    %v1102 = vunpack.c.h.b16 %v1032
    %v1103 = vunpack.c.l.b16 %v1033
    %v1104 = vunpack.c.h.b16 %v1033
    %v1105 = vunpack.c.l.b16 %v1034
    %v1106 = vunpack.c.h.b16 %v1034
    %v1107 = vunpack.c.l.b16 %v1035
    %v1108 = vunpack.c.h.b16 %v1035
    %v1109 = vunpack.c.l.b16 %v1036
    %v1110 = vunpack.c.h.b16 %v1036
    %v1111 = vunpack.c.l.b16 %v1037
    %v1112 = vunpack.c.h.b16 %v1037
    %v1113 = vunpack.c.l.b16 %v1038
    %v1114 = vunpack.c.h.b16 %v1038
    %v1115 = vunpack.c.l.b16 %v1039
    %v1116 = vunpack.c.h.b16 %v1039
    %v1117 = vunpack.c.l.b16 %v1040
    %v1118 = vunpack.c.h.b16 %v1040
    %v1119 = vunpack.c.l.b16 %v1041
    %v1120 = vunpack.c.h.b16 %v1041
    %v1121 = vunpack.c.l.b16 %v1042
    %v1122 = vunpack.c.h.b16 %v1042
    %v1123 = vunpack.c.l.b16 %v1043
    %v1124 = vunpack.c.h.b16 %v1043
    %v1125 = vunpack.c.l.b16 %v1044
    %v1126 = vunpack.c.h.b16 %v1044
    %v1127 = vunpack.c.l.b16 %v1045
    %v1128 = vunpack.c.h.b16 %v1045
    %v1129 = vunpack.c.l.b16 %v1046
    %v1130 = vunpack.c.h.b16 %v1046
    %v1131 = vunpack.c.l.b16 %v1047
    %v1132 = vunpack.c.h.b16 %v1047
    %v1133 = vunpack.c.l.b16 %v1048
    %v1134 = vunpack.c.h.b16 %v1048
    %v1135 = vunpack.c.l.b16 %v1049
    %v1136 = vunpack.c.h.b16 %v1049
    %v1137 = vunpack.c.l.b16 %v1050
    %v1138 = vunpack.c.h.b16 %v1050
    %v1139 = vunpack.c.l.b16 %v1051
    %v1140 = vunpack.c.h.b16 %v1051
    %v1141 = vunpack.c.l.b16 %v1052
    %v1142 = vunpack.c.h.b16 %v1052
    %v1143 = vunpack.c.l.b16 %v1053
    %v1144 = vunpack.c.h.b16 %v1053
    %v1145 = vunpack.c.l.b16 %v1054
    %v1146 = vunpack.c.h.b16 %v1054
    %v1147 = vunpack.c.l.b16 %v1055
    %v1148 = vunpack.c.h.b16 %v1055
    %v1149 = vunpack.c.l.b16 %v1056
    %v1150 = vunpack.c.h.b16 %v1056
    %v1151 = vunpack.c.l.b16 %v1057
    %v1152 = vunpack.c.h.b16 %v1057
    %v1153 = vunpack.c.l.b16 %v1058
    %v1154 = vunpack.c.h.b16 %v1058
    %v1155 = vpack.c.b16 %v1093, %v1091
    %v1156 = vpack.c.b16 %v1094, %v1092
    %v1157 = vpack.c.b16 %v1097, %v1095
    %v1158 = vpack.c.b16 %v1098, %v1096
    %v1159 = vpack.c.b16 %v1101, %v1099
    %v1160 = vpack.c.b16 %v1102, %v1100
    %v1161 = vpack.c.b16 %v1105, %v1103
    %v1162 = vpack.c.b16 %v1106, %v1104
    %v1163 = vpack.c.b16 %v1109, %v1107
    %v1164 = vpack.c.b16 %v1110, %v1108
    %v1165 = vpack.c.b16 %v1113, %v1111
    %v1166 = vpack.c.b16 %v1114, %v1112
    %v1167 = vpack.c.b16 %v1117, %v1115
    %v1168 = vpack.c.b16 %v1118, %v1116
    %v1169 = vpack.c.b16 %v1121, %v1119
    %v1170 = vpack.c.b16 %v1122, %v1120
    %v1171 = vpack.c.b16 %v1125, %v1123
    %v1172 = vpack.c.b16 %v1126, %v1124
    %v1173 = vpack.c.b16 %v1129, %v1127
    %v1174 = vpack.c.b16 %v1130, %v1128
    %v1175 = vpack.c.b16 %v1133, %v1131
    %v1176 = vpack.c.b16 %v1134, %v1132
    %v1177 = vpack.c.b16 %v1137, %v1135
    %v1178 = vpack.c.b16 %v1138, %v1136
    %v1179 = vpack.c.b16 %v1141, %v1139
    %v1180 = vpack.c.b16 %v1142, %v1140
    %v1181 = vpack.c.b16 %v1145, %v1143
    %v1182 = vpack.c.b16 %v1146, %v1144
    %v1183 = vpack.c.b16 %v1149, %v1147
    %v1184 = vpack.c.b16 %v1150, %v1148
    %v1185 = vpack.c.b16 %v1153, %v1151
    %v1186 = vpack.c.b16 %v1154, %v1152
    %1219 = vmatprep.subr.bf16.mxu0 %v1156
    %1220 = vmatpush1.bf16.msra.mxu0 %v1155
    %1221 = vmatprep.subr.bf16.mxu0 %v1158
    %1222 = vmatpush1.bf16.msra.mxu0 %v1157
    %1223 = vmatprep.subr.bf16.mxu0 %v1160
    %1224 = vmatpush1.bf16.msra.mxu0 %v1159
    %1225 = vmatprep.subr.bf16.mxu0 %v1162
    %1226 = vmatpush1.bf16.msra.mxu0 %v1161
    %1227 = vmatprep.subr.bf16.mxu0 %v1164
    %1228 = vmatpush1.bf16.msra.mxu0 %v1163
    %1229 = vmatprep.subr.bf16.mxu0 %v1166
    %1230 = vmatpush1.bf16.msra.mxu0 %v1165
    %1231 = vmatprep.subr.bf16.mxu0 %v1168
    %1232 = vmatpush1.bf16.msra.mxu0 %v1167
    %1233 = vmatprep.subr.bf16.mxu0 %v1170
    %1234 = vmatpush1.bf16.msra.mxu0 %v1169
    %1235 = vmatprep.subr.bf16.mxu0 %v1172
    %1236 = vmatpush1.bf16.msra.mxu0 %v1171
    %1237 = vmatprep.subr.bf16.mxu0 %v1174
    %1238 = vmatpush1.bf16.msra.mxu0 %v1173
    %1239 = vmatprep.subr.bf16.mxu0 %v1176
    %1240 = vmatpush1.bf16.msra.mxu0 %v1175
    %1241 = vmatprep.subr.bf16.mxu0 %v1178
    %1242 = vmatpush1.bf16.msra.mxu0 %v1177
    %1243 = vmatprep.subr.bf16.mxu0 %v1180
    %1244 = vmatpush1.bf16.msra.mxu0 %v1179
    %1245 = vmatprep.subr.bf16.mxu0 %v1182
    %1246 = vmatpush1.bf16.msra.mxu0 %v1181
    %1247 = vmatprep.subr.bf16.mxu0 %v1184
    %1248 = vmatpush1.bf16.msra.mxu0 %v1183
    %1249 = vmatprep.subr.bf16.mxu0 %v1186
    %1250 = vmatpush1.bf16.msra.mxu0 %v1185
    %1251 = vmatprep.mubr.bf16.mxu0 %v1026
    %1252 = vmatmul.mubr.bf16.gmra.mrb[0].mxu0 %v1025
    %v1253 = vpop.f32.mrb[0].mxu0
    %v1254 = vadd.f32 0.0, %v1253
    %v1255 = vpop.f32.mrb[0].mxu0
    %v1256 = vadd.f32 0.0, %v1255
    %v1257 = vpop.f32.mrb[0].mxu0
    %v1258 = vadd.f32 0.0, %v1257
    %v1259 = vpop.f32.mrb[0].mxu0
    %v1260 = vadd.f32 0.0, %v1259
    %1261 = vdwg.mxu0
    %v1263 = vlaneseq
    %v1264 = vshrl.u32 %v1263, 7
    %v1265 = vsub.s32 0, %v1264
    %v1266 = vrot.slane %v1024, %v1265
    %v1267 = vlaneseq
    %v1268 = vshrl.u32 %v1267, 7
    %v1269 = vsub.s32 2, %v1268
    %v1270 = vrot.slane %v1024, %v1269
    %v1273 = vlaneseq
    %v1274 = vshrl.u32 %v1273, 7
    %v1275 = vsub.s32 0, %v1274
    %v1276 = vrot.slane %v1266, %v1275
    %v1277 = vlaneseq
    %v1278 = vshrl.u32 %v1277, 7
    %v1279 = vsub.s32 0, %v1278
    %v1280 = vrot.slane %v1270, %v1279
    %v1281 = vmul.f32 %v1254, %v1276
    %v1282 = vmul.f32 %v1256, %v1280
    %v1283 = vmul.f32 %v1258, %v1276
    %v1284 = vmul.f32 %v1260, %v1280
    %v1285 = vpack.c.bf16 %v1022, %v1020
    %v1286 = vpack.c.bf16 %v1023, %v1021
    %v1287 = vld [vmem:[#allocation8] sm:$0xff]
    %v1288 = vld [vmem:[#allocation8 + $0x8] sm:$0xff]
    %v1289 = vld [vmem:[#allocation8 + $0x10] sm:$0xff]
    %v1290 = vld [vmem:[#allocation8 + $0x18] sm:$0xff]
    %v1291 = vld [vmem:[#allocation8 + $0x20] sm:$0xff]
    %v1292 = vld [vmem:[#allocation8 + $0x28] sm:$0xff]
    %v1293 = vld [vmem:[#allocation8 + $0x30] sm:$0xff]
    %v1294 = vld [vmem:[#allocation8 + $0x38] sm:$0xff]
    %v1295 = vld [vmem:[#allocation8 + $0x40] sm:$0xff]
    %v1296 = vld [vmem:[#allocation8 + $0x48] sm:$0xff]
    %v1297 = vld [vmem:[#allocation8 + $0x50] sm:$0xff]
    %v1298 = vld [vmem:[#allocation8 + $0x58] sm:$0xff]
    %v1299 = vld [vmem:[#allocation8 + $0x60] sm:$0xff]
    %v1300 = vld [vmem:[#allocation8 + $0x68] sm:$0xff]
    %v1301 = vld [vmem:[#allocation8 + $0x70] sm:$0xff]
    %v1302 = vld [vmem:[#allocation8 + $0x78] sm:$0xff]
    %v1303 = vld [vmem:[#allocation8 + $0x80] sm:$0xff]
    %v1304 = vld [vmem:[#allocation8 + $0x88] sm:$0xff]
    %v1305 = vld [vmem:[#allocation8 + $0x90] sm:$0xff]
    %v1306 = vld [vmem:[#allocation8 + $0x98] sm:$0xff]
    %v1307 = vld [vmem:[#allocation8 + $0xa0] sm:$0xff]
    %v1308 = vld [vmem:[#allocation8 + $0xa8] sm:$0xff]
    %v1309 = vld [vmem:[#allocation8 + $0xb0] sm:$0xff]
    %v1310 = vld [vmem:[#allocation8 + $0xb8] sm:$0xff]
    %v1311 = vld [vmem:[#allocation8 + $0xc0] sm:$0xff]
    %v1312 = vld [vmem:[#allocation8 + $0xc8] sm:$0xff]
    %v1313 = vld [vmem:[#allocation8 + $0xd0] sm:$0xff]
    %v1314 = vld [vmem:[#allocation8 + $0xd8] sm:$0xff]
    %v1315 = vld [vmem:[#allocation8 + $0xe0] sm:$0xff]
    %v1316 = vld [vmem:[#allocation8 + $0xe8] sm:$0xff]
    %v1317 = vld [vmem:[#allocation8 + $0xf0] sm:$0xff]
    %v1318 = vld [vmem:[#allocation8 + $0xf8] sm:$0xff]
    %v1351 = vunpack.c.l.b16 %v1287
    %v1352 = vunpack.c.h.b16 %v1287
    %v1353 = vunpack.c.l.b16 %v1288
    %v1354 = vunpack.c.h.b16 %v1288
    %v1355 = vunpack.c.l.b16 %v1289
    %v1356 = vunpack.c.h.b16 %v1289
    %v1357 = vunpack.c.l.b16 %v1290
    %v1358 = vunpack.c.h.b16 %v1290
    %v1359 = vunpack.c.l.b16 %v1291
    %v1360 = vunpack.c.h.b16 %v1291
    %v1361 = vunpack.c.l.b16 %v1292
    %v1362 = vunpack.c.h.b16 %v1292
    %v1363 = vunpack.c.l.b16 %v1293
    %v1364 = vunpack.c.h.b16 %v1293
    %v1365 = vunpack.c.l.b16 %v1294
    %v1366 = vunpack.c.h.b16 %v1294
    %v1367 = vunpack.c.l.b16 %v1295
    %v1368 = vunpack.c.h.b16 %v1295
    %v1369 = vunpack.c.l.b16 %v1296
    %v1370 = vunpack.c.h.b16 %v1296
    %v1371 = vunpack.c.l.b16 %v1297
    %v1372 = vunpack.c.h.b16 %v1297
    %v1373 = vunpack.c.l.b16 %v1298
    %v1374 = vunpack.c.h.b16 %v1298
    %v1375 = vunpack.c.l.b16 %v1299
    %v1376 = vunpack.c.h.b16 %v1299
    %v1377 = vunpack.c.l.b16 %v1300
    %v1378 = vunpack.c.h.b16 %v1300
    %v1379 = vunpack.c.l.b16 %v1301
    %v1380 = vunpack.c.h.b16 %v1301
    %v1381 = vunpack.c.l.b16 %v1302
    %v1382 = vunpack.c.h.b16 %v1302
    %v1383 = vunpack.c.l.b16 %v1303
    %v1384 = vunpack.c.h.b16 %v1303
    %v1385 = vunpack.c.l.b16 %v1304
    %v1386 = vunpack.c.h.b16 %v1304
    %v1387 = vunpack.c.l.b16 %v1305
    %v1388 = vunpack.c.h.b16 %v1305
    %v1389 = vunpack.c.l.b16 %v1306
    %v1390 = vunpack.c.h.b16 %v1306
    %v1391 = vunpack.c.l.b16 %v1307
    %v1392 = vunpack.c.h.b16 %v1307
    %v1393 = vunpack.c.l.b16 %v1308
    %v1394 = vunpack.c.h.b16 %v1308
    %v1395 = vunpack.c.l.b16 %v1309
    %v1396 = vunpack.c.h.b16 %v1309
    %v1397 = vunpack.c.l.b16 %v1310
    %v1398 = vunpack.c.h.b16 %v1310
    %v1399 = vunpack.c.l.b16 %v1311
    %v1400 = vunpack.c.h.b16 %v1311
    %v1401 = vunpack.c.l.b16 %v1312
    %v1402 = vunpack.c.h.b16 %v1312
    %v1403 = vunpack.c.l.b16 %v1313
    %v1404 = vunpack.c.h.b16 %v1313
    %v1405 = vunpack.c.l.b16 %v1314
    %v1406 = vunpack.c.h.b16 %v1314
    %v1407 = vunpack.c.l.b16 %v1315
    %v1408 = vunpack.c.h.b16 %v1315
    %v1409 = vunpack.c.l.b16 %v1316
    %v1410 = vunpack.c.h.b16 %v1316
    %v1411 = vunpack.c.l.b16 %v1317
    %v1412 = vunpack.c.h.b16 %v1317
    %v1413 = vunpack.c.l.b16 %v1318
    %v1414 = vunpack.c.h.b16 %v1318
    %v1415 = vpack.c.b16 %v1353, %v1351
    %v1416 = vpack.c.b16 %v1354, %v1352
    %v1417 = vpack.c.b16 %v1357, %v1355
    %v1418 = vpack.c.b16 %v1358, %v1356
    %v1419 = vpack.c.b16 %v1361, %v1359
    %v1420 = vpack.c.b16 %v1362, %v1360
    %v1421 = vpack.c.b16 %v1365, %v1363
    %v1422 = vpack.c.b16 %v1366, %v1364
    %v1423 = vpack.c.b16 %v1369, %v1367
    %v1424 = vpack.c.b16 %v1370, %v1368
    %v1425 = vpack.c.b16 %v1373, %v1371
    %v1426 = vpack.c.b16 %v1374, %v1372
    %v1427 = vpack.c.b16 %v1377, %v1375
    %v1428 = vpack.c.b16 %v1378, %v1376
    %v1429 = vpack.c.b16 %v1381, %v1379
    %v1430 = vpack.c.b16 %v1382, %v1380
    %v1431 = vpack.c.b16 %v1385, %v1383
    %v1432 = vpack.c.b16 %v1386, %v1384
    %v1433 = vpack.c.b16 %v1389, %v1387
    %v1434 = vpack.c.b16 %v1390, %v1388
    %v1435 = vpack.c.b16 %v1393, %v1391
    %v1436 = vpack.c.b16 %v1394, %v1392
    %v1437 = vpack.c.b16 %v1397, %v1395
    %v1438 = vpack.c.b16 %v1398, %v1396
    %v1439 = vpack.c.b16 %v1401, %v1399
    %v1440 = vpack.c.b16 %v1402, %v1400
    %v1441 = vpack.c.b16 %v1405, %v1403
    %v1442 = vpack.c.b16 %v1406, %v1404
    %v1443 = vpack.c.b16 %v1409, %v1407
    %v1444 = vpack.c.b16 %v1410, %v1408
    %v1445 = vpack.c.b16 %v1413, %v1411
    %v1446 = vpack.c.b16 %v1414, %v1412
    %1479 = vmatprep.subr.bf16.mxu0 %v1416
    %1480 = vmatpush1.bf16.msra.mxu0 %v1415
    %1481 = vmatprep.subr.bf16.mxu0 %v1418
    %1482 = vmatpush1.bf16.msra.mxu0 %v1417
    %1483 = vmatprep.subr.bf16.mxu0 %v1420
    %1484 = vmatpush1.bf16.msra.mxu0 %v1419
    %1485 = vmatprep.subr.bf16.mxu0 %v1422
    %1486 = vmatpush1.bf16.msra.mxu0 %v1421
    %1487 = vmatprep.subr.bf16.mxu0 %v1424
    %1488 = vmatpush1.bf16.msra.mxu0 %v1423
    %1489 = vmatprep.subr.bf16.mxu0 %v1426
    %1490 = vmatpush1.bf16.msra.mxu0 %v1425
    %1491 = vmatprep.subr.bf16.mxu0 %v1428
    %1492 = vmatpush1.bf16.msra.mxu0 %v1427
    %1493 = vmatprep.subr.bf16.mxu0 %v1430
    %1494 = vmatpush1.bf16.msra.mxu0 %v1429
    %1495 = vmatprep.subr.bf16.mxu0 %v1432
    %1496 = vmatpush1.bf16.msra.mxu0 %v1431
    %1497 = vmatprep.subr.bf16.mxu0 %v1434
    %1498 = vmatpush1.bf16.msra.mxu0 %v1433
    %1499 = vmatprep.subr.bf16.mxu0 %v1436
    %1500 = vmatpush1.bf16.msra.mxu0 %v1435
    %1501 = vmatprep.subr.bf16.mxu0 %v1438
    %1502 = vmatpush1.bf16.msra.mxu0 %v1437
    %1503 = vmatprep.subr.bf16.mxu0 %v1440
    %1504 = vmatpush1.bf16.msra.mxu0 %v1439
    %1505 = vmatprep.subr.bf16.mxu0 %v1442
    %1506 = vmatpush1.bf16.msra.mxu0 %v1441
    %1507 = vmatprep.subr.bf16.mxu0 %v1444
    %1508 = vmatpush1.bf16.msra.mxu0 %v1443
    %1509 = vmatprep.subr.bf16.mxu0 %v1446
    %1510 = vmatpush1.bf16.msra.mxu0 %v1445
    %1511 = vmatprep.mubr.bf16.mxu0 %v1286
    %1512 = vmatmul.mubr.bf16.gmra.mrb[0].mxu0 %v1285
    %v1513 = vpop.f32.mrb[0].mxu0
    %v1514 = vadd.f32 0.0, %v1513
    %v1515 = vpop.f32.mrb[0].mxu0
    %v1516 = vadd.f32 0.0, %v1515
    %v1517 = vpop.f32.mrb[0].mxu0
    %v1518 = vadd.f32 0.0, %v1517
    %v1519 = vpop.f32.mrb[0].mxu0
    %v1520 = vadd.f32 0.0, %v1519
    %1521 = vdwg.mxu0
    %v1522 = vlaneseq
    %v1523 = vshrl.u32 %v1522, 7
    %v1524 = vsub.s32 1, %v1523
    %v1525 = vrot.slane %v1024, %v1524
    %v1526 = vlaneseq
    %v1527 = vshrl.u32 %v1526, 7
    %v1528 = vsub.s32 3, %v1527
    %v1529 = vrot.slane %v1024, %v1528
    %v1532 = vlaneseq
    %v1533 = vshrl.u32 %v1532, 7
    %v1534 = vsub.s32 1, %v1533
    %v1535 = vrot.slane %v1525, %v1534
    %v1536 = vlaneseq
    %v1537 = vshrl.u32 %v1536, 7
    %v1538 = vsub.s32 1, %v1537
    %v1539 = vrot.slane %v1529, %v1538
    %v1540 = vmul.f32 %v1514, %v1535
    %v1541 = vmul.f32 %v1516, %v1539
    %v1542 = vmul.f32 %v1518, %v1535
    %v1543 = vmul.f32 %v1520, %v1539
    %v1544 = vadd.f32 %v1281, %v1540
    %v1545 = vadd.f32 %v1282, %v1541
    %v1546 = vadd.f32 %v1283, %v1542
    %v1547 = vadd.f32 %v1284, %v1543
    %v1548 = vld [vmem:[%s9] sm:$0x3]
    %v1550 = vlaneseq
    %v1551 = vshrl.u32 %v1550, 7
    %v1552 = vsub.s32 0, %v1551
    %v1553 = vrot.slane %v1548, %v1552
    %v1554 = vlaneseq
    %v1555 = vshrl.u32 %v1554, 7
    %v1556 = vsub.s32 1, %v1555
    %v1557 = vrot.slane %v1548, %v1556
    %v1560 = vadd.f32 %v1544, %v1553
    %v1561 = vadd.f32 %v1545, %v1557
    %v1562 = vadd.f32 %v1546, %v1553
    %v1563 = vadd.f32 %v1547, %v1557
    %1564 = vst [vmem:[#allocation10] sm:$0xff] %v1560
    %1565 = vst [vmem:[#allocation10 + $0x8] sm:$0xff] %v1561
    %1566 = vst [vmem:[#allocation10 + $0x10] sm:$0xff] %v1562
    %1567 = vst [vmem:[#allocation10 + $0x18] sm:$0xff] %v1563
    // Predicated region
    $region58: #{tpu_custom_call.1} parent=1 // pred_check
      _
    $region59: #{tpu_custom_call.1} parent=1 // pred_check_branch
      %1569 = sbr.rel (0) target = $region61
    $region60: #{tpu_custom_call.1} parent=1 // pred_region
      %s1571 = ssub.s32 512, 512
      %1572 = vsyncadd [#allocation4], %s1571
      %s1573 = sshll.u32 [#allocation10], 4
      %s1574 = int_to_ptr.vmem [resolvable:$true] %s1573
      %1579 = dma.vmem_to_hbm [thread:$0]  %s1574, 512, %s10, [#allocation4], 256, 256, 16
    $region61: #{tpu_custom_call.1} parent=1 // pred_fallthru
      _
    // Predicated region
    $region62: #{tpu_custom_call.1} parent=1 // pred_check
      _
    $region63: #{tpu_custom_call.1} parent=1 // pred_check_branch
      %1581 = sbr.rel (0) target = $region65
    $region64: #{tpu_custom_call.1} parent=1 // pred_region
      %1582 = dma.done [#allocation4], 512
    $region65: #{tpu_custom_call.1} parent=1 // pred_fallthru
      _
    %1583 = vsyncpa [#allocation3], 1
    %1584 = vsyncpa [#allocation6], 1
    %1585 = vsyncpa [#allocation9], 1
    %1586 = vsyncpa [#allocation4], 1

// kernel: tpu_custom_call.1
$region0: #{tpu_custom_call.1}
  #allocation0 [shape = 'u32[]', space=smem, size = 0x4, offset = 0x4, fixed_abs, tag = 'smem constant byte address 0x4 - core index']
  #allocation1 [shape = 'u32[144,128]{1,0:T(1,128)}', space=vmem, size = 0x12000, scoped, tag = 'internal scratch']
  %s0 = inlined_call_operand.vmem [shape: f32[16,1], index: 0, kind: input, shape index: {}]
  %s1 = inlined_call_operand.vmem [shape: bf16[16,128], index: 1, kind: input, shape index: {}]
  %s2 = inlined_call_operand.hbm [shape: bf16[256,256], index: 2, kind: input, shape index: {}]
  %s3 = inlined_call_operand.hbm [shape: bf16[128,256], index: 3, kind: input, shape index: {}]
  %s4 = inlined_call_operand.vmem [shape: f32[1,256], index: 4, kind: input, shape index: {}]
  %s5 = inlined_call_operand.vmem [shape: f32[2,256], index: 5, kind: input, shape index: {}]
  %s6 = inlined_call_operand.hbm [shape: bf16[256,256], index: 6, kind: input, shape index: {}]
  %s7 = inlined_call_operand.hbm [shape: bf16[256,256], index: 7, kind: input, shape index: {}]
  %s8 = inlined_call_operand.vmem [shape: f32[2,256], index: 8, kind: input, shape index: {}]
  %s9 = inlined_call_operand.vmem [shape: f32[1,256], index: 9, kind: input, shape index: {}]
  %s10 = inlined_call_operand.hbm [shape: f32[16,256], index: 10, kind: output, shape index: {}]
  %s11 = sld [smem:[#allocation0]]
  $region66: #{tpu_custom_call.1} parent=0
    _
  %s13 = ssub.s32 1, %s11
  %s14 = scalar_select 0, %s13, %s11
  $region1: #{tpu_custom_call.1} parent=0
    #allocation2 [shape = 'u8[131072]{0}', space=vmem, size = 0x20000, scoped, tag = 'input window, operand 2, single buffered']
    #allocation3 [shape = 's32[1]{0}', space=sflag, size = 0x4, scoped, tag = 'scoped memory for tpu_custom_call.1']
    #allocation4 [shape = 's32[1]{0}', space=sflag, size = 0x4, scoped, tag = 'scoped memory for tpu_custom_call.1']
    #allocation5 [shape = 'u8[65536]{0}', space=vmem, size = 0x10000, scoped, tag = 'input window, operand 3, single buffered']
    #allocation6 [shape = 's32[1]{0}', space=sflag, size = 0x4, scoped, tag = 'scoped memory for tpu_custom_call.1']
    #allocation7 [shape = 'u8[131072]{0}', space=vmem, size = 0x20000, scoped, tag = 'input window, operand 6, single buffered']
    #allocation8 [shape = 'u8[131072]{0}', space=vmem, size = 0x20000, scoped, tag = 'input window, operand 7, single buffered']
    #allocation9 [shape = 's32[1]{0}', space=sflag, size = 0x4, scoped, tag = 'scoped memory for tpu_custom_call.1']
    #allocation10 [shape = 'u8[16384]{0}', space=vmem, size = 0x4000, scoped, tag = 'output window, operand 0, single buffered']
    %15 = vsyncpa [#allocation3], 0
    %16 = vsyncpa [#allocation6], 0
    %17 = vsyncpa [#allocation9], 0
    %18 = vsyncpa [#allocation4], 0
    // Predicated region
    $region2: #{tpu_custom_call.1} parent=1 // pred_check
      _
    $region3: #{tpu_custom_call.1} parent=1 // pred_check_branch
      %20 = sbr.rel (0) target = $region5
    $region4: #{tpu_custom_call.1} parent=1 // pred_region
      _
    $region5: #{tpu_custom_call.1} parent=1 // pred_fallthru
      _
    // Predicated region
    $region6: #{tpu_custom_call.1} parent=1 // pred_check
      _
    $region7: #{tpu_custom_call.1} parent=1 // pred_check_branch
      %22 = sbr.rel (0) target = $region9
    $region8: #{tpu_custom_call.1} parent=1 // pred_region
      _
    $region9: #{tpu_custom_call.1} parent=1 // pred_fallthru
      _
    // Predicated region
    $region10: #{tpu_custom_call.1} parent=1 // pred_check
      _
    $region11: #{tpu_custom_call.1} parent=1 // pred_check_branch
      %24 = sbr.rel (0) target = $region13
    $region12: #{tpu_custom_call.1} parent=1 // pred_region
      %s26 = ssub.s32 4096, 4096
      %27 = vsyncadd [#allocation3], %s26
      %s28 = sshll.u32 [#allocation2], 4
      %s29 = int_to_ptr.vmem [resolvable:$true] %s28
      %34 = dma.hbm_to_vmem [thread:$0]  %s2, 4096, %s29, [#allocation3], 128, 128, 8
    $region13: #{tpu_custom_call.1} parent=1 // pred_fallthru
      _
    // Predicated region
    $region14: #{tpu_custom_call.1} parent=1 // pred_check
      _
    $region15: #{tpu_custom_call.1} parent=1 // pred_check_branch
      %36 = sbr.rel (0) target = $region17
    $region16: #{tpu_custom_call.1} parent=1 // pred_region
      %s38 = ssub.s32 2048, 2048
      %39 = vsyncadd [#allocation6], %s38
      %s40 = sshll.u32 [#allocation5], 4
      %s41 = int_to_ptr.vmem [resolvable:$true] %s40
      %46 = dma.hbm_to_vmem [thread:$0]  %s3, 2048, %s41, [#allocation6], 128, 128, 8
    $region17: #{tpu_custom_call.1} parent=1 // pred_fallthru
      _
    // Predicated region
    $region18: #{tpu_custom_call.1} parent=1 // pred_check
      _
    $region19: #{tpu_custom_call.1} parent=1 // pred_check_branch
      %48 = sbr.rel (0) target = $region21
    $region20: #{tpu_custom_call.1} parent=1 // pred_region
      _
    $region21: #{tpu_custom_call.1} parent=1 // pred_fallthru
      _
    // Predicated region
    $region22: #{tpu_custom_call.1} parent=1 // pred_check
      _
    $region23: #{tpu_custom_call.1} parent=1 // pred_check_branch
      %50 = sbr.rel (0) target = $region25
    $region24: #{tpu_custom_call.1} parent=1 // pred_region
      _
    $region25: #{tpu_custom_call.1} parent=1 // pred_fallthru
      _
    // Predicated region
    $region26: #{tpu_custom_call.1} parent=1 // pred_check
      _
    $region27: #{tpu_custom_call.1} parent=1 // pred_check_branch
      %52 = sbr.rel (0) target = $region29
    $region28: #{tpu_custom_call.1} parent=1 // pred_region
      %s54 = ssub.s32 4096, 4096
      %55 = vsyncadd [#allocation6], %s54
      %s56 = sshll.u32 [#allocation7], 4
      %s57 = int_to_ptr.vmem [resolvable:$true] %s56
      %62 = dma.hbm_to_vmem [thread:$0]  %s6, 4096, %s57, [#allocation6], 128, 128, 8
    $region29: #{tpu_custom_call.1} parent=1 // pred_fallthru
      _
    // Predicated region
    $region30: #{tpu_custom_call.1} parent=1 // pred_check
      _
    $region31: #{tpu_custom_call.1} parent=1 // pred_check_branch
      %64 = sbr.rel (0) target = $region33
    $region32: #{tpu_custom_call.1} parent=1 // pred_region
      %s66 = ssub.s32 4096, 4096
      %67 = vsyncadd [#allocation9], %s66
      %s68 = sshll.u32 [#allocation8], 4
      %s69 = int_to_ptr.vmem [resolvable:$true] %s68
      %74 = dma.hbm_to_vmem [thread:$0]  %s7, 4096, %s69, [#allocation9], 128, 128, 8
    $region33: #{tpu_custom_call.1} parent=1 // pred_fallthru
      _
    // Predicated region
    $region34: #{tpu_custom_call.1} parent=1 // pred_check
      _
    $region35: #{tpu_custom_call.1} parent=1 // pred_check_branch
      %76 = sbr.rel (0) target = $region37
    $region36: #{tpu_custom_call.1} parent=1 // pred_region
      _
    $region37: #{tpu_custom_call.1} parent=1 // pred_fallthru
      _
    // Predicated region
    $region38: #{tpu_custom_call.1} parent=1 // pred_check
      _
    $region39: #{tpu_custom_call.1} parent=1 // pred_check_branch
      %78 = sbr.rel (0) target = $region41
    $region40: #{tpu_custom_call.1} parent=1 // pred_region
      _
    $region41: #{tpu_custom_call.1} parent=1 // pred_fallthru
      _
    // Predicated region
    $region42: #{tpu_custom_call.1} parent=1 // pred_check
      _
    $region43: #{tpu_custom_call.1} parent=1 // pred_check_branch
      %80 = sbr.rel (0) target = $region45
    $region44: #{tpu_custom_call.1} parent=1 // pred_region
      %81 = dma.done [#allocation3], 4096
    $region45: #{tpu_custom_call.1} parent=1 // pred_fallthru
      _
    // Predicated region
    $region46: #{tpu_custom_call.1} parent=1 // pred_check
      _
    $region47: #{tpu_custom_call.1} parent=1 // pred_check_branch
      %83 = sbr.rel (0) target = $region49
    $region48: #{tpu_custom_call.1} parent=1 // pred_region
      %84 = dma.done [#allocation6], 2048
    $region49: #{tpu_custom_call.1} parent=1 // pred_fallthru
      _
    // Predicated region
    $region50: #{tpu_custom_call.1} parent=1 // pred_check
      _
    $region51: #{tpu_custom_call.1} parent=1 // pred_check_branch
      %86 = sbr.rel (0) target = $region53
    $region52: #{tpu_custom_call.1} parent=1 // pred_region
      %87 = dma.done [#allocation6], 4096
    $region53: #{tpu_custom_call.1} parent=1 // pred_fallthru
      _
    // Predicated region
    $region54: #{tpu_custom_call.1} parent=1 // pred_check
      _
    $region55: #{tpu_custom_call.1} parent=1 // pred_check_branch
      %89 = sbr.rel (0) target = $region57
    $region56: #{tpu_custom_call.1} parent=1 // pred_region
      %90 = dma.done [#allocation9], 4096
    $region57: #{tpu_custom_call.1} parent=1 // pred_fallthru
      _
    %v92 = vlaneseq
    %v93 = vand.u32 %v92, 127
    %v94 = vcvt.s32.f32 %v93
    %v95 = vmul.f32 %v94, -0.071955785
    %v96 = vmul.f32 %v95, 1.442695
    %v97 = vpow.pop %v96
    %v98 = vld [vmem:[%s0] sm:$0xff]
    %v99 = vld [vmem:[%s0 + $0x8] sm:$0xff]
    %101 = vset.pattern.permute.xlu0 0
    %102 = vperm.xlu0 %101, %v98
    %v103 = vpop.permute.xlu0 %102
    %106 = vset.pattern.permute.xlu0 0
    %107 = vperm.xlu0 %106, %v99
    %v108 = vpop.permute.xlu0 %107
    %v110 = vmul.f32 %v103, %v97
    %v111 = vmul.f32 %v108, %v97
    %v112 = vand.u32 2147483647, %v110
    %vm113 = vcmp.le.f32.partialorder %v112, 0.7853982
    %vm114 = vcmp.lt.s32.totalorder %v110, 0
    %v115 = vand.u32 %v110, 2139095040
    %v116 = vshrl.u32 %v115, 23
    %v117 = vsub.s32 %v116, 127
    %v118 = vand.u32 2147483647, %v110
    %v119 = vand.u32 %v118, 8388607
    %v120 = vor.u32 %v119, 8388608
    %v121 = vsub.s32 0, %v120
    %v122 = vadd.s32 %v117, 1
    %vm123 = vcmp.gt.s32.totalorder %v122, 0
    %v124 = vsel %vm123, %v122, 0
    %v125 = vshrl.u32 %v124, 5
    %v126 = vand.u32 %v124, 31
    %v127 = vsub.s32 32, %v126
    %v128 = vshrl.u32 683565275, %v127
    %v129 = vshll.u32 683565275, %v126
    %v130 = vshrl.u32 2475754826, %v127
    %v131 = vor.u32 %v129, %v130
    %v132 = vshll.u32 2475754826, %v126
    %v133 = vshrl.u32 2131351028, %v127
    %v134 = vor.u32 %v132, %v133
    %v135 = vshll.u32 2131351028, %v126
    %v136 = vshrl.u32 2102212464, %v127
    %v137 = vor.u32 %v135, %v136
    %v138 = vshll.u32 2102212464, %v126
    %v139 = vshrl.u32 920167782, %v127
    %v140 = vor.u32 %v138, %v139
    %v141 = vshll.u32 920167782, %v126
    %v142 = vshrl.u32 1326507024, %v127
    %v143 = vor.u32 %v141, %v142
    %vm144 = vcmp.lt.s32.totalorder %v125, 1
    %vm145 = vcmp.lt.s32.totalorder %v125, 2
    %vm146 = vcmp.lt.s32.totalorder %v125, 3
    %vm147 = vcmp.lt.s32.totalorder %v125, 4
    %v148 = vsel %vm144, %v128, %v131
    %v149 = vsel %vm147, %v137, 2102212464
    %v150 = vsel %vm146, %v134, %v149
    %v151 = vsel %vm145, %v148, %v150
    %v152 = vsel %vm144, %v131, %v134
    %v153 = vsel %vm147, %v140, 920167782
    %v154 = vsel %vm146, %v137, %v153
    %v155 = vsel %vm145, %v152, %v154
    %v156 = vsel %vm144, %v134, %v137
    %v157 = vsel %vm147, %v143, 1326507024
    %v158 = vsel %vm146, %v140, %v157
    %v159 = vsel %vm145, %v156, %v158
    %v160 = vshll.u32 %v120, 8
    %v161 = vmul.u32.u64.compose %v160, %v159
    %v162 = vextract.low.u32 %v161
    %v163 = vextract.high.u32 %v161
    %v164 = vmul.u32.u64.compose %v160, %v155
    %v165 = vextract.low.u32 %v164
    %v166 = vextract.high.u32 %v164
    %v167 = vmul.u32 %v160, %v151
    %v168 = vadd.s32 %v163, %v165
    %vm169 = vc.u32 %v163, %v165
    %v170 = vadd.s32 %v166, 1
    %v171 = vsel %vm169, %v170, %v166
    %v172 = vadd.s32 %v167, %v171
    %v173 = vadd.s32 %v172, 536870912
    %v174 = vshrl.u32 %v173, 30
    %v175 = vshll.u32 %v174, 30
    %v176 = vsub.s32 %v172, %v175
    %vm177 = vcmp.lt.s32.totalorder %v176, 0
    %v178 = vsub.s32 0, %v176
    %v179 = vsel %vm177, %v178, %v176
    %v180 = vclz %v179
    %v181 = vsub.s32 %v180, 2
    %vm182 = vcmp.gt.s32.totalorder 0, %v181
    %v183 = vsel %vm182, 0, %v181
    %v184 = vsub.s32 32, %v183
    %v185 = vshll.u32 %v176, %v183
    %v186 = vshrl.u32 %v168, %v184
    %v187 = vor.u32 %v185, %v186
    %v188 = vsub.s32 4294967266, %v183
    %v189 = vadd.s32 %v188, 127
    %v190 = vshll.u32 %v189, 23
    %v191 = vor.u32 4788187, %v190
    %v192 = vand.u32 2147483647, %v191
    %v194 = vcvt.s32.f32 %v187
    %v195 = vmul.f32 %v194, %v192
    %v196 = vxor.u32 %v195, 2147483648
    %v197 = vsel %vm114, %v196, %v195
    %v198 = vsub.s32 4, %v174
    %v199 = vsel %vm114, %v198, %v174
    %v200 = vsel %vm113, %v110, %v197
    %v201 = vsel %vm113, 0, %v199
    %v202 = vcosq.f32.pop %v200
    %v203 = vsinq.f32.pop %v200
    %vm204 = vweird.f32 %v110
    %v205 = vand.u32 %v201, 3
    %vm206 = vcmp.lt.s32.totalorder %v205, 2
    %vm207 = vcmp.eq.s32.totalorder %v205, 0
    %v208 = vxor.u32 %v203, 2147483648
    %v209 = vsel %vm207, %v202, %v208
    %vm210 = vcmp.eq.s32.totalorder %v205, 2
    %v211 = vxor.u32 %v202, 2147483648
    %v212 = vsel %vm210, %v211, %v203
    %v213 = vsel %vm206, %v209, %v212
    %v214 = vsel %vm204, nan, %v213
    %v215 = vand.u32 2147483647, %v111
    %vm216 = vcmp.le.f32.partialorder %v215, 0.7853982
    %vm217 = vcmp.lt.s32.totalorder %v111, 0
    %v218 = vand.u32 %v111, 2139095040
    %v219 = vshrl.u32 %v218, 23
    %v220 = vsub.s32 %v219, 127
    %v221 = vand.u32 2147483647, %v111
    %v222 = vand.u32 %v221, 8388607
    %v223 = vor.u32 %v222, 8388608
    %v224 = vsub.s32 0, %v223
    %v225 = vadd.s32 %v220, 1
    %vm226 = vcmp.gt.s32.totalorder %v225, 0
    %v227 = vsel %vm226, %v225, 0
    %v228 = vshrl.u32 %v227, 5
    %v229 = vand.u32 %v227, 31
    %v230 = vsub.s32 32, %v229
    %v231 = vshrl.u32 683565275, %v230
    %v232 = vshll.u32 683565275, %v229
    %v233 = vshrl.u32 2475754826, %v230
    %v234 = vor.u32 %v232, %v233
    %v235 = vshll.u32 2475754826, %v229
    %v236 = vshrl.u32 2131351028, %v230
    %v237 = vor.u32 %v235, %v236
    %v238 = vshll.u32 2131351028, %v229
    %v239 = vshrl.u32 2102212464, %v230
    %v240 = vor.u32 %v238, %v239
    %v241 = vshll.u32 2102212464, %v229
    %v242 = vshrl.u32 920167782, %v230
    %v243 = vor.u32 %v241, %v242
    %v244 = vshll.u32 920167782, %v229
    %v245 = vshrl.u32 1326507024, %v230
    %v246 = vor.u32 %v244, %v245
    %vm247 = vcmp.lt.s32.totalorder %v228, 1
    %vm248 = vcmp.lt.s32.totalorder %v228, 2
    %vm249 = vcmp.lt.s32.totalorder %v228, 3
    %vm250 = vcmp.lt.s32.totalorder %v228, 4
    %v251 = vsel %vm247, %v231, %v234
    %v252 = vsel %vm250, %v240, 2102212464
    %v253 = vsel %vm249, %v237, %v252
    %v254 = vsel %vm248, %v251, %v253
    %v255 = vsel %vm247, %v234, %v237
    %v256 = vsel %vm250, %v243, 920167782
    %v257 = vsel %vm249, %v240, %v256
    %v258 = vsel %vm248, %v255, %v257
    %v259 = vsel %vm247, %v237, %v240
    %v260 = vsel %vm250, %v246, 1326507024
    %v261 = vsel %vm249, %v243, %v260
    %v262 = vsel %vm248, %v259, %v261
    %v263 = vshll.u32 %v223, 8
    %v264 = vmul.u32.u64.compose %v263, %v262
    %v265 = vextract.low.u32 %v264
    %v266 = vextract.high.u32 %v264
    %v267 = vmul.u32.u64.compose %v263, %v258
    %v268 = vextract.low.u32 %v267
    %v269 = vextract.high.u32 %v267
    %v270 = vmul.u32 %v263, %v254
    %v271 = vadd.s32 %v266, %v268
    %vm272 = vc.u32 %v266, %v268
    %v273 = vadd.s32 %v269, 1
    %v274 = vsel %vm272, %v273, %v269
    %v275 = vadd.s32 %v270, %v274
    %v276 = vadd.s32 %v275, 536870912
    %v277 = vshrl.u32 %v276, 30
    %v278 = vshll.u32 %v277, 30
    %v279 = vsub.s32 %v275, %v278
    %vm280 = vcmp.lt.s32.totalorder %v279, 0
    %v281 = vsub.s32 0, %v279
    %v282 = vsel %vm280, %v281, %v279
    %v283 = vclz %v282
    %v284 = vsub.s32 %v283, 2
    %vm285 = vcmp.gt.s32.totalorder 0, %v284
    %v286 = vsel %vm285, 0, %v284
    %v287 = vsub.s32 32, %v286
    %v288 = vshll.u32 %v279, %v286
    %v289 = vshrl.u32 %v271, %v287
    %v290 = vor.u32 %v288, %v289
    %v291 = vsub.s32 4294967266, %v286
    %v292 = vadd.s32 %v291, 127
    %v293 = vshll.u32 %v292, 23
    %v294 = vor.u32 4788187, %v293
    %v295 = vand.u32 2147483647, %v294
    %v297 = vcvt.s32.f32 %v290
    %v298 = vmul.f32 %v297, %v295
    %v299 = vxor.u32 %v298, 2147483648
    %v300 = vsel %vm217, %v299, %v298
    %v301 = vsub.s32 4, %v277
    %v302 = vsel %vm217, %v301, %v277
    %v303 = vsel %vm216, %v111, %v300
    %v304 = vsel %vm216, 0, %v302
    %v305 = vcosq.f32.pop %v303
    %v306 = vsinq.f32.pop %v303
    %vm307 = vweird.f32 %v111
    %v308 = vand.u32 %v304, 3
    %vm309 = vcmp.lt.s32.totalorder %v308, 2
    %vm310 = vcmp.eq.s32.totalorder %v308, 0
    %v311 = vxor.u32 %v306, 2147483648
    %v312 = vsel %vm310, %v305, %v311
    %vm313 = vcmp.eq.s32.totalorder %v308, 2
    %v314 = vxor.u32 %v305, 2147483648
    %v315 = vsel %vm313, %v314, %v306
    %v316 = vsel %vm309, %v312, %v315
    %v317 = vsel %vm307, nan, %v316
    %v318 = vand.u32 2147483647, %v110
    %vm319 = vcmp.le.f32.partialorder %v318, 0.7853982
    %vm320 = vcmp.lt.s32.totalorder %v110, 0
    %v321 = vand.u32 %v110, 2139095040
    %v322 = vshrl.u32 %v321, 23
    %v323 = vsub.s32 %v322, 127
    %v324 = vand.u32 2147483647, %v110
    %v325 = vand.u32 %v324, 8388607
    %v326 = vor.u32 %v325, 8388608
    %v327 = vsub.s32 0, %v326
    %v328 = vadd.s32 %v323, 1
    %vm329 = vcmp.gt.s32.totalorder %v328, 0
    %v330 = vsel %vm329, %v328, 0
    %v331 = vshrl.u32 %v330, 5
    %v332 = vand.u32 %v330, 31
    %v333 = vsub.s32 32, %v332
    %v334 = vshrl.u32 683565275, %v333
    %v335 = vshll.u32 683565275, %v332
    %v336 = vshrl.u32 2475754826, %v333
    %v337 = vor.u32 %v335, %v336
    %v338 = vshll.u32 2475754826, %v332
    %v339 = vshrl.u32 2131351028, %v333
    %v340 = vor.u32 %v338, %v339
    %v341 = vshll.u32 2131351028, %v332
    %v342 = vshrl.u32 2102212464, %v333
    %v343 = vor.u32 %v341, %v342
    %v344 = vshll.u32 2102212464, %v332
    %v345 = vshrl.u32 920167782, %v333
    %v346 = vor.u32 %v344, %v345
    %v347 = vshll.u32 920167782, %v332
    %v348 = vshrl.u32 1326507024, %v333
    %v349 = vor.u32 %v347, %v348
    %vm350 = vcmp.lt.s32.totalorder %v331, 1
    %vm351 = vcmp.lt.s32.totalorder %v331, 2
    %vm352 = vcmp.lt.s32.totalorder %v331, 3
    %vm353 = vcmp.lt.s32.totalorder %v331, 4
    %v354 = vsel %vm350, %v334, %v337
    %v355 = vsel %vm353, %v343, 2102212464
    %v356 = vsel %vm352, %v340, %v355
    %v357 = vsel %vm351, %v354, %v356
    %v358 = vsel %vm350, %v337, %v340
    %v359 = vsel %vm353, %v346, 920167782
    %v360 = vsel %vm352, %v343, %v359
    %v361 = vsel %vm351, %v358, %v360
    %v362 = vsel %vm350, %v340, %v343
    %v363 = vsel %vm353, %v349, 1326507024
    %v364 = vsel %vm352, %v346, %v363
    %v365 = vsel %vm351, %v362, %v364
    %v366 = vshll.u32 %v326, 8
    %v367 = vmul.u32.u64.compose %v366, %v365
    %v368 = vextract.low.u32 %v367
    %v369 = vextract.high.u32 %v367
    %v370 = vmul.u32.u64.compose %v366, %v361
    %v371 = vextract.low.u32 %v370
    %v372 = vextract.high.u32 %v370
    %v373 = vmul.u32 %v366, %v357
    %v374 = vadd.s32 %v369, %v371
    %vm375 = vc.u32 %v369, %v371
    %v376 = vadd.s32 %v372, 1
    %v377 = vsel %vm375, %v376, %v372
    %v378 = vadd.s32 %v373, %v377
    %v379 = vadd.s32 %v378, 536870912
    %v380 = vshrl.u32 %v379, 30
    %v381 = vshll.u32 %v380, 30
    %v382 = vsub.s32 %v378, %v381
    %vm383 = vcmp.lt.s32.totalorder %v382, 0
    %v384 = vsub.s32 0, %v382
    %v385 = vsel %vm383, %v384, %v382
    %v386 = vclz %v385
    %v387 = vsub.s32 %v386, 2
    %vm388 = vcmp.gt.s32.totalorder 0, %v387
    %v389 = vsel %vm388, 0, %v387
    %v390 = vsub.s32 32, %v389
    %v391 = vshll.u32 %v382, %v389
    %v392 = vshrl.u32 %v374, %v390
    %v393 = vor.u32 %v391, %v392
    %v394 = vsub.s32 4294967266, %v389
    %v395 = vadd.s32 %v394, 127
    %v396 = vshll.u32 %v395, 23
    %v397 = vor.u32 4788187, %v396
    %v398 = vand.u32 2147483647, %v397
    %v400 = vcvt.s32.f32 %v393
    %v401 = vmul.f32 %v400, %v398
    %v402 = vxor.u32 %v401, 2147483648
    %v403 = vsel %vm320, %v402, %v401
    %v404 = vsub.s32 4, %v380
    %v405 = vsel %vm320, %v404, %v380
    %v406 = vsel %vm319, %v110, %v403
    %v407 = vsel %vm319, 0, %v405
    %v408 = vcosq.f32.pop %v406
    %v409 = vsinq.f32.pop %v406
    %vm410 = vweird.f32 %v110
    %v411 = vadd.s32 %v407, 3
    %v412 = vand.u32 %v411, 3
    %vm413 = vcmp.lt.s32.totalorder %v412, 2
    %vm414 = vcmp.eq.s32.totalorder %v412, 0
    %v415 = vxor.u32 %v409, 2147483648
    %v416 = vsel %vm414, %v408, %v415
    %vm417 = vcmp.eq.s32.totalorder %v412, 2
    %v418 = vxor.u32 %v408, 2147483648
    %v419 = vsel %vm417, %v418, %v409
    %v420 = vsel %vm413, %v416, %v419
    %v421 = vsel %vm410, nan, %v420
    %v422 = vand.u32 2147483647, %v111
    %vm423 = vcmp.le.f32.partialorder %v422, 0.7853982
    %vm424 = vcmp.lt.s32.totalorder %v111, 0
    %v425 = vand.u32 %v111, 2139095040
    %v426 = vshrl.u32 %v425, 23
    %v427 = vsub.s32 %v426, 127
    %v428 = vand.u32 2147483647, %v111
    %v429 = vand.u32 %v428, 8388607
    %v430 = vor.u32 %v429, 8388608
    %v431 = vsub.s32 0, %v430
    %v432 = vadd.s32 %v427, 1
    %vm433 = vcmp.gt.s32.totalorder %v432, 0
    %v434 = vsel %vm433, %v432, 0
    %v435 = vshrl.u32 %v434, 5
    %v436 = vand.u32 %v434, 31
    %v437 = vsub.s32 32, %v436
    %v438 = vshrl.u32 683565275, %v437
    %v439 = vshll.u32 683565275, %v436
    %v440 = vshrl.u32 2475754826, %v437
    %v441 = vor.u32 %v439, %v440
    %v442 = vshll.u32 2475754826, %v436
    %v443 = vshrl.u32 2131351028, %v437
    %v444 = vor.u32 %v442, %v443
    %v445 = vshll.u32 2131351028, %v436
    %v446 = vshrl.u32 2102212464, %v437
    %v447 = vor.u32 %v445, %v446
    %v448 = vshll.u32 2102212464, %v436
    %v449 = vshrl.u32 920167782, %v437
    %v450 = vor.u32 %v448, %v449
    %v451 = vshll.u32 920167782, %v436
    %v452 = vshrl.u32 1326507024, %v437
    %v453 = vor.u32 %v451, %v452
    %vm454 = vcmp.lt.s32.totalorder %v435, 1
    %vm455 = vcmp.lt.s32.totalorder %v435, 2
    %vm456 = vcmp.lt.s32.totalorder %v435, 3
    %vm457 = vcmp.lt.s32.totalorder %v435, 4
    %v458 = vsel %vm454, %v438, %v441
    %v459 = vsel %vm457, %v447, 2102212464
    %v460 = vsel %vm456, %v444, %v459
    %v461 = vsel %vm455, %v458, %v460
    %v462 = vsel %vm454, %v441, %v444
    %v463 = vsel %vm457, %v450, 920167782
    %v464 = vsel %vm456, %v447, %v463
    %v465 = vsel %vm455, %v462, %v464
    %v466 = vsel %vm454, %v444, %v447
    %v467 = vsel %vm457, %v453, 1326507024
    %v468 = vsel %vm456, %v450, %v467
    %v469 = vsel %vm455, %v466, %v468
    %v470 = vshll.u32 %v430, 8
    %v471 = vmul.u32.u64.compose %v470, %v469
    %v472 = vextract.low.u32 %v471
    %v473 = vextract.high.u32 %v471
    %v474 = vmul.u32.u64.compose %v470, %v465
    %v475 = vextract.low.u32 %v474
    %v476 = vextract.high.u32 %v474
    %v477 = vmul.u32 %v470, %v461
    %v478 = vadd.s32 %v473, %v475
    %vm479 = vc.u32 %v473, %v475
    %v480 = vadd.s32 %v476, 1
    %v481 = vsel %vm479, %v480, %v476
    %v482 = vadd.s32 %v477, %v481
    %v483 = vadd.s32 %v482, 536870912
    %v484 = vshrl.u32 %v483, 30
    %v485 = vshll.u32 %v484, 30
    %v486 = vsub.s32 %v482, %v485
    %vm487 = vcmp.lt.s32.totalorder %v486, 0
    %v488 = vsub.s32 0, %v486
    %v489 = vsel %vm487, %v488, %v486
    %v490 = vclz %v489
    %v491 = vsub.s32 %v490, 2
    %vm492 = vcmp.gt.s32.totalorder 0, %v491
    %v493 = vsel %vm492, 0, %v491
    %v494 = vsub.s32 32, %v493
    %v495 = vshll.u32 %v486, %v493
    %v496 = vshrl.u32 %v478, %v494
    %v497 = vor.u32 %v495, %v496
    %v498 = vsub.s32 4294967266, %v493
    %v499 = vadd.s32 %v498, 127
    %v500 = vshll.u32 %v499, 23
    %v501 = vor.u32 4788187, %v500
    %v502 = vand.u32 2147483647, %v501
    %v504 = vcvt.s32.f32 %v497
    %v505 = vmul.f32 %v504, %v502
    %v506 = vxor.u32 %v505, 2147483648
    %v507 = vsel %vm424, %v506, %v505
    %v508 = vsub.s32 4, %v484
    %v509 = vsel %vm424, %v508, %v484
    %v510 = vsel %vm423, %v111, %v507
    %v511 = vsel %vm423, 0, %v509
    %v512 = vcosq.f32.pop %v510
    %v513 = vsinq.f32.pop %v510
    %vm514 = vweird.f32 %v111
    %v515 = vadd.s32 %v511, 3
    %v516 = vand.u32 %v515, 3
    %vm517 = vcmp.lt.s32.totalorder %v516, 2
    %vm518 = vcmp.eq.s32.totalorder %v516, 0
    %v519 = vxor.u32 %v513, 2147483648
    %v520 = vsel %vm518, %v512, %v519
    %vm521 = vcmp.eq.s32.totalorder %v516, 2
    %v522 = vxor.u32 %v512, 2147483648
    %v523 = vsel %vm521, %v522, %v513
    %v524 = vsel %vm517, %v520, %v523
    %v525 = vsel %vm514, nan, %v524
    %v526 = vpack.c.bf16 %v317, %v214
    %v527 = vpack.c.bf16 %v525, %v421
    %v528 = vld [vmem:[%s5] sm:$0xf]
    %v529 = vld [vmem:[#allocation2] sm:$0xff]
    %v530 = vld [vmem:[#allocation2 + $0x8] sm:$0xff]
    %v531 = vld [vmem:[#allocation2 + $0x10] sm:$0xff]
    %v532 = vld [vmem:[#allocation2 + $0x18] sm:$0xff]
    %v533 = vld [vmem:[#allocation2 + $0x20] sm:$0xff]
    %v534 = vld [vmem:[#allocation2 + $0x28] sm:$0xff]
    %v535 = vld [vmem:[#allocation2 + $0x30] sm:$0xff]
    %v536 = vld [vmem:[#allocation2 + $0x38] sm:$0xff]
    %v537 = vld [vmem:[#allocation2 + $0x40] sm:$0xff]
    %v538 = vld [vmem:[#allocation2 + $0x48] sm:$0xff]
    %v539 = vld [vmem:[#allocation2 + $0x50] sm:$0xff]
    %v540 = vld [vmem:[#allocation2 + $0x58] sm:$0xff]
    %v541 = vld [vmem:[#allocation2 + $0x60] sm:$0xff]
    %v542 = vld [vmem:[#allocation2 + $0x68] sm:$0xff]
    %v543 = vld [vmem:[#allocation2 + $0x70] sm:$0xff]
    %v544 = vld [vmem:[#allocation2 + $0x78] sm:$0xff]
    %v545 = vld [vmem:[#allocation2 + $0x80] sm:$0xff]
    %v546 = vld [vmem:[#allocation2 + $0x88] sm:$0xff]
    %v547 = vld [vmem:[#allocation2 + $0x90] sm:$0xff]
    %v548 = vld [vmem:[#allocation2 + $0x98] sm:$0xff]
    %v549 = vld [vmem:[#allocation2 + $0xa0] sm:$0xff]
    %v550 = vld [vmem:[#allocation2 + $0xa8] sm:$0xff]
    %v551 = vld [vmem:[#allocation2 + $0xb0] sm:$0xff]
    %v552 = vld [vmem:[#allocation2 + $0xb8] sm:$0xff]
    %v553 = vld [vmem:[#allocation2 + $0xc0] sm:$0xff]
    %v554 = vld [vmem:[#allocation2 + $0xc8] sm:$0xff]
    %v555 = vld [vmem:[#allocation2 + $0xd0] sm:$0xff]
    %v556 = vld [vmem:[#allocation2 + $0xd8] sm:$0xff]
    %v557 = vld [vmem:[#allocation2 + $0xe0] sm:$0xff]
    %v558 = vld [vmem:[#allocation2 + $0xe8] sm:$0xff]
    %v559 = vld [vmem:[#allocation2 + $0xf0] sm:$0xff]
    %v560 = vld [vmem:[#allocation2 + $0xf8] sm:$0xff]
    %v562 = vlaneseq
    %v563 = vshrl.u32 %v562, 7
    %v564 = vsub.s32 0, %v563
    %v565 = vrot.slane %v528, %v564
    %v566 = vlaneseq
    %v567 = vshrl.u32 %v566, 7
    %v568 = vsub.s32 2, %v567
    %v569 = vrot.slane %v528, %v568
    %v572 = vlaneseq
    %v573 = vshrl.u32 %v572, 7
    %v574 = vsub.s32 0, %v573
    %v575 = vrot.slane %v565, %v574
    %v576 = vlaneseq
    %v577 = vshrl.u32 %v576, 7
    %v578 = vsub.s32 0, %v577
    %v579 = vrot.slane %v569, %v578
    %v612 = vunpack.c.l.b16 %v529
    %v613 = vunpack.c.h.b16 %v529
    %v614 = vunpack.c.l.b16 %v530
    %v615 = vunpack.c.h.b16 %v530
    %v616 = vunpack.c.l.b16 %v531
    %v617 = vunpack.c.h.b16 %v531
    %v618 = vunpack.c.l.b16 %v532
    %v619 = vunpack.c.h.b16 %v532
    %v620 = vunpack.c.l.b16 %v533
    %v621 = vunpack.c.h.b16 %v533
    %v622 = vunpack.c.l.b16 %v534
    %v623 = vunpack.c.h.b16 %v534
    %v624 = vunpack.c.l.b16 %v535
    %v625 = vunpack.c.h.b16 %v535
    %v626 = vunpack.c.l.b16 %v536
    %v627 = vunpack.c.h.b16 %v536
    %v628 = vunpack.c.l.b16 %v537
    %v629 = vunpack.c.h.b16 %v537
    %v630 = vunpack.c.l.b16 %v538
    %v631 = vunpack.c.h.b16 %v538
    %v632 = vunpack.c.l.b16 %v539
    %v633 = vunpack.c.h.b16 %v539
    %v634 = vunpack.c.l.b16 %v540
    %v635 = vunpack.c.h.b16 %v540
    %v636 = vunpack.c.l.b16 %v541
    %v637 = vunpack.c.h.b16 %v541
    %v638 = vunpack.c.l.b16 %v542
    %v639 = vunpack.c.h.b16 %v542
    %v640 = vunpack.c.l.b16 %v543
    %v641 = vunpack.c.h.b16 %v543
    %v642 = vunpack.c.l.b16 %v544
    %v643 = vunpack.c.h.b16 %v544
    %v644 = vunpack.c.l.b16 %v545
    %v645 = vunpack.c.h.b16 %v545
    %v646 = vunpack.c.l.b16 %v546
    %v647 = vunpack.c.h.b16 %v546
    %v648 = vunpack.c.l.b16 %v547
    %v649 = vunpack.c.h.b16 %v547
    %v650 = vunpack.c.l.b16 %v548
    %v651 = vunpack.c.h.b16 %v548
    %v652 = vunpack.c.l.b16 %v549
    %v653 = vunpack.c.h.b16 %v549
    %v654 = vunpack.c.l.b16 %v550
    %v655 = vunpack.c.h.b16 %v550
    %v656 = vunpack.c.l.b16 %v551
    %v657 = vunpack.c.h.b16 %v551
    %v658 = vunpack.c.l.b16 %v552
    %v659 = vunpack.c.h.b16 %v552
    %v660 = vunpack.c.l.b16 %v553
    %v661 = vunpack.c.h.b16 %v553
    %v662 = vunpack.c.l.b16 %v554
    %v663 = vunpack.c.h.b16 %v554
    %v664 = vunpack.c.l.b16 %v555
    %v665 = vunpack.c.h.b16 %v555
    %v666 = vunpack.c.l.b16 %v556
    %v667 = vunpack.c.h.b16 %v556
    %v668 = vunpack.c.l.b16 %v557
    %v669 = vunpack.c.h.b16 %v557
    %v670 = vunpack.c.l.b16 %v558
    %v671 = vunpack.c.h.b16 %v558
    %v672 = vunpack.c.l.b16 %v559
    %v673 = vunpack.c.h.b16 %v559
    %v674 = vunpack.c.l.b16 %v560
    %v675 = vunpack.c.h.b16 %v560
    %v676 = vpack.c.b16 %v614, %v612
    %v677 = vpack.c.b16 %v615, %v613
    %v678 = vpack.c.b16 %v618, %v616
    %v679 = vpack.c.b16 %v619, %v617
    %v680 = vpack.c.b16 %v622, %v620
    %v681 = vpack.c.b16 %v623, %v621
    %v682 = vpack.c.b16 %v626, %v624
    %v683 = vpack.c.b16 %v627, %v625
    %v684 = vpack.c.b16 %v630, %v628
    %v685 = vpack.c.b16 %v631, %v629
    %v686 = vpack.c.b16 %v634, %v632
    %v687 = vpack.c.b16 %v635, %v633
    %v688 = vpack.c.b16 %v638, %v636
    %v689 = vpack.c.b16 %v639, %v637
    %v690 = vpack.c.b16 %v642, %v640
    %v691 = vpack.c.b16 %v643, %v641
    %v692 = vpack.c.b16 %v646, %v644
    %v693 = vpack.c.b16 %v647, %v645
    %v694 = vpack.c.b16 %v650, %v648
    %v695 = vpack.c.b16 %v651, %v649
    %v696 = vpack.c.b16 %v654, %v652
    %v697 = vpack.c.b16 %v655, %v653
    %v698 = vpack.c.b16 %v658, %v656
    %v699 = vpack.c.b16 %v659, %v657
    %v700 = vpack.c.b16 %v662, %v660
    %v701 = vpack.c.b16 %v663, %v661
    %v702 = vpack.c.b16 %v666, %v664
    %v703 = vpack.c.b16 %v667, %v665
    %v704 = vpack.c.b16 %v670, %v668
    %v705 = vpack.c.b16 %v671, %v669
    %v706 = vpack.c.b16 %v674, %v672
    %v707 = vpack.c.b16 %v675, %v673
    %740 = vmatprep.subr.bf16.mxu0 %v677
    %741 = vmatpush1.bf16.msra.mxu0 %v676
    %742 = vmatprep.subr.bf16.mxu0 %v679
    %743 = vmatpush1.bf16.msra.mxu0 %v678
    %744 = vmatprep.subr.bf16.mxu0 %v681
    %745 = vmatpush1.bf16.msra.mxu0 %v680
    %746 = vmatprep.subr.bf16.mxu0 %v683
    %747 = vmatpush1.bf16.msra.mxu0 %v682
    %748 = vmatprep.subr.bf16.mxu0 %v685
    %749 = vmatpush1.bf16.msra.mxu0 %v684
    %750 = vmatprep.subr.bf16.mxu0 %v687
    %751 = vmatpush1.bf16.msra.mxu0 %v686
    %752 = vmatprep.subr.bf16.mxu0 %v689
    %753 = vmatpush1.bf16.msra.mxu0 %v688
    %754 = vmatprep.subr.bf16.mxu0 %v691
    %755 = vmatpush1.bf16.msra.mxu0 %v690
    %756 = vmatprep.subr.bf16.mxu0 %v693
    %757 = vmatpush1.bf16.msra.mxu0 %v692
    %758 = vmatprep.subr.bf16.mxu0 %v695
    %759 = vmatpush1.bf16.msra.mxu0 %v694
    %760 = vmatprep.subr.bf16.mxu0 %v697
    %761 = vmatpush1.bf16.msra.mxu0 %v696
    %762 = vmatprep.subr.bf16.mxu0 %v699
    %763 = vmatpush1.bf16.msra.mxu0 %v698
    %764 = vmatprep.subr.bf16.mxu0 %v701
    %765 = vmatpush1.bf16.msra.mxu0 %v700
    %766 = vmatprep.subr.bf16.mxu0 %v703
    %767 = vmatpush1.bf16.msra.mxu0 %v702
    %768 = vmatprep.subr.bf16.mxu0 %v705
    %769 = vmatpush1.bf16.msra.mxu0 %v704
    %770 = vmatprep.subr.bf16.mxu0 %v707
    %771 = vmatpush1.bf16.msra.mxu0 %v706
    %772 = vmatprep.mubr.bf16.mxu0 %v527
    %773 = vmatmul.mubr.bf16.gmra.mrb[0].mxu0 %v526
    %v774 = vpop.f32.mrb[0].mxu0
    %v775 = vadd.f32 %v575, %v774
    %v776 = vpop.f32.mrb[0].mxu0
    %v777 = vadd.f32 %v579, %v776
    %v778 = vpop.f32.mrb[0].mxu0
    %v779 = vadd.f32 %v575, %v778
    %v780 = vpop.f32.mrb[0].mxu0
    %v781 = vadd.f32 %v579, %v780
    %782 = vdwg.mxu0
    %v783 = vxor.u32 %v775, 2147483648
    %v784 = vxor.u32 %v777, 2147483648
    %v785 = vxor.u32 %v779, 2147483648
    %v786 = vxor.u32 %v781, 2147483648
    %v787 = vmul.f32 %v783, 1.442695
    %v788 = vpow.pop %v787
    %v789 = vmul.f32 %v784, 1.442695
    %v790 = vpow.pop %v789
    %v791 = vmul.f32 %v785, 1.442695
    %v792 = vpow.pop %v791
    %v793 = vmul.f32 %v786, 1.442695
    %v794 = vpow.pop %v793
    %v795 = vadd.f32 %v788, 1.0
    %v796 = vadd.f32 %v790, 1.0
    %v797 = vadd.f32 %v792, 1.0
    %v798 = vadd.f32 %v794, 1.0
    %v799 = vrcp.pop %v795
    %v800 = vmul.f32 1.0, %v799
    %v801 = vrcp.pop %v796
    %v802 = vmul.f32 1.0, %v801
    %v803 = vrcp.pop %v797
    %v804 = vmul.f32 1.0, %v803
    %v805 = vrcp.pop %v798
    %v806 = vmul.f32 1.0, %v805
    %v807 = vmul.f32 %v775, %v800
    %v808 = vmul.f32 %v777, %v802
    %v809 = vmul.f32 %v779, %v804
    %v810 = vmul.f32 %v781, %v806
    %v811 = vld [vmem:[%s1] sm:$0xf]
    %v812 = vld [vmem:[%s1 + $0x4] sm:$0xf]
    %v813 = vld [vmem:[#allocation5] sm:$0xff]
    %v814 = vld [vmem:[#allocation5 + $0x8] sm:$0xff]
    %v815 = vld [vmem:[#allocation5 + $0x10] sm:$0xff]
    %v816 = vld [vmem:[#allocation5 + $0x18] sm:$0xff]
    %v817 = vld [vmem:[#allocation5 + $0x20] sm:$0xff]
    %v818 = vld [vmem:[#allocation5 + $0x28] sm:$0xff]
    %v819 = vld [vmem:[#allocation5 + $0x30] sm:$0xff]
    %v820 = vld [vmem:[#allocation5 + $0x38] sm:$0xff]
    %v821 = vld [vmem:[#allocation5 + $0x40] sm:$0xff]
    %v822 = vld [vmem:[#allocation5 + $0x48] sm:$0xff]
    %v823 = vld [vmem:[#allocation5 + $0x50] sm:$0xff]
    %v824 = vld [vmem:[#allocation5 + $0x58] sm:$0xff]
    %v825 = vld [vmem:[#allocation5 + $0x60] sm:$0xff]
    %v826 = vld [vmem:[#allocation5 + $0x68] sm:$0xff]
    %v827 = vld [vmem:[#allocation5 + $0x70] sm:$0xff]
    %v828 = vld [vmem:[#allocation5 + $0x78] sm:$0xff]
    %v831 = vunpack.c.l.b16 %v811
    %v832 = vunpack.c.l.b16 %v812
    %v833 = vpack.c.b16 %v832, %v831
    %v851 = vunpack.c.l.b16 %v813
    %v852 = vunpack.c.h.b16 %v813
    %v853 = vunpack.c.l.b16 %v814
    %v854 = vunpack.c.h.b16 %v814
    %v855 = vunpack.c.l.b16 %v815
    %v856 = vunpack.c.h.b16 %v815
    %v857 = vunpack.c.l.b16 %v816
    %v858 = vunpack.c.h.b16 %v816
    %v859 = vunpack.c.l.b16 %v817
    %v860 = vunpack.c.h.b16 %v817
    %v861 = vunpack.c.l.b16 %v818
    %v862 = vunpack.c.h.b16 %v818
    %v863 = vunpack.c.l.b16 %v819
    %v864 = vunpack.c.h.b16 %v819
    %v865 = vunpack.c.l.b16 %v820
    %v866 = vunpack.c.h.b16 %v820
    %v867 = vunpack.c.l.b16 %v821
    %v868 = vunpack.c.h.b16 %v821
    %v869 = vunpack.c.l.b16 %v822
    %v870 = vunpack.c.h.b16 %v822
    %v871 = vunpack.c.l.b16 %v823
    %v872 = vunpack.c.h.b16 %v823
    %v873 = vunpack.c.l.b16 %v824
    %v874 = vunpack.c.h.b16 %v824
    %v875 = vunpack.c.l.b16 %v825
    %v876 = vunpack.c.h.b16 %v825
    %v877 = vunpack.c.l.b16 %v826
    %v878 = vunpack.c.h.b16 %v826
    %v879 = vunpack.c.l.b16 %v827
    %v880 = vunpack.c.h.b16 %v827
    %v881 = vunpack.c.l.b16 %v828
    %v882 = vunpack.c.h.b16 %v828
    %v883 = vpack.c.b16 %v853, %v851
    %v884 = vpack.c.b16 %v854, %v852
    %v885 = vpack.c.b16 %v857, %v855
    %v886 = vpack.c.b16 %v858, %v856
    %v887 = vpack.c.b16 %v861, %v859
    %v888 = vpack.c.b16 %v862, %v860
    %v889 = vpack.c.b16 %v865, %v863
    %v890 = vpack.c.b16 %v866, %v864
    %v891 = vpack.c.b16 %v869, %v867
    %v892 = vpack.c.b16 %v870, %v868
    %v893 = vpack.c.b16 %v873, %v871
    %v894 = vpack.c.b16 %v874, %v872
    %v895 = vpack.c.b16 %v877, %v875
    %v896 = vpack.c.b16 %v878, %v876
    %v897 = vpack.c.b16 %v881, %v879
    %v898 = vpack.c.b16 %v882, %v880
    %915 = vmatprep.subr.bf16.mxu0 %v884
    %916 = vmatpush1.bf16.msra.mxu0 %v883
    %917 = vmatprep.subr.bf16.mxu0 %v886
    %918 = vmatpush1.bf16.msra.mxu0 %v885
    %919 = vmatprep.subr.bf16.mxu0 %v888
    %920 = vmatpush1.bf16.msra.mxu0 %v887
    %921 = vmatprep.subr.bf16.mxu0 %v890
    %922 = vmatpush1.bf16.msra.mxu0 %v889
    %923 = vmatprep.subr.bf16.mxu0 %v892
    %924 = vmatpush1.bf16.msra.mxu0 %v891
    %925 = vmatprep.subr.bf16.mxu0 %v894
    %926 = vmatpush1.bf16.msra.mxu0 %v893
    %927 = vmatprep.subr.bf16.mxu0 %v896
    %928 = vmatpush1.bf16.msra.mxu0 %v895
    %929 = vmatprep.subr.bf16.mxu0 %v898
    %930 = vmatpush1.bf16.msra.mxu0 %v897
    %931 = vmatprep.subr.bf16.mxu0 0
    %932 = vmatpush1.bf16.msra.mxu0 0
    %933 = vmatprep.subr.bf16.mxu0 0
    %934 = vmatpush1.bf16.msra.mxu0 0
    %935 = vmatprep.subr.bf16.mxu0 0
    %936 = vmatpush1.bf16.msra.mxu0 0
    %937 = vmatprep.subr.bf16.mxu0 0
    %938 = vmatpush1.bf16.msra.mxu0 0
    %939 = vmatprep.subr.bf16.mxu0 0
    %940 = vmatpush1.bf16.msra.mxu0 0
    %941 = vmatprep.subr.bf16.mxu0 0
    %942 = vmatpush1.bf16.msra.mxu0 0
    %943 = vmatprep.subr.bf16.mxu0 0
    %944 = vmatpush1.bf16.msra.mxu0 0
    %945 = vmatprep.subr.bf16.mxu0 0
    %946 = vmatpush1.bf16.msra.mxu0 0
    %947 = vmatprep.mubr.bf16.mxu0 0
    %948 = vmatmul.mubr.bf16.gmra.mrb[0].mxu0 %v833
    %v949 = vpop.f32.mrb[0].mxu0
    %v950 = vadd.f32 0.0, %v949
    %v951 = vpop.f32.mrb[0].mxu0
    %v952 = vadd.f32 0.0, %v951
    %v953 = vpop.f32.mrb[0].mxu0
    %v954 = vadd.f32 0.0, %v953
    %v955 = vpop.f32.mrb[0].mxu0
    %v956 = vadd.f32 0.0, %v955
    %957 = vdwg.mxu0
    %v958 = vld [vmem:[%s4] sm:$0x3]
    %v960 = vlaneseq
    %v961 = vshrl.u32 %v960, 7
    %v962 = vsub.s32 0, %v961
    %v963 = vrot.slane %v958, %v962
    %v964 = vlaneseq
    %v965 = vshrl.u32 %v964, 7
    %v966 = vsub.s32 1, %v965
    %v967 = vrot.slane %v958, %v966
    %v970 = vmul.f32 %v950, %v963
    %v971 = vmul.f32 %v952, %v967
    %v972 = vmul.f32 %v954, %v963
    %v973 = vmul.f32 %v956, %v967
    %v974 = vlaneseq
    %v975 = vshrl.u32 %v974, 7
    %v976 = vsub.s32 1, %v975
    %v977 = vrot.slane %v528, %v976
    %v978 = vlaneseq
    %v979 = vshrl.u32 %v978, 7
    %v980 = vsub.s32 3, %v979
    %v981 = vrot.slane %v528, %v980
    %v984 = vlaneseq
    %v985 = vshrl.u32 %v984, 7
    %v986 = vsub.s32 1, %v985
    %v987 = vrot.slane %v977, %v986
    %v988 = vlaneseq
    %v989 = vshrl.u32 %v988, 7
    %v990 = vsub.s32 1, %v989
    %v991 = vrot.slane %v981, %v990
    %v992 = vadd.f32 %v970, %v987
    %v993 = vadd.f32 %v971, %v991
    %v994 = vadd.f32 %v972, %v987
    %v995 = vadd.f32 %v973, %v991
    %v996 = vxor.u32 %v992, 2147483648
    %v997 = vxor.u32 %v993, 2147483648
    %v998 = vxor.u32 %v994, 2147483648
    %v999 = vxor.u32 %v995, 2147483648
    %v1000 = vmul.f32 %v996, 1.442695
    %v1001 = vpow.pop %v1000
    %v1002 = vmul.f32 %v997, 1.442695
    %v1003 = vpow.pop %v1002
    %v1004 = vmul.f32 %v998, 1.442695
    %v1005 = vpow.pop %v1004
    %v1006 = vmul.f32 %v999, 1.442695
    %v1007 = vpow.pop %v1006
    %v1008 = vadd.f32 %v1001, 1.0
    %v1009 = vadd.f32 %v1003, 1.0
    %v1010 = vadd.f32 %v1005, 1.0
    %v1011 = vadd.f32 %v1007, 1.0
    %v1012 = vrcp.pop %v1008
    %v1013 = vmul.f32 1.0, %v1012
    %v1014 = vrcp.pop %v1009
    %v1015 = vmul.f32 1.0, %v1014
    %v1016 = vrcp.pop %v1010
    %v1017 = vmul.f32 1.0, %v1016
    %v1018 = vrcp.pop %v1011
    %v1019 = vmul.f32 1.0, %v1018
    %v1020 = vmul.f32 %v992, %v1013
    %v1021 = vmul.f32 %v993, %v1015
    %v1022 = vmul.f32 %v994, %v1017
    %v1023 = vmul.f32 %v995, %v1019
    %v1024 = vld [vmem:[%s8] sm:$0xf]
    %v1025 = vpack.c.bf16 %v809, %v807
    %v1026 = vpack.c.bf16 %v810, %v808
    %v1027 = vld [vmem:[#allocation7] sm:$0xff]
    %v1028 = vld [vmem:[#allocation7 + $0x8] sm:$0xff]
    %v1029 = vld [vmem:[#allocation7 + $0x10] sm:$0xff]
    %v1030 = vld [vmem:[#allocation7 + $0x18] sm:$0xff]
    %v1031 = vld [vmem:[#allocation7 + $0x20] sm:$0xff]
    %v1032 = vld [vmem:[#allocation7 + $0x28] sm:$0xff]
    %v1033 = vld [vmem:[#allocation7 + $0x30] sm:$0xff]
    %v1034 = vld [vmem:[#allocation7 + $0x38] sm:$0xff]
    %v1035 = vld [vmem:[#allocation7 + $0x40] sm:$0xff]
    %v1036 = vld [vmem:[#allocation7 + $0x48] sm:$0xff]
    %v1037 = vld [vmem:[#allocation7 + $0x50] sm:$0xff]
    %v1038 = vld [vmem:[#allocation7 + $0x58] sm:$0xff]
    %v1039 = vld [vmem:[#allocation7 + $0x60] sm:$0xff]
    %v1040 = vld [vmem:[#allocation7 + $0x68] sm:$0xff]
    %v1041 = vld [vmem:[#allocation7 + $0x70] sm:$0xff]
    %v1042 = vld [vmem:[#allocation7 + $0x78] sm:$0xff]
    %v1043 = vld [vmem:[#allocation7 + $0x80] sm:$0xff]
    %v1044 = vld [vmem:[#allocation7 + $0x88] sm:$0xff]
    %v1045 = vld [vmem:[#allocation7 + $0x90] sm:$0xff]
    %v1046 = vld [vmem:[#allocation7 + $0x98] sm:$0xff]
    %v1047 = vld [vmem:[#allocation7 + $0xa0] sm:$0xff]
    %v1048 = vld [vmem:[#allocation7 + $0xa8] sm:$0xff]
    %v1049 = vld [vmem:[#allocation7 + $0xb0] sm:$0xff]
    %v1050 = vld [vmem:[#allocation7 + $0xb8] sm:$0xff]
    %v1051 = vld [vmem:[#allocation7 + $0xc0] sm:$0xff]
    %v1052 = vld [vmem:[#allocation7 + $0xc8] sm:$0xff]
    %v1053 = vld [vmem:[#allocation7 + $0xd0] sm:$0xff]
    %v1054 = vld [vmem:[#allocation7 + $0xd8] sm:$0xff]
    %v1055 = vld [vmem:[#allocation7 + $0xe0] sm:$0xff]
    %v1056 = vld [vmem:[#allocation7 + $0xe8] sm:$0xff]
    %v1057 = vld [vmem:[#allocation7 + $0xf0] sm:$0xff]
    %v1058 = vld [vmem:[#allocation7 + $0xf8] sm:$0xff]
    %v1091 = vunpack.c.l.b16 %v1027
    %v1092 = vunpack.c.h.b16 %v1027
    %v1093 = vunpack.c.l.b16 %v1028
    %v1094 = vunpack.c.h.b16 %v1028
    %v1095 = vunpack.c.l.b16 %v1029
    %v1096 = vunpack.c.h.b16 %v1029
    %v1097 = vunpack.c.l.b16 %v1030
    %v1098 = vunpack.c.h.b16 %v1030
    %v1099 = vunpack.c.l.b16 %v1031
    %v1100 = vunpack.c.h.b16 %v1031
    %v1101 = vunpack.c.l.b16 %v1032
    %v1102 = vunpack.c.h.b16 %v1032
    %v1103 = vunpack.c.l.b16 %v1033
    %v1104 = vunpack.c.h.b16 %v1033
    %v1105 = vunpack.c.l.b16 %v1034
    %v1106 = vunpack.c.h.b16 %v1034
    %v1107 = vunpack.c.l.b16 %v1035
    %v1108 = vunpack.c.h.b16 %v1035
    %v1109 = vunpack.c.l.b16 %v1036
    %v1110 = vunpack.c.h.b16 %v1036
    %v1111 = vunpack.c.l.b16 %v1037
    %v1112 = vunpack.c.h.b16 %v1037
    %v1113 = vunpack.c.l.b16 %v1038
    %v1114 = vunpack.c.h.b16 %v1038
    %v1115 = vunpack.c.l.b16 %v1039
    %v1116 = vunpack.c.h.b16 %v1039
    %v1117 = vunpack.c.l.b16 %v1040
    %v1118 = vunpack.c.h.b16 %v1040
    %v1119 = vunpack.c.l.b16 %v1041
    %v1120 = vunpack.c.h.b16 %v1041
    %v1121 = vunpack.c.l.b16 %v1042
    %v1122 = vunpack.c.h.b16 %v1042
    %v1123 = vunpack.c.l.b16 %v1043
    %v1124 = vunpack.c.h.b16 %v1043
    %v1125 = vunpack.c.l.b16 %v1044
    %v1126 = vunpack.c.h.b16 %v1044
    %v1127 = vunpack.c.l.b16 %v1045
    %v1128 = vunpack.c.h.b16 %v1045
    %v1129 = vunpack.c.l.b16 %v1046
    %v1130 = vunpack.c.h.b16 %v1046
    %v1131 = vunpack.c.l.b16 %v1047
    %v1132 = vunpack.c.h.b16 %v1047
    %v1133 = vunpack.c.l.b16 %v1048
    %v1134 = vunpack.c.h.b16 %v1048
    %v1135 = vunpack.c.l.b16 %v1049
    %v1136 = vunpack.c.h.b16 %v1049
    %v1137 = vunpack.c.l.b16 %v1050
    %v1138 = vunpack.c.h.b16 %v1050
    %v1139 = vunpack.c.l.b16 %v1051
    %v1140 = vunpack.c.h.b16 %v1051
    %v1141 = vunpack.c.l.b16 %v1052
    %v1142 = vunpack.c.h.b16 %v1052
    %v1143 = vunpack.c.l.b16 %v1053
    %v1144 = vunpack.c.h.b16 %v1053
    %v1145 = vunpack.c.l.b16 %v1054
    %v1146 = vunpack.c.h.b16 %v1054
    %v1147 = vunpack.c.l.b16 %v1055
    %v1148 = vunpack.c.h.b16 %v1055
    %v1149 = vunpack.c.l.b16 %v1056
    %v1150 = vunpack.c.h.b16 %v1056
    %v1151 = vunpack.c.l.b16 %v1057
    %v1152 = vunpack.c.h.b16 %v1057
    %v1153 = vunpack.c.l.b16 %v1058
    %v1154 = vunpack.c.h.b16 %v1058
    %v1155 = vpack.c.b16 %v1093, %v1091
    %v1156 = vpack.c.b16 %v1094, %v1092
    %v1157 = vpack.c.b16 %v1097, %v1095
    %v1158 = vpack.c.b16 %v1098, %v1096
    %v1159 = vpack.c.b16 %v1101, %v1099
    %v1160 = vpack.c.b16 %v1102, %v1100
    %v1161 = vpack.c.b16 %v1105, %v1103
    %v1162 = vpack.c.b16 %v1106, %v1104
    %v1163 = vpack.c.b16 %v1109, %v1107
    %v1164 = vpack.c.b16 %v1110, %v1108
    %v1165 = vpack.c.b16 %v1113, %v1111
    %v1166 = vpack.c.b16 %v1114, %v1112
    %v1167 = vpack.c.b16 %v1117, %v1115
    %v1168 = vpack.c.b16 %v1118, %v1116
    %v1169 = vpack.c.b16 %v1121, %v1119
    %v1170 = vpack.c.b16 %v1122, %v1120
    %v1171 = vpack.c.b16 %v1125, %v1123
    %v1172 = vpack.c.b16 %v1126, %v1124
    %v1173 = vpack.c.b16 %v1129, %v1127
    %v1174 = vpack.c.b16 %v1130, %v1128
    %v1175 = vpack.c.b16 %v1133, %v1131
    %v1176 = vpack.c.b16 %v1134, %v1132
    %v1177 = vpack.c.b16 %v1137, %v1135
    %v1178 = vpack.c.b16 %v1138, %v1136
    %v1179 = vpack.c.b16 %v1141, %v1139
    %v1180 = vpack.c.b16 %v1142, %v1140
    %v1181 = vpack.c.b16 %v1145, %v1143
    %v1182 = vpack.c.b16 %v1146, %v1144
    %v1183 = vpack.c.b16 %v1149, %v1147
    %v1184 = vpack.c.b16 %v1150, %v1148
    %v1185 = vpack.c.b16 %v1153, %v1151
    %v1186 = vpack.c.b16 %v1154, %v1152
    %1219 = vmatprep.subr.bf16.mxu0 %v1156
    %1220 = vmatpush1.bf16.msra.mxu0 %v1155
    %1221 = vmatprep.subr.bf16.mxu0 %v1158
    %1222 = vmatpush1.bf16.msra.mxu0 %v1157
    %1223 = vmatprep.subr.bf16.mxu0 %v1160
    %1224 = vmatpush1.bf16.msra.mxu0 %v1159
    %1225 = vmatprep.subr.bf16.mxu0 %v1162
    %1226 = vmatpush1.bf16.msra.mxu0 %v1161
    %1227 = vmatprep.subr.bf16.mxu0 %v1164
    %1228 = vmatpush1.bf16.msra.mxu0 %v1163
    %1229 = vmatprep.subr.bf16.mxu0 %v1166
    %1230 = vmatpush1.bf16.msra.mxu0 %v1165
    %1231 = vmatprep.subr.bf16.mxu0 %v1168
    %1232 = vmatpush1.bf16.msra.mxu0 %v1167
    %1233 = vmatprep.subr.bf16.mxu0 %v1170
    %1234 = vmatpush1.bf16.msra.mxu0 %v1169
    %1235 = vmatprep.subr.bf16.mxu0 %v1172
    %1236 = vmatpush1.bf16.msra.mxu0 %v1171
    %1237 = vmatprep.subr.bf16.mxu0 %v1174
    %1238 = vmatpush1.bf16.msra.mxu0 %v1173
    %1239 = vmatprep.subr.bf16.mxu0 %v1176
    %1240 = vmatpush1.bf16.msra.mxu0 %v1175
    %1241 = vmatprep.subr.bf16.mxu0 %v1178
    %1242 = vmatpush1.bf16.msra.mxu0 %v1177
    %1243 = vmatprep.subr.bf16.mxu0 %v1180
    %1244 = vmatpush1.bf16.msra.mxu0 %v1179
    %1245 = vmatprep.subr.bf16.mxu0 %v1182
    %1246 = vmatpush1.bf16.msra.mxu0 %v1181
    %1247 = vmatprep.subr.bf16.mxu0 %v1184
    %1248 = vmatpush1.bf16.msra.mxu0 %v1183
    %1249 = vmatprep.subr.bf16.mxu0 %v1186
    %1250 = vmatpush1.bf16.msra.mxu0 %v1185
    %1251 = vmatprep.mubr.bf16.mxu0 %v1026
    %1252 = vmatmul.mubr.bf16.gmra.mrb[0].mxu0 %v1025
    %v1253 = vpop.f32.mrb[0].mxu0
    %v1254 = vadd.f32 0.0, %v1253
    %v1255 = vpop.f32.mrb[0].mxu0
    %v1256 = vadd.f32 0.0, %v1255
    %v1257 = vpop.f32.mrb[0].mxu0
    %v1258 = vadd.f32 0.0, %v1257
    %v1259 = vpop.f32.mrb[0].mxu0
    %v1260 = vadd.f32 0.0, %v1259
    %1261 = vdwg.mxu0
    %v1263 = vlaneseq
    %v1264 = vshrl.u32 %v1263, 7
    %v1265 = vsub.s32 0, %v1264
    %v1266 = vrot.slane %v1024, %v1265
    %v1267 = vlaneseq
    %v1268 = vshrl.u32 %v1267, 7
    %v1269 = vsub.s32 2, %v1268
    %v1270 = vrot.slane %v1024, %v1269
    %v1273 = vlaneseq
    %v1274 = vshrl.u32 %v1273, 7
    %v1275 = vsub.s32 0, %v1274
    %v1276 = vrot.slane %v1266, %v1275
    %v1277 = vlaneseq
    %v1278 = vshrl.u32 %v1277, 7
    %v1279 = vsub.s32 0, %v1278
    %v1280 = vrot.slane %v1270, %v1279
    %v1281 = vmul.f32 %v1254, %v1276
    %v1282 = vmul.f32 %v1256, %v1280
    %v1283 = vmul.f32 %v1258, %v1276
    %v1284 = vmul.f32 %v1260, %v1280
    %v1285 = vpack.c.bf16 %v1022, %v1020
    %v1286 = vpack.c.bf16 %v1023, %v1021
    %v1287 = vld [vmem:[#allocation8] sm:$0xff]
    %v1288 = vld [vmem:[#allocation8 + $0x8] sm:$0xff]
    %v1289 = vld [vmem:[#allocation8 + $0x10] sm:$0xff]
    %v1290 = vld [vmem:[#allocation8 + $0x18] sm:$0xff]
    %v1291 = vld [vmem:[#allocation8 + $0x20] sm:$0xff]
    %v1292 = vld [vmem:[#allocation8 + $0x28] sm:$0xff]
    %v1293 = vld [vmem:[#allocation8 + $0x30] sm:$0xff]
    %v1294 = vld [vmem:[#allocation8 + $0x38] sm:$0xff]
    %v1295 = vld [vmem:[#allocation8 + $0x40] sm:$0xff]
    %v1296 = vld [vmem:[#allocation8 + $0x48] sm:$0xff]
    %v1297 = vld [vmem:[#allocation8 + $0x50] sm:$0xff]
    %v1298 = vld [vmem:[#allocation8 + $0x58] sm:$0xff]
    %v1299 = vld [vmem:[#allocation8 + $0x60] sm:$0xff]
    %v1300 = vld [vmem:[#allocation8 + $0x68] sm:$0xff]
    %v1301 = vld [vmem:[#allocation8 + $0x70] sm:$0xff]
    %v1302 = vld [vmem:[#allocation8 + $0x78] sm:$0xff]
    %v1303 = vld [vmem:[#allocation8 + $0x80] sm:$0xff]
    %v1304 = vld [vmem:[#allocation8 + $0x88] sm:$0xff]
    %v1305 = vld [vmem:[#allocation8 + $0x90] sm:$0xff]
    %v1306 = vld [vmem:[#allocation8 + $0x98] sm:$0xff]
    %v1307 = vld [vmem:[#allocation8 + $0xa0] sm:$0xff]
    %v1308 = vld [vmem:[#allocation8 + $0xa8] sm:$0xff]
    %v1309 = vld [vmem:[#allocation8 + $0xb0] sm:$0xff]
    %v1310 = vld [vmem:[#allocation8 + $0xb8] sm:$0xff]
    %v1311 = vld [vmem:[#allocation8 + $0xc0] sm:$0xff]
    %v1312 = vld [vmem:[#allocation8 + $0xc8] sm:$0xff]
    %v1313 = vld [vmem:[#allocation8 + $0xd0] sm:$0xff]
    %v1314 = vld [vmem:[#allocation8 + $0xd8] sm:$0xff]
    %v1315 = vld [vmem:[#allocation8 + $0xe0] sm:$0xff]
    %v1316 = vld [vmem:[#allocation8 + $0xe8] sm:$0xff]
    %v1317 = vld [vmem:[#allocation8 + $0xf0] sm:$0xff]
    %v1318 = vld [vmem:[#allocation8 + $0xf8] sm:$0xff]
    %v1351 = vunpack.c.l.b16 %v1287
    %v1352 = vunpack.c.h.b16 %v1287
    %v1353 = vunpack.c.l.b16 %v1288
    %v1354 = vunpack.c.h.b16 %v1288
    %v1355 = vunpack.c.l.b16 %v1289
    %v1356 = vunpack.c.h.b16 %v1289
    %v1357 = vunpack.c.l.b16 %v1290
    %v1358 = vunpack.c.h.b16 %v1290
    %v1359 = vunpack.c.l.b16 %v1291
    %v1360 = vunpack.c.h.b16 %v1291
    %v1361 = vunpack.c.l.b16 %v1292
    %v1362 = vunpack.c.h.b16 %v1292
    %v1363 = vunpack.c.l.b16 %v1293
    %v1364 = vunpack.c.h.b16 %v1293
    %v1365 = vunpack.c.l.b16 %v1294
    %v1366 = vunpack.c.h.b16 %v1294
    %v1367 = vunpack.c.l.b16 %v1295
    %v1368 = vunpack.c.h.b16 %v1295
    %v1369 = vunpack.c.l.b16 %v1296
    %v1370 = vunpack.c.h.b16 %v1296
    %v1371 = vunpack.c.l.b16 %v1297
    %v1372 = vunpack.c.h.b16 %v1297
    %v1373 = vunpack.c.l.b16 %v1298
    %v1374 = vunpack.c.h.b16 %v1298
    %v1375 = vunpack.c.l.b16 %v1299
    %v1376 = vunpack.c.h.b16 %v1299
    %v1377 = vunpack.c.l.b16 %v1300
    %v1378 = vunpack.c.h.b16 %v1300
    %v1379 = vunpack.c.l.b16 %v1301
    %v1380 = vunpack.c.h.b16 %v1301
    %v1381 = vunpack.c.l.b16 %v1302
    %v1382 = vunpack.c.h.b16 %v1302
    %v1383 = vunpack.c.l.b16 %v1303
    %v1384 = vunpack.c.h.b16 %v1303
    %v1385 = vunpack.c.l.b16 %v1304
    %v1386 = vunpack.c.h.b16 %v1304
    %v1387 = vunpack.c.l.b16 %v1305
    %v1388 = vunpack.c.h.b16 %v1305
    %v1389 = vunpack.c.l.b16 %v1306
    %v1390 = vunpack.c.h.b16 %v1306
    %v1391 = vunpack.c.l.b16 %v1307
    %v1392 = vunpack.c.h.b16 %v1307
    %v1393 = vunpack.c.l.b16 %v1308
    %v1394 = vunpack.c.h.b16 %v1308
    %v1395 = vunpack.c.l.b16 %v1309
    %v1396 = vunpack.c.h.b16 %v1309
    %v1397 = vunpack.c.l.b16 %v1310
    %v1398 = vunpack.c.h.b16 %v1310
    %v1399 = vunpack.c.l.b16 %v1311
    %v1400 = vunpack.c.h.b16 %v1311
    %v1401 = vunpack.c.l.b16 %v1312
    %v1402 = vunpack.c.h.b16 %v1312
    %v1403 = vunpack.c.l.b16 %v1313
    %v1404 = vunpack.c.h.b16 %v1313
    %v1405 = vunpack.c.l.b16 %v1314
    %v1406 = vunpack.c.h.b16 %v1314
    %v1407 = vunpack.c.l.b16 %v1315
    %v1408 = vunpack.c.h.b16 %v1315
    %v1409 = vunpack.c.l.b16 %v1316
    %v1410 = vunpack.c.h.b16 %v1316
    %v1411 = vunpack.c.l.b16 %v1317
    %v1412 = vunpack.c.h.b16 %v1317
    %v1413 = vunpack.c.l.b16 %v1318
    %v1414 = vunpack.c.h.b16 %v1318
    %v1415 = vpack.c.b16 %v1353, %v1351
    %v1416 = vpack.c.b16 %v1354, %v1352
    %v1417 = vpack.c.b16 %v1357, %v1355
    %v1418 = vpack.c.b16 %v1358, %v1356
    %v1419 = vpack.c.b16 %v1361, %v1359
    %v1420 = vpack.c.b16 %v1362, %v1360
    %v1421 = vpack.c.b16 %v1365, %v1363
    %v1422 = vpack.c.b16 %v1366, %v1364
    %v1423 = vpack.c.b16 %v1369, %v1367
    %v1424 = vpack.c.b16 %v1370, %v1368
    %v1425 = vpack.c.b16 %v1373, %v1371
    %v1426 = vpack.c.b16 %v1374, %v1372
    %v1427 = vpack.c.b16 %v1377, %v1375
    %v1428 = vpack.c.b16 %v1378, %v1376
    %v1429 = vpack.c.b16 %v1381, %v1379
    %v1430 = vpack.c.b16 %v1382, %v1380
    %v1431 = vpack.c.b16 %v1385, %v1383
    %v1432 = vpack.c.b16 %v1386, %v1384
    %v1433 = vpack.c.b16 %v1389, %v1387
    %v1434 = vpack.c.b16 %v1390, %v1388
    %v1435 = vpack.c.b16 %v1393, %v1391
    %v1436 = vpack.c.b16 %v1394, %v1392
    %v1437 = vpack.c.b16 %v1397, %v1395
    %v1438 = vpack.c.b16 %v1398, %v1396
    %v1439 = vpack.c.b16 %v1401, %v1399
    %v1440 = vpack.c.b16 %v1402, %v1400
    %v1441 = vpack.c.b16 %v1405, %v1403
    %v1442 = vpack.c.b16 %v1406, %v1404
    %v1443 = vpack.c.b16 %v1409, %v1407
    %v1444 = vpack.c.b16 %v1410, %v1408
    %v1445 = vpack.c.b16 %v1413, %v1411
    %v1446 = vpack.c.b16 %v1414, %v1412
    %1479 = vmatprep.subr.bf16.mxu0 %v1416
    %1480 = vmatpush1.bf16.msra.mxu0 %v1415
    %1481 = vmatprep.subr.bf16.mxu0 %v1418
    %1482 = vmatpush1.bf16.msra.mxu0 %v1417
    %1483 = vmatprep.subr.bf16.mxu0 %v1420
    %1484 = vmatpush1.bf16.msra.mxu0 %v1419
    %1485 = vmatprep.subr.bf16.mxu0 %v1422
    %1486 = vmatpush1.bf16.msra.mxu0 %v1421
    %1487 = vmatprep.subr.bf16.mxu0 %v1424
    %1488 = vmatpush1.bf16.msra.mxu0 %v1423
    %1489 = vmatprep.subr.bf16.mxu0 %v1426
    %1490 = vmatpush1.bf16.msra.mxu0 %v1425
    %1491 = vmatprep.subr.bf16.mxu0 %v1428
    %1492 = vmatpush1.bf16.msra.mxu0 %v1427
    %1493 = vmatprep.subr.bf16.mxu0 %v1430
    %1494 = vmatpush1.bf16.msra.mxu0 %v1429
    %1495 = vmatprep.subr.bf16.mxu0 %v1432
    %1496 = vmatpush1.bf16.msra.mxu0 %v1431
    %1497 = vmatprep.subr.bf16.mxu0 %v1434
    %1498 = vmatpush1.bf16.msra.mxu0 %v1433
    %1499 = vmatprep.subr.bf16.mxu0 %v1436
    %1500 = vmatpush1.bf16.msra.mxu0 %v1435
    %1501 = vmatprep.subr.bf16.mxu0 %v1438
    %1502 = vmatpush1.bf16.msra.mxu0 %v1437
    %1503 = vmatprep.subr.bf16.mxu0 %v1440
    %1504 = vmatpush1.bf16.msra.mxu0 %v1439
    %1505 = vmatprep.subr.bf16.mxu0 %v1442
    %1506 = vmatpush1.bf16.msra.mxu0 %v1441
    %1507 = vmatprep.subr.bf16.mxu0 %v1444
    %1508 = vmatpush1.bf16.msra.mxu0 %v1443
    %1509 = vmatprep.subr.bf16.mxu0 %v1446
    %1510 = vmatpush1.bf16.msra.mxu0 %v1445
    %1511 = vmatprep.mubr.bf16.mxu0 %v1286
    %1512 = vmatmul.mubr.bf16.gmra.mrb[0].mxu0 %v1285
    %v1513 = vpop.f32.mrb[0].mxu0
    %v1514 = vadd.f32 0.0, %v1513
    %v1515 = vpop.f32.mrb[0].mxu0
    %v1516 = vadd.f32 0.0, %v1515
    %v1517 = vpop.f32.mrb[0].mxu0
    %v1518 = vadd.f32 0.0, %v1517
    %v1519 = vpop.f32.mrb[0].mxu0
    %v1520 = vadd.f32 0.0, %v1519
    %1521 = vdwg.mxu0
    %v1522 = vlaneseq
    %v1523 = vshrl.u32 %v1522, 7
    %v1524 = vsub.s32 1, %v1523
    %v1525 = vrot.slane %v1024, %v1524
    %v1526 = vlaneseq
    %v1527 = vshrl.u32 %v1526, 7
    %v1528 = vsub.s32 3, %v1527
    %v1529 = vrot.slane %v1024, %v1528
    %v1532 = vlaneseq
    %v1533 = vshrl.u32 %v1532, 7
    %v1534 = vsub.s32 1, %v1533
    %v1535 = vrot.slane %v1525, %v1534
    %v1536 = vlaneseq
    %v1537 = vshrl.u32 %v1536, 7
    %v1538 = vsub.s32 1, %v1537
    %v1539 = vrot.slane %v1529, %v1538
    %v1540 = vmul.f32 %v1514, %v1535
    %v1541 = vmul.f32 %v1516, %v1539
    %v1542 = vmul.f32 %v1518, %v1535
    %v1543 = vmul.f32 %v1520, %v1539
    %v1544 = vadd.f32 %v1281, %v1540
    %v1545 = vadd.f32 %v1282, %v1541
    %v1546 = vadd.f32 %v1283, %v1542
    %v1547 = vadd.f32 %v1284, %v1543
    %v1548 = vld [vmem:[%s9] sm:$0x3]
    %v1550 = vlaneseq
    %v1551 = vshrl.u32 %v1550, 7
    %v1552 = vsub.s32 0, %v1551
    %v1553 = vrot.slane %v1548, %v1552
    %v1554 = vlaneseq
    %v1555 = vshrl.u32 %v1554, 7
    %v1556 = vsub.s32 1, %v1555
    %v1557 = vrot.slane %v1548, %v1556
    %v1560 = vadd.f32 %v1544, %v1553
    %v1561 = vadd.f32 %v1545, %v1557
    %v1562 = vadd.f32 %v1546, %v1553
    %v1563 = vadd.f32 %v1547, %v1557
    %1564 = vst [vmem:[#allocation10] sm:$0xff] %v1560
    %1565 = vst [vmem:[#allocation10 + $0x8] sm:$0xff] %v1561
    %1566 = vst [vmem:[#allocation10 + $0x10] sm:$0xff] %v1562
    %1567 = vst [vmem:[#allocation10 + $0x18] sm:$0xff] %v1563
    // Predicated region
    $region58: #{tpu_custom_call.1} parent=1 // pred_check
      _
    $region59: #{tpu_custom_call.1} parent=1 // pred_check_branch
      %1569 = sbr.rel (0) target = $region61
    $region60: #{tpu_custom_call.1} parent=1 // pred_region
      %s1571 = ssub.s32 512, 512
      %1572 = vsyncadd [#allocation4], %s1571
      %s1573 = sshll.u32 [#allocation10], 4
      %s1574 = int_to_ptr.vmem [resolvable:$true] %s1573
      %1579 = dma.vmem_to_hbm [thread:$0]  %s1574, 512, %s10, [#allocation4], 256, 256, 16
    $region61: #{tpu_custom_call.1} parent=1 // pred_fallthru
      _
    // Predicated region
    $region62: #{tpu_custom_call.1} parent=1 // pred_check
      _
    $region63: #{tpu_custom_call.1} parent=1 // pred_check_branch
      %1581 = sbr.rel (0) target = $region65
    $region64: #{tpu_custom_call.1} parent=1 // pred_region
      %1582 = dma.done [#allocation4], 512
    $region65: #{tpu_custom_call.1} parent=1 // pred_fallthru
      _
    %1583 = vsyncpa [#allocation3], 1
    %1584 = vsyncpa [#allocation6], 1
    %1585 = vsyncpa [#allocation9], 1
    %1586 = vsyncpa [#allocation4], 1

</llo_original>
